<compile_context>
chip_gen: v5e
topology: v5e:2x2
jax: 0.10.0
libtpu: 0.0.40
codegen_flags: <defaults>
</compile_context>

<pallas_src>
import functools

import jax
import jax.numpy as jnp
from jax import lax
from jax.experimental import pallas as pl
from jax.experimental.pallas import tpu as pltpu


def _bottleneck_kernel(x_ref, halo_ref, w1_ref, b1_ref, w2_ref, b2_ref,
                       w3_ref, b3_ref, o_ref, y1p_ref, *, h_valid, mask_rows):
    TH, W, Cin = x_ref.shape
    Fp = w1_ref.shape[1]
    Cout = w3_ref.shape[1]
    Wp = W + 2
    f32 = jnp.float32
    bf16 = jnp.bfloat16
    row0 = pl.program_id(1) * TH          # global image row of the first tile row

    # ---- convbn1 (1x1 conv == channel matmul) on the TH tile rows --------------
    y1 = jnp.dot(x_ref[...].reshape(TH * W, Cin), w1_ref[...],
                 preferred_element_type=f32) + b1_ref[...]
    y1 = y1.reshape(TH, W, Fp)
    if mask_rows:
        # H was padded up to a multiple of TH: rows past the real image must be
        # exactly zero in conv1-output space (they act as conv2's zero padding).
        gr = row0 + lax.broadcasted_iota(jnp.int32, (TH, W, Fp), 0)
        y1 = jnp.where(gr < h_valid, y1, 0.0)
    y1 = y1.astype(bf16)

    # ---- convbn1 on the two halo rows; zero them where they fall outside the ---
    # real image (the 3x3 conv's zero padding is zero AFTER conv1, not zero x).
    y1h = jnp.dot(halo_ref[...].reshape(2 * W, Cin), w1_ref[...],
                  preferred_element_type=f32) + b1_ref[...]
    y1h = y1h.reshape(2, W, Fp)
    top_ok = (row0 > 0).astype(f32)                 # the row above the tile exists
    bot_ok = (row0 + TH < h_valid).astype(f32)      # the row below the tile exists
    y1_top = (y1h[0:1] * top_ok).astype(bf16)       # (1, W, Fp)
    y1_bot = (y1h[1:2] * bot_ok).astype(bf16)       # (1, W, Fp)

    # ---- width-pad + slack row, park in a flat bf16 VMEM scratch ----------------
    # Flat layout: every 3x3 tap below is one contiguous static-offset load + matmul.
    y1_all = jnp.concatenate([y1_top, y1, y1_bot], axis=0)          # (TH+2, W, Fp)
    zcol = jnp.zeros((TH + 2, 1, Fp), bf16)
    zrow = jnp.zeros((1, Wp, Fp), bf16)
    y1p = jnp.concatenate([zcol, y1_all, zcol], axis=1)             # (TH+2, Wp, Fp)
    y1p = jnp.concatenate([y1p, zrow], axis=0)                      # (TH+3, Wp, Fp)
    y1p_ref[...] = y1p.reshape((TH + 3) * Wp, Fp)

    # ---- convbn2: 3x3 conv, pad=1, stride=1 as 9 shifted flat matmuls -----------
    # Uninterrupted acc += dot chain (MRB in-place accumulate on v7x); bias add,
    # junk-column drop and casts stay outside the loop.
    M2 = TH * Wp
    acc = jnp.dot(y1p_ref[pl.ds(0, M2), :], w2_ref[0, 0],
                  preferred_element_type=f32)
    for ky in range(3):
        for kx in range(3):
            if ky == 0 and kx == 0:
                continue
            base = ky * Wp + kx                                     # static offset
            acc = acc + jnp.dot(y1p_ref[pl.ds(base, M2), :], w2_ref[ky, kx],
                                preferred_element_type=f32)
    y2 = acc + b2_ref[...]
    # Drop the 2 junk columns per row introduced by the flat-window trick.
    y2 = y2.reshape(TH, Wp, Fp)[:, :W, :].reshape(TH * W, Fp).astype(bf16)

    # ---- convbn3: 1x1 expansion + identity residual + ReLU ----------------------
    y3 = jnp.dot(y2, w3_ref[...], preferred_element_type=f32) + b3_ref[...]
    res = x_ref[...].reshape(TH * W, Cin).astype(f32)
    out = jnp.maximum(y3 + res, 0.0)
    o_ref[...] = out.reshape(TH, W, Cout).astype(o_ref.dtype)


def _pick_row_tile(N, H, W, C, Fp, Cout, pixels_per_tile, vmem_budget_bytes):
    # Target TH*W pixels per grid step (fills the MXU M dim, amortizes the ~0.35us
    # per-step pipeline overhead), bounded by a per-step VMEM working-set budget
    # (set the budget ~half as large when targeting v7x's 64 MiB VMEM).
    th = max(1, pixels_per_tile // max(W, 1))
    per_row = W * (
        2 * 2 * C * 2          # x tile (bf16), double-buffered
        + 2 * 2 * Cout * 2     # out tile (bf16), double-buffered
        + 2 * Fp * 2           # y1p scratch rows (bf16), with slack for the width pad
        + 3 * Fp * 4           # conv2 accumulator + f32 intermediates
        + 2 * Cout * 4         # conv3 / epilogue f32 temps
    )
    th = min(th, max(1, vmem_budget_bytes // max(per_row, 1)))
    th = min(th, H)
    # Keep at least 2 grid steps so both TensorCores get work (megacore / v7x).
    while th > 1 and N * (-(-H // th)) < 2:
        th = -(-th // 2)
    return max(1, th)


def residual_bottleneck_nhwc(x_nhwc, params, *, row_tile=None, pixels_per_tile=4096,
                             vmem_budget_bytes=20 * 1024 * 1024,
                             vmem_limit_bytes=48 * 1024 * 1024,
                             out_dtype=jnp.bfloat16):
    """x_nhwc: [N, H, W, C] (C must equal 4*n_filters for the identity residual)."""
    w1, b1, w2, b2, w3, b3 = params
    N, H, W, C = x_nhwc.shape
    Fp = w1.shape[1]
    Cout = w3.shape[1]
    assert C == Cout, "identity residual requires in_channels == 4 * n_filters"

    if row_tile is not None:
        TH = max(1, min(int(row_tile), H))
    else:
        TH = _pick_row_tile(N, H, W, C, Fp, Cout, pixels_per_tile, vmem_budget_bytes)
    R = -(-H // TH)
    H_pad = R * TH

    xb = x_nhwc.astype(jnp.bfloat16)
    if H_pad != H:
        xb = jnp.pad(xb, ((0, 0), (0, H_pad - H), (0, 0), (0, 0)))

    # Per-tile halo rows (row above / below each tile).  Their content at image
    # borders / in the pad region is irrelevant: the kernel zeroes those rows in
    # conv1-output space.
    zero_row = jnp.zeros((N, 1, W, C), jnp.bfloat16)
    tops = jnp.concatenate([zero_row, xb[:, TH - 1:H_pad - 1:TH]], axis=1)   # (N,R,W,C)
    bots = jnp.concatenate([xb[:, TH:H_pad:TH], zero_row], axis=1)           # (N,R,W,C)
    halo = jnp.stack([tops, bots], axis=2)                                   # (N,R,2,W,C)

    def full_spec(a):
        return pl.BlockSpec(a.shape, lambda n, i, _nd=a.ndim: (0,) * _nd)

    kernel = functools.partial(_bottleneck_kernel, h_valid=H,
                               mask_rows=(H_pad != H))

    out = pl.pallas_call(
        kernel,
        out_shape=jax.ShapeDtypeStruct((N, H_pad, W, Cout), out_dtype),
        grid=(N, R),
        in_specs=[
            pl.BlockSpec((None, TH, W, C), lambda n, i: (n, i, 0, 0)),
            pl.BlockSpec((None, None, 2, W, C), lambda n, i: (n, i, 0, 0, 0)),
            full_spec(w1), full_spec(b1),
            full_spec(w2), full_spec(b2),
            full_spec(w3), full_spec(b3),
        ],
        out_specs=pl.BlockSpec((None, TH, W, Cout), lambda n, i: (n, i, 0, 0)),
        scratch_shapes=[pltpu.VMEM(((TH + 3) * (W + 2), Fp), jnp.bfloat16)],
        compiler_params=pltpu.CompilerParams(
            dimension_semantics=("parallel", "parallel"),
            vmem_limit_bytes=vmem_limit_bytes),
    )(xb, halo, w1, b1, w2, b2, w3, b3)

    return out if H_pad == H else out[:, :H]


def residual_bottleneck(x_nchw, params, **kwargs):
    """NCHW wrapper matching the PyTorch module layout.  Prefer the NHWC entry point
    in NHWC pipelines to avoid the two extra HBM transpose passes."""
    x = jnp.transpose(x_nchw, (0, 2, 3, 1))
    out = residual_bottleneck_nhwc(x, params, **kwargs)
    return jnp.transpose(out, (0, 3, 1, 2))


def make_params(key, in_channels, n_filters):
    """Deterministic synthetic parameters.  BatchNorm is folded to its inference
    affine; the scale is folded directly into the conv weights (exact).  The
    bottleneck width F is zero-padded to a lane-dense >=128 (exact: padded channels
    have zero weights and zero biases).  Weights bf16 (MXU operands), biases f32."""
    expansion = 4
    eps = 1e-5
    F = n_filters
    Cout = n_filters * expansion
    Fp = max(128, ((F + 7) // 8) * 8)
    keys = jax.random.split(key, 15)

    def folded_bn(kg, kb, km, kv, c):
        gamma = jax.random.uniform(kg, (c,), jnp.float32, 0.5, 1.5)
        beta = 0.1 * jax.random.normal(kb, (c,), jnp.float32)
        mean = 0.1 * jax.random.normal(km, (c,), jnp.float32)
        var = jax.random.uniform(kv, (c,), jnp.float32, 0.5, 1.5)
        scale = gamma * lax.rsqrt(var + eps)
        bias = beta - mean * scale
        return scale, bias

    # PyTorch conv weights are (out, in, kh, kw); convert to channel-matmul / HWIO.
    w1_pt = 0.1 * jax.random.normal(keys[0], (F, in_channels, 1, 1), jnp.float32)
    w2_pt = 0.1 * jax.random.normal(keys[1], (F, F, 3, 3), jnp.float32)
    w3_pt = 0.1 * jax.random.normal(keys[2], (Cout, F, 1, 1), jnp.float32)
    w1 = jnp.transpose(w1_pt, (2, 3, 1, 0)).reshape(in_channels, F)     # (Cin, F)
    w2 = jnp.transpose(w2_pt, (2, 3, 1, 0))                             # (3,3,F,F) HWIO
    w3 = jnp.transpose(w3_pt, (2, 3, 1, 0)).reshape(F, Cout)            # (F, Cout)

    s1, b1 = folded_bn(keys[3], keys[4], keys[5], keys[6], F)
    s2, b2 = folded_bn(keys[7], keys[8], keys[9], keys[10], F)
    s3, b3 = folded_bn(keys[11], keys[12], keys[13], keys[14], Cout)

    w1f = w1 * s1[None, :]
    w2f = w2 * s2[None, None, None, :]
    w3f = w3 * s3[None, :]

    # Zero-pad F -> Fp (exact).
    w1p = jnp.zeros((in_channels, Fp), jnp.float32).at[:, :F].set(w1f)
    b1p = jnp.zeros((1, Fp), jnp.float32).at[:, :F].set(b1)
    w2p = jnp.zeros((3, 3, Fp, Fp), jnp.float32).at[:, :, :F, :F].set(w2f)
    b2p = jnp.zeros((1, Fp), jnp.float32).at[:, :F].set(b2)
    w3p = jnp.zeros((Fp, Cout), jnp.float32).at[:F, :].set(w3f)

    return (w1p.astype(jnp.bfloat16), b1p,
            w2p.astype(jnp.bfloat16), b2p,
            w3p.astype(jnp.bfloat16), b3.reshape(1, -1))


def reference_bottleneck(x_nchw, params):
    """Pure-JAX reference (lax.conv) mirroring the kernel's bf16 operand rounding."""
    w1, b1, w2, b2, w3, b3 = params
    x = jnp.transpose(x_nchw, (0, 2, 3, 1))
    x = x.astype(jnp.bfloat16).astype(jnp.float32)
    Cin = x.shape[-1]
    Fp = w1.shape[1]
    Cout = w3.shape[1]

    def conv(a, w, pad):
        return lax.conv_general_dilated(
            a, w.astype(jnp.float32), (1, 1), [(pad, pad), (pad, pad)],
            dimension_numbers=('NHWC', 'HWIO', 'NHWC'))

    y = conv(x, w1.reshape(1, 1, Cin, Fp), 0) + b1
    y = y.astype(jnp.bfloat16).astype(jnp.float32)
    y = conv(y, w2, 1) + b2
    y = y.astype(jnp.bfloat16).astype(jnp.float32)
    y = conv(y, w3.reshape(1, 1, Fp, Cout), 0) + b3
    y = jnp.maximum(y + x, 0.0)
    return jnp.transpose(y, (0, 3, 1, 2))


if __name__ == "__main__":
    key = jax.random.PRNGKey(0)
    kx, kp, kx2 = jax.random.split(key, 3)

    # Identity residual (downsample=None, stride=1) requires in_channels == 4*n_filters.
    # Lane-dense channels (Cin = Cout = 256) keep HBM-facing loads/stores unmasked.
    N, n_filters, H, W = 2, 64, 16, 16
    Cin = 4 * n_filters

    x = jax.random.normal(kx, (N, Cin, H, W), jnp.float32)
    params = make_params(kp, Cin, n_filters)

    out = jax.block_until_ready(residual_bottleneck(x, params))
    ref = reference_bottleneck(x, params).astype(jnp.bfloat16).astype(jnp.float32)
    assert out.shape == (N, Cin, H, W), out.shape
    err = float(jnp.max(jnp.abs(out.astype(jnp.float32) - ref)))
    assert jnp.allclose(out.astype(jnp.float32), ref, rtol=2e-2, atol=2e-2), err

    # Also exercise the padded-H / masked-row path (H not divisible by the row tile).
    H2 = 14
    x2 = jax.random.normal(kx2, (N, Cin, H2, W), jnp.float32)
    out2 = jax.block_until_ready(residual_bottleneck(x2, params, row_tile=8))
    ref2 = reference_bottleneck(x2, params).astype(jnp.bfloat16).astype(jnp.float32)
    assert out2.shape == (N, Cin, H2, W), out2.shape
    err2 = float(jnp.max(jnp.abs(out2.astype(jnp.float32) - ref2)))
    assert jnp.allclose(out2.astype(jnp.float32), ref2, rtol=2e-2, atol=2e-2), err2

    print("KERNEL_OK")
</pallas_src>

<mosaic_0001>
module attributes {stable_mosaic.version = 11 : i64} {
  func.func @_bottleneck_kernel(%arg0: i32, %arg1: i32, %arg2: memref<1x16x16x256xbf16, #tpu.memory_space<vmem>>, %arg3: memref<1x1x2x16x256xbf16, #tpu.memory_space<vmem>>, %arg4: memref<256x128xbf16, #tpu.memory_space<vmem>>, %arg5: memref<1x128xf32, #tpu.memory_space<vmem>>, %arg6: memref<3x3x128x128xbf16, #tpu.memory_space<vmem>>, %arg7: memref<1x128xf32, #tpu.memory_space<vmem>>, %arg8: memref<128x256xbf16, #tpu.memory_space<vmem>>, %arg9: memref<1x256xf32, #tpu.memory_space<vmem>>, %arg10: memref<1x16x16x256xbf16, #tpu.memory_space<vmem>>, %arg11: memref<342x128xbf16, #tpu.memory_space<vmem>>) attributes {dimension_semantics = [#tpu.dimension_semantics<parallel>, #tpu.dimension_semantics<parallel>], iteration_bounds = array<i64: 2, 1>, scalar_prefetch = 0 : i64, scratch_operands = 1 : i64, tpu.core_type = #tpu.core_type<tc>, window_params = [{transform_indices = @transform_0, window_bounds = array<i64: 1, 16, 16, 256>}, {transform_indices = @transform_1, window_bounds = array<i64: 1, 1, 2, 16, 256>}, {pipeline_mode = #tpu.pipeline_mode<synchronous>, transform_indices = @transform_2, window_bounds = array<i64: 256, 128>}, {pipeline_mode = #tpu.pipeline_mode<synchronous>, transform_indices = @transform_3, window_bounds = array<i64: 1, 128>}, {pipeline_mode = #tpu.pipeline_mode<synchronous>, transform_indices = @transform_4, window_bounds = array<i64: 3, 3, 128, 128>}, {pipeline_mode = #tpu.pipeline_mode<synchronous>, transform_indices = @transform_5, window_bounds = array<i64: 1, 128>}, {pipeline_mode = #tpu.pipeline_mode<synchronous>, transform_indices = @transform_6, window_bounds = array<i64: 128, 256>}, {pipeline_mode = #tpu.pipeline_mode<synchronous>, transform_indices = @transform_7, window_bounds = array<i64: 1, 256>}, {transform_indices = @transform_8, window_bounds = array<i64: 1, 16, 16, 256>}]} {
    %c16_i32 = arith.constant 16 : i32
    %0 = arith.muli %arg1, %c16_i32 : i32
    %c0 = arith.constant 0 : index
    %c0_0 = arith.constant 0 : index
    %c0_1 = arith.constant 0 : index
    %c0_2 = arith.constant 0 : index
    %1 = vector.load %arg2[%c0, %c0_0, %c0_1, %c0_2] : memref<1x16x16x256xbf16, #tpu.memory_space<vmem>>, vector<1x16x16x256xbf16>
    %2 = vector.shape_cast %1 : vector<1x16x16x256xbf16> to vector<16x16x256xbf16>
    %3 = vector.shape_cast %2 : vector<16x16x256xbf16> to vector<256x256xbf16>
    %c0_3 = arith.constant 0 : index
    %c0_4 = arith.constant 0 : index
    %4 = vector.load %arg4[%c0_3, %c0_4] : memref<256x128xbf16, #tpu.memory_space<vmem>>, vector<256x128xbf16>
    %cst = arith.constant dense<0.000000e+00> : vector<256x128xf32>
    %5 = tpu.matmul %3, %4, %cst {dimension_numbers = #tpu.dot_dimension_numbers<[1], [0], [0], [1], [0, 0, 1, 1], [], []>} : vector<256x256xbf16>, vector<256x128xbf16>, vector<256x128xf32> -> vector<256x128xf32>
    %c0_5 = arith.constant 0 : index
    %c0_6 = arith.constant 0 : index
    %6 = vector.load %arg5[%c0_5, %c0_6] : memref<1x128xf32, #tpu.memory_space<vmem>>, vector<1x128xf32>
    %7 = vector.broadcast %6 : vector<1x128xf32> to vector<256x128xf32>
    %8 = arith.addf %5, %7 : vector<256x128xf32>
    %9 = vector.shape_cast %8 : vector<256x128xf32> to vector<16x16x128xf32>
    %10 = arith.truncf %9 : vector<16x16x128xf32> to vector<16x16x128xbf16>
    %c0_7 = arith.constant 0 : index
    %c0_8 = arith.constant 0 : index
    %c0_9 = arith.constant 0 : index
    %c0_10 = arith.constant 0 : index
    %c0_11 = arith.constant 0 : index
    %11 = vector.load %arg3[%c0_7, %c0_8, %c0_9, %c0_10, %c0_11] : memref<1x1x2x16x256xbf16, #tpu.memory_space<vmem>>, vector<1x1x2x16x256xbf16>
    %12 = vector.shape_cast %11 : vector<1x1x2x16x256xbf16> to vector<2x16x256xbf16>
    %13 = vector.shape_cast %12 : vector<2x16x256xbf16> to vector<32x256xbf16>
    %c0_12 = arith.constant 0 : index
    %c0_13 = arith.constant 0 : index
    %14 = vector.load %arg4[%c0_12, %c0_13] : memref<256x128xbf16, #tpu.memory_space<vmem>>, vector<256x128xbf16>
    %cst_14 = arith.constant dense<0.000000e+00> : vector<32x128xf32>
    %15 = tpu.matmul %13, %14, %cst_14 {dimension_numbers = #tpu.dot_dimension_numbers<[1], [0], [0], [1], [0, 0, 1, 1], [], []>} : vector<32x256xbf16>, vector<256x128xbf16>, vector<32x128xf32> -> vector<32x128xf32>
    %c0_15 = arith.constant 0 : index
    %c0_16 = arith.constant 0 : index
    %16 = vector.load %arg5[%c0_15, %c0_16] : memref<1x128xf32, #tpu.memory_space<vmem>>, vector<1x128xf32>
    %17 = vector.broadcast %16 : vector<1x128xf32> to vector<32x128xf32>
    %18 = arith.addf %15, %17 : vector<32x128xf32>
    %19 = vector.shape_cast %18 : vector<32x128xf32> to vector<2x16x128xf32>
    %c0_i32 = arith.constant 0 : i32
    %20 = arith.cmpi sgt, %0, %c0_i32 : i32
    %21 = arith.extui %20 : i1 to i32
    %22 = arith.sitofp %21 : i32 to f32
    %c16_i32_17 = arith.constant 16 : i32
    %23 = arith.addi %0, %c16_i32_17 : i32
    %c16_i32_18 = arith.constant 16 : i32
    %24 = arith.cmpi slt, %23, %c16_i32_18 : i32
    %25 = arith.extui %24 : i1 to i32
    %26 = arith.sitofp %25 : i32 to f32
    %27 = vector.extract_strided_slice %19 {offsets = [0, 0, 0], sizes = [1, 16, 128], strides = [1, 1, 1]} : vector<2x16x128xf32> to vector<1x16x128xf32>
    %28 = vector.broadcast %22 : f32 to vector<1x16x128xf32>
    %29 = arith.mulf %27, %28 : vector<1x16x128xf32>
    %30 = arith.truncf %29 : vector<1x16x128xf32> to vector<1x16x128xbf16>
    %31 = vector.extract_strided_slice %19 {offsets = [1, 0, 0], sizes = [1, 16, 128], strides = [1, 1, 1]} : vector<2x16x128xf32> to vector<1x16x128xf32>
    %32 = vector.broadcast %26 : f32 to vector<1x16x128xf32>
    %33 = arith.mulf %31, %32 : vector<1x16x128xf32>
    %34 = arith.truncf %33 : vector<1x16x128xf32> to vector<1x16x128xbf16>
    %35 = tpu.concatenate %30, %10, %34 in 0 : vector<1x16x128xbf16>, vector<16x16x128xbf16>, vector<1x16x128xbf16> -> vector<18x16x128xbf16>
    %cst_19 = arith.constant 0.000000e+00 : bf16
    %36 = vector.broadcast %cst_19 : bf16 to vector<18x1x128xbf16>
    %cst_20 = arith.constant 0.000000e+00 : bf16
    %37 = vector.broadcast %cst_20 : bf16 to vector<1x18x128xbf16>
    %38 = tpu.concatenate %36, %35, %36 in 1 : vector<18x1x128xbf16>, vector<18x16x128xbf16>, vector<18x1x128xbf16> -> vector<18x18x128xbf16>
    %39 = tpu.concatenate %38, %37 in 0 : vector<18x18x128xbf16>, vector<1x18x128xbf16> -> vector<19x18x128xbf16>
    %40 = vector.shape_cast %39 : vector<19x18x128xbf16> to vector<342x128xbf16>
    %c0_21 = arith.constant 0 : index
    %c0_22 = arith.constant 0 : index
    %41 = vector.load %arg11[%c0_21, %c0_22] : memref<342x128xbf16, #tpu.memory_space<vmem>>, vector<342x128xbf16>
    tpu.vector_store %arg11[%c0_21, %c0_22], %40 {strides = array<i32>} : memref<342x128xbf16, #tpu.memory_space<vmem>>, vector<342x128xbf16>,
    %c0_23 = arith.constant 0 : index
    %c0_24 = arith.constant 0 : index
    %42 = vector.load %arg11[%c0_23, %c0_24] : memref<342x128xbf16, #tpu.memory_space<vmem>>, vector<288x128xbf16>
    %c0_25 = arith.constant 0 : index
    %c0_26 = arith.constant 0 : index
    %c0_27 = arith.constant 0 : index
    %c0_28 = arith.constant 0 : index
    %43 = vector.load %arg6[%c0_25, %c0_26, %c0_27, %c0_28] : memref<3x3x128x128xbf16, #tpu.memory_space<vmem>>, vector<1x1x128x128xbf16>
    %44 = vector.shape_cast %43 : vector<1x1x128x128xbf16> to vector<128x128xbf16>
    %cst_29 = arith.constant dense<0.000000e+00> : vector<288x128xf32>
    %45 = tpu.matmul %42, %44, %cst_29 {dimension_numbers = #tpu.dot_dimension_numbers<[1], [0], [0], [1], [0, 0, 1, 1], [], []>} : vector<288x128xbf16>, vector<128x128xbf16>, vector<288x128xf32> -> vector<288x128xf32>
    %c1 = arith.constant 1 : index
    %c0_30 = arith.constant 0 : index
    %46 = vector.load %arg11[%c1, %c0_30] : memref<342x128xbf16, #tpu.memory_space<vmem>>, vector<288x128xbf16>
    %c0_31 = arith.constant 0 : index
    %c1_32 = arith.constant 1 : index
    %c0_33 = arith.constant 0 : index
    %c0_34 = arith.constant 0 : index
    %47 = vector.load %arg6[%c0_31, %c1_32, %c0_33, %c0_34] : memref<3x3x128x128xbf16, #tpu.memory_space<vmem>>, vector<1x1x128x128xbf16>
    %48 = vector.shape_cast %47 : vector<1x1x128x128xbf16> to vector<128x128xbf16>
    %cst_35 = arith.constant dense<0.000000e+00> : vector<288x128xf32>
    %49 = tpu.matmul %46, %48, %cst_35 {dimension_numbers = #tpu.dot_dimension_numbers<[1], [0], [0], [1], [0, 0, 1, 1], [], []>} : vector<288x128xbf16>, vector<128x128xbf16>, vector<288x128xf32> -> vector<288x128xf32>
    %50 = arith.addf %45, %49 : vector<288x128xf32>
    %c2 = arith.constant 2 : index
    %c0_36 = arith.constant 0 : index
    %51 = vector.load %arg11[%c2, %c0_36] : memref<342x128xbf16, #tpu.memory_space<vmem>>, vector<288x128xbf16>
    %c0_37 = arith.constant 0 : index
    %c2_38 = arith.constant 2 : index
    %c0_39 = arith.constant 0 : index
    %c0_40 = arith.constant 0 : index
    %52 = vector.load %arg6[%c0_37, %c2_38, %c0_39, %c0_40] : memref<3x3x128x128xbf16, #tpu.memory_space<vmem>>, vector<1x1x128x128xbf16>
    %53 = vector.shape_cast %52 : vector<1x1x128x128xbf16> to vector<128x128xbf16>
    %cst_41 = arith.constant dense<0.000000e+00> : vector<288x128xf32>
    %54 = tpu.matmul %51, %53, %cst_41 {dimension_numbers = #tpu.dot_dimension_numbers<[1], [0], [0], [1], [0, 0, 1, 1], [], []>} : vector<288x128xbf16>, vector<128x128xbf16>, vector<288x128xf32> -> vector<288x128xf32>
    %55 = arith.addf %50, %54 : vector<288x128xf32>
    %c18 = arith.constant 18 : index
    %c0_42 = arith.constant 0 : index
    %56 = vector.load %arg11[%c18, %c0_42] : memref<342x128xbf16, #tpu.memory_space<vmem>>, vector<288x128xbf16>
    %c1_43 = arith.constant 1 : index
    %c0_44 = arith.constant 0 : index
    %c0_45 = arith.constant 0 : index
    %c0_46 = arith.constant 0 : index
    %57 = vector.load %arg6[%c1_43, %c0_44, %c0_45, %c0_46] : memref<3x3x128x128xbf16, #tpu.memory_space<vmem>>, vector<1x1x128x128xbf16>
    %58 = vector.shape_cast %57 : vector<1x1x128x128xbf16> to vector<128x128xbf16>
    %cst_47 = arith.constant dense<0.000000e+00> : vector<288x128xf32>
    %59 = tpu.matmul %56, %58, %cst_47 {dimension_numbers = #tpu.dot_dimension_numbers<[1], [0], [0], [1], [0, 0, 1, 1], [], []>} : vector<288x128xbf16>, vector<128x128xbf16>, vector<288x128xf32> -> vector<288x128xf32>
    %60 = arith.addf %55, %59 : vector<288x128xf32>
    %c19 = arith.constant 19 : index
    %c0_48 = arith.constant 0 : index
    %61 = vector.load %arg11[%c19, %c0_48] : memref<342x128xbf16, #tpu.memory_space<vmem>>, vector<288x128xbf16>
    %c1_49 = arith.constant 1 : index
    %c1_50 = arith.constant 1 : index
    %c0_51 = arith.constant 0 : index
    %c0_52 = arith.constant 0 : index
    %62 = vector.load %arg6[%c1_49, %c1_50, %c0_51, %c0_52] : memref<3x3x128x128xbf16, #tpu.memory_space<vmem>>, vector<1x1x128x128xbf16>
    %63 = vector.shape_cast %62 : vector<1x1x128x128xbf16> to vector<128x128xbf16>
    %cst_53 = arith.constant dense<0.000000e+00> : vector<288x128xf32>
    %64 = tpu.matmul %61, %63, %cst_53 {dimension_numbers = #tpu.dot_dimension_numbers<[1], [0], [0], [1], [0, 0, 1, 1], [], []>} : vector<288x128xbf16>, vector<128x128xbf16>, vector<288x128xf32> -> vector<288x128xf32>
    %65 = arith.addf %60, %64 : vector<288x128xf32>
    %c20 = arith.constant 20 : index
    %c0_54 = arith.constant 0 : index
    %66 = vector.load %arg11[%c20, %c0_54] : memref<342x128xbf16, #tpu.memory_space<vmem>>, vector<288x128xbf16>
    %c1_55 = arith.constant 1 : index
    %c2_56 = arith.constant 2 : index
    %c0_57 = arith.constant 0 : index
    %c0_58 = arith.constant 0 : index
    %67 = vector.load %arg6[%c1_55, %c2_56, %c0_57, %c0_58] : memref<3x3x128x128xbf16, #tpu.memory_space<vmem>>, vector<1x1x128x128xbf16>
    %68 = vector.shape_cast %67 : vector<1x1x128x128xbf16> to vector<128x128xbf16>
    %cst_59 = arith.constant dense<0.000000e+00> : vector<288x128xf32>
    %69 = tpu.matmul %66, %68, %cst_59 {dimension_numbers = #tpu.dot_dimension_numbers<[1], [0], [0], [1], [0, 0, 1, 1], [], []>} : vector<288x128xbf16>, vector<128x128xbf16>, vector<288x128xf32> -> vector<288x128xf32>
    %70 = arith.addf %65, %69 : vector<288x128xf32>
    %c36 = arith.constant 36 : index
    %c0_60 = arith.constant 0 : index
    %71 = vector.load %arg11[%c36, %c0_60] : memref<342x128xbf16, #tpu.memory_space<vmem>>, vector<288x128xbf16>
    %c2_61 = arith.constant 2 : index
    %c0_62 = arith.constant 0 : index
    %c0_63 = arith.constant 0 : index
    %c0_64 = arith.constant 0 : index
    %72 = vector.load %arg6[%c2_61, %c0_62, %c0_63, %c0_64] : memref<3x3x128x128xbf16, #tpu.memory_space<vmem>>, vector<1x1x128x128xbf16>
    %73 = vector.shape_cast %72 : vector<1x1x128x128xbf16> to vector<128x128xbf16>
    %cst_65 = arith.constant dense<0.000000e+00> : vector<288x128xf32>
    %74 = tpu.matmul %71, %73, %cst_65 {dimension_numbers = #tpu.dot_dimension_numbers<[1], [0], [0], [1], [0, 0, 1, 1], [], []>} : vector<288x128xbf16>, vector<128x128xbf16>, vector<288x128xf32> -> vector<288x128xf32>
    %75 = arith.addf %70, %74 : vector<288x128xf32>
    %c37 = arith.constant 37 : index
    %c0_66 = arith.constant 0 : index
    %76 = vector.load %arg11[%c37, %c0_66] : memref<342x128xbf16, #tpu.memory_space<vmem>>, vector<288x128xbf16>
    %c2_67 = arith.constant 2 : index
    %c1_68 = arith.constant 1 : index
    %c0_69 = arith.constant 0 : index
    %c0_70 = arith.constant 0 : index
    %77 = vector.load %arg6[%c2_67, %c1_68, %c0_69, %c0_70] : memref<3x3x128x128xbf16, #tpu.memory_space<vmem>>, vector<1x1x128x128xbf16>
    %78 = vector.shape_cast %77 : vector<1x1x128x128xbf16> to vector<128x128xbf16>
    %cst_71 = arith.constant dense<0.000000e+00> : vector<288x128xf32>
    %79 = tpu.matmul %76, %78, %cst_71 {dimension_numbers = #tpu.dot_dimension_numbers<[1], [0], [0], [1], [0, 0, 1, 1], [], []>} : vector<288x128xbf16>, vector<128x128xbf16>, vector<288x128xf32> -> vector<288x128xf32>
    %80 = arith.addf %75, %79 : vector<288x128xf32>
    %c38 = arith.constant 38 : index
    %c0_72 = arith.constant 0 : index
    %81 = vector.load %arg11[%c38, %c0_72] : memref<342x128xbf16, #tpu.memory_space<vmem>>, vector<288x128xbf16>
    %c2_73 = arith.constant 2 : index
    %c2_74 = arith.constant 2 : index
    %c0_75 = arith.constant 0 : index
    %c0_76 = arith.constant 0 : index
    %82 = vector.load %arg6[%c2_73, %c2_74, %c0_75, %c0_76] : memref<3x3x128x128xbf16, #tpu.memory_space<vmem>>, vector<1x1x128x128xbf16>
    %83 = vector.shape_cast %82 : vector<1x1x128x128xbf16> to vector<128x128xbf16>
    %cst_77 = arith.constant dense<0.000000e+00> : vector<288x128xf32>
    %84 = tpu.matmul %81, %83, %cst_77 {dimension_numbers = #tpu.dot_dimension_numbers<[1], [0], [0], [1], [0, 0, 1, 1], [], []>} : vector<288x128xbf16>, vector<128x128xbf16>, vector<288x128xf32> -> vector<288x128xf32>
    %85 = arith.addf %80, %84 : vector<288x128xf32>
    %c0_78 = arith.constant 0 : index
    %c0_79 = arith.constant 0 : index
    %86 = vector.load %arg7[%c0_78, %c0_79] : memref<1x128xf32, #tpu.memory_space<vmem>>, vector<1x128xf32>
    %87 = vector.broadcast %86 : vector<1x128xf32> to vector<288x128xf32>
    %88 = arith.addf %85, %87 : vector<288x128xf32>
    %89 = vector.shape_cast %88 : vector<288x128xf32> to vector<16x18x128xf32>
    %90 = vector.extract_strided_slice %89 {offsets = [0, 0, 0], sizes = [16, 16, 128], strides = [1, 1, 1]} : vector<16x18x128xf32> to vector<16x16x128xf32>
    %91 = vector.shape_cast %90 : vector<16x16x128xf32> to vector<256x128xf32>
    %92 = arith.truncf %91 : vector<256x128xf32> to vector<256x128xbf16>
    %c0_80 = arith.constant 0 : index
    %c0_81 = arith.constant 0 : index
    %93 = vector.load %arg8[%c0_80, %c0_81] : memref<128x256xbf16, #tpu.memory_space<vmem>>, vector<128x256xbf16>
    %cst_82 = arith.constant dense<0.000000e+00> : vector<256x256xf32>
    %94 = tpu.matmul %92, %93, %cst_82 {dimension_numbers = #tpu.dot_dimension_numbers<[1], [0], [0], [1], [0, 0, 1, 1], [], []>} : vector<256x128xbf16>, vector<128x256xbf16>, vector<256x256xf32> -> vector<256x256xf32>
    %c0_83 = arith.constant 0 : index
    %c0_84 = arith.constant 0 : index
    %95 = vector.load %arg9[%c0_83, %c0_84] : memref<1x256xf32, #tpu.memory_space<vmem>>, vector<1x256xf32>
    %96 = vector.broadcast %95 : vector<1x256xf32> to vector<256x256xf32>
    %97 = arith.addf %94, %96 : vector<256x256xf32>
    %c0_85 = arith.constant 0 : index
    %c0_86 = arith.constant 0 : index
    %c0_87 = arith.constant 0 : index
    %c0_88 = arith.constant 0 : index
    %98 = vector.load %arg2[%c0_85, %c0_86, %c0_87, %c0_88] : memref<1x16x16x256xbf16, #tpu.memory_space<vmem>>, vector<1x16x16x256xbf16>
    %99 = vector.shape_cast %98 : vector<1x16x16x256xbf16> to vector<16x16x256xbf16>
    %100 = vector.shape_cast %99 : vector<16x16x256xbf16> to vector<256x256xbf16>
    %101 = arith.extf %100 : vector<256x256xbf16> to vector<256x256xf32>
    %102 = arith.addf %97, %101 : vector<256x256xf32>
    %cst_89 = arith.constant 0.000000e+00 : f32
    %103 = vector.broadcast %cst_89 : f32 to vector<256x256xf32>
    %104 = arith.maximumf %102, %103 : vector<256x256xf32>
    %105 = vector.shape_cast %104 : vector<256x256xf32> to vector<16x16x256xf32>
    %106 = arith.truncf %105 : vector<16x16x256xf32> to vector<16x16x256xbf16>
    %c0_90 = arith.constant 0 : index
    %c0_91 = arith.constant 0 : index
    %c0_92 = arith.constant 0 : index
    %c0_93 = arith.constant 0 : index
    %107 = vector.load %arg10[%c0_90, %c0_91, %c0_92, %c0_93] : memref<1x16x16x256xbf16, #tpu.memory_space<vmem>>, vector<1x16x16x256xbf16>
    %108 = vector.shape_cast %107 : vector<1x16x16x256xbf16> to vector<16x16x256xbf16>
    %109 = vector.shape_cast %106 : vector<16x16x256xbf16> to vector<1x16x16x256xbf16>
    tpu.vector_store %arg10[%c0_90, %c0_91, %c0_92, %c0_93], %109 {strides = array<i32>} : memref<1x16x16x256xbf16, #tpu.memory_space<vmem>>, vector<1x16x16x256xbf16>,
    return
  }
  func.func @transform_0(%arg0: i32, %arg1: i32) -> (i32, i32, i32, i32) {
    %c0_i32 = arith.constant 0 : i32
    %c0_i32_0 = arith.constant 0 : i32
    %c0_i32_1 = arith.constant 0 : i32
    return %arg0, %arg1, %c0_i32, %c0_i32_0 : i32, i32, i32, i32
  }
  func.func @transform_1(%arg0: i32, %arg1: i32) -> (i32, i32, i32, i32, i32) {
    %c0_i32 = arith.constant 0 : i32
    %c0_i32_0 = arith.constant 0 : i32
    %c0_i32_1 = arith.constant 0 : i32
    %c0_i32_2 = arith.constant 0 : i32
    return %arg0, %arg1, %c0_i32, %c0_i32_0, %c0_i32_1 : i32, i32, i32, i32, i32
  }
  func.func @transform_2(%arg0: i32, %arg1: i32) -> (i32, i32) {
    %c0_i32 = arith.constant 0 : i32
    %c0_i32_0 = arith.constant 0 : i32
    %c0_i32_1 = arith.constant 0 : i32
    return %c0_i32, %c0_i32_0 : i32, i32
  }
  func.func @transform_3(%arg0: i32, %arg1: i32) -> (i32, i32) {
    %c0_i32 = arith.constant 0 : i32
    %c0_i32_0 = arith.constant 0 : i32
    %c0_i32_1 = arith.constant 0 : i32
    return %c0_i32, %c0_i32_0 : i32, i32
  }
  func.func @transform_4(%arg0: i32, %arg1: i32) -> (i32, i32, i32, i32) {
    %c0_i32 = arith.constant 0 : i32
    %c0_i32_0 = arith.constant 0 : i32
    %c0_i32_1 = arith.constant 0 : i32
    %c0_i32_2 = arith.constant 0 : i32
    %c0_i32_3 = arith.constant 0 : i32
    return %c0_i32, %c0_i32_0, %c0_i32_1, %c0_i32_2 : i32, i32, i32, i32
  }
  func.func @transform_5(%arg0: i32, %arg1: i32) -> (i32, i32) {
    %c0_i32 = arith.constant 0 : i32
    %c0_i32_0 = arith.constant 0 : i32
    %c0_i32_1 = arith.constant 0 : i32
    return %c0_i32, %c0_i32_0 : i32, i32
  }
  func.func @transform_6(%arg0: i32, %arg1: i32) -> (i32, i32) {
    %c0_i32 = arith.constant 0 : i32
    %c0_i32_0 = arith.constant 0 : i32
    %c0_i32_1 = arith.constant 0 : i32
    return %c0_i32, %c0_i32_0 : i32, i32
  }
  func.func @transform_7(%arg0: i32, %arg1: i32) -> (i32, i32) {
    %c0_i32 = arith.constant 0 : i32
    %c0_i32_0 = arith.constant 0 : i32
    %c0_i32_1 = arith.constant 0 : i32
    return %c0_i32, %c0_i32_0 : i32, i32
  }
  func.func @transform_8(%arg0: i32, %arg1: i32) -> (i32, i32, i32, i32) {
    %c0_i32 = arith.constant 0 : i32
    %c0_i32_0 = arith.constant 0 : i32
    %c0_i32_1 = arith.constant 0 : i32
    return %arg0, %arg1, %c0_i32, %c0_i32_0 : i32, i32, i32, i32
  }
}

</mosaic_0001>

<llo_original>
// kernel: tpu_custom_call.1
$region0: #{tpu_custom_call.1}
  #allocation0 [shape = 'u32[]', space=smem, size = 0x4, offset = 0x4, fixed_abs, tag = 'smem constant byte address 0x4 - core index']
  #allocation1 [shape = 'u32[72,128]{1,0:T(1,128)}', space=vmem, size = 0x9000, scoped, tag = 'internal scratch']
  #allocation2 [shape = 'bf16[342,128]{1,0:T(8,128)(2,1)}', space=vmem, size = 0x15800, scoped, tag = 'scratch operand']
  %s0 = inlined_call_operand.hbm [shape: bf16[2,16,16,256], index: 0, kind: input, shape index: {}]
  %s1 = inlined_call_operand.hbm [shape: bf16[2,1,2,16,256], index: 1, kind: input, shape index: {}]
  %s2 = inlined_call_operand.hbm [shape: bf16[256,128], index: 2, kind: input, shape index: {}]
  %s3 = inlined_call_operand.vmem [shape: f32[1,128], index: 3, kind: input, shape index: {}]
  %s4 = inlined_call_operand.hbm [shape: bf16[3,3,128,128], index: 4, kind: input, shape index: {}]
  %s5 = inlined_call_operand.vmem [shape: f32[1,128], index: 5, kind: input, shape index: {}]
  %s6 = inlined_call_operand.hbm [shape: bf16[128,256], index: 6, kind: input, shape index: {}]
  %s7 = inlined_call_operand.vmem [shape: f32[1,256], index: 7, kind: input, shape index: {}]
  %s8 = inlined_call_operand.hbm [shape: bf16[2,16,16,256], index: 8, kind: output, shape index: {}]
  %s9 = sld [smem:[#allocation0]]
  $region85: #{tpu_custom_call.1} parent=0
    _
  %s11 = ssub.s32 1, %s9
  %s12 = scalar_select 0, %s11, %s9
  $region1: #{tpu_custom_call.1} parent=0
    #allocation3 [shape = 'u8[262144]{0}', space=vmem, size = 0x40000, scoped, tag = 'input window, operand 0']
    #allocation4 [shape = 's32[2]{0}', space=sflag, size = 0x8, scoped, tag = 'scoped memory for tpu_custom_call.1']
    #allocation5 [shape = 's32[2]{0}', space=sflag, size = 0x8, scoped, tag = 'scoped memory for tpu_custom_call.1']
    #allocation6 [shape = 'u8[32768]{0}', space=vmem, size = 0x8000, scoped, tag = 'input window, operand 1']
    #allocation7 [shape = 's32[2]{0}', space=sflag, size = 0x8, scoped, tag = 'scoped memory for tpu_custom_call.1']
    #allocation8 [shape = 'u8[65536]{0}', space=vmem, size = 0x10000, scoped, tag = 'input window, operand 2, single buffered']
    #allocation9 [shape = 'u8[294912]{0}', space=vmem, size = 0x48000, scoped, tag = 'input window, operand 4, single buffered']
    #allocation10 [shape = 's32[1]{0}', space=sflag, size = 0x4, scoped, tag = 'scoped memory for tpu_custom_call.1']
    #allocation11 [shape = 'u8[65536]{0}', space=vmem, size = 0x10000, scoped, tag = 'input window, operand 6, single buffered']
    #allocation12 [shape = 'u8[262144]{0}', space=vmem, size = 0x40000, scoped, tag = 'output window, operand 0']
    %13 = vsyncpa [#allocation4], 0
    %s14 = scalar_lea.sflag [#allocation4], 1
    %15 = vsyncpa %s14, 0
    %16 = vsyncpa [#allocation7], 0
    %s17 = scalar_lea.sflag [#allocation7], 1
    %18 = vsyncpa %s17, 0
    %19 = vsyncpa [#allocation10], 0
    %20 = vsyncpa [#allocation5], 0
    %s21 = scalar_lea.sflag [#allocation5], 1
    %22 = vsyncpa %s21, 0
    loop: start=0, step=1, limit=4
    $region2: #{tpu_custom_call.1} parent=1 // loop_pre_header
      _
    $region3: #{tpu_custom_call.1} parent=1 // loop_header
      %s24 = sphi 0, %s28
      %p25 = scmp.ge.s32.totalorder %s24, 4
      %s31 = sphi 0, %s43
      %s32 = sphi 0, %s39
      %s33 = sphi 0, %s31
      %s34 = sphi 0, %s32
      %s35 = sphi 0, %s33
      %s36 = sphi 0, %s34
      %s48 = sphi 0, %s50
      %s51 = sphi 0, %s48
      %s52 = sphi 0, %s51
      %s68 = sphi 0, %s52
      %s76 = sphi 0, %s78
      %s79 = sphi 0, %s76
      %s80 = sphi 0, %s79
      %s96 = sphi 0, %s80
      %s100 = sphi 0, %s100
      %s102 = sphi 0, %s100
      %s103 = sphi 0, %s102
      %s117 = sphi 0, %s103
      %s121 = sphi 0, %s121
      %s123 = sphi 0, %s121
      %s124 = sphi 0, %s123
      %s138 = sphi 0, %s124
      %s142 = sphi 0, %s142
      %s144 = sphi 0, %s142
      %s145 = sphi 0, %s144
      %s159 = sphi 0, %s145
      %s163 = sphi 0, %s163
      %s165 = sphi 0, %s163
      %s166 = sphi 0, %s165
      %s180 = sphi 0, %s166
      %s184 = sphi 0, %s184
      %s186 = sphi 0, %s184
      %s187 = sphi 0, %s186
      %s201 = sphi 0, %s187
      %s205 = sphi 0, %s205
      %s207 = sphi 0, %s205
      %s208 = sphi 0, %s207
      %s222 = sphi 0, %s208
      %s230 = sphi 0, %s232
      %s233 = sphi 0, %s230
      %s234 = sphi 0, %s233
      %s250 = sphi 0, %s234
    $region4: #{tpu_custom_call.1} parent=1 // loop_header_branch
      %27 = sbr.rel (%p25) target = $region8
    $region5: #{tpu_custom_call.1} parent=1 // loop_body
      %s29 = ssub.s32 %s24, 1
      %s30 = ssub.s32 %s24, 2
      %s37 = sadd.s32 1, %s32
      %p38 = scmp.ge.s32.totalorder %s37, 1
      %s39 = scalar_select %p38, 0, %s37
      %s40 = sadd.s32 1, %s31
      %s41 = scalar_select %p38, %s40, %s31
      %p42 = scmp.ge.s32.totalorder %s41, 2
      %s43 = scalar_select %p42, 0, %s41
      %s44 = ssub.s32 %s31, %s43
      %s45 = ssub.s32 %s32, %s39
      %s46 = sor.u32 %s44, %s45
      %p47 = scmp.eq.s32.totalorder %s46, 0
      %s49 = sadd.s32 %s48, 1
      %s50 = scalar_select %p47, %s48, %s49
      %p53 = pneg %p47
      %p54 = scmp.eq.s32.totalorder %s24, 1
      %p55 = por %p53, %p54
      %p56 = scmp.ne.s32.totalorder %s48, %s51
      %p57 = scmp.eq.s32.totalorder %s24, 0
      %p58 = por %p56, %p57
      %p59 = scmp.ne.s32.totalorder %s48, %s51
      %p60 = scmp.eq.s32.totalorder %s29, 1
      %p61 = por %p59, %p60
      %p62 = scmp.ne.s32.totalorder %s51, %s52
      %p63 = scmp.eq.s32.totalorder %s29, 0
      %p64 = por %p62, %p63
      %p65 = scmp.ne.s32.totalorder %s51, %s52
      %p66 = scmp.eq.s32.totalorder %s30, 1
      %p67 = por %p65, %p66
      %p69 = scmp.ne.s32.totalorder %s52, %s68
      %p70 = scmp.eq.s32.totalorder %s30, 0
      %p71 = por %p69, %p70
      %s72 = ssub.s32 %s31, %s43
      %s73 = ssub.s32 %s32, %s39
      %s74 = sor.u32 %s72, %s73
      %p75 = scmp.eq.s32.totalorder %s74, 0
      %s77 = sadd.s32 %s76, 1
      %s78 = scalar_select %p75, %s76, %s77
      %p81 = pneg %p75
      %p82 = scmp.eq.s32.totalorder %s24, 1
      %p83 = por %p81, %p82
      %p84 = scmp.ne.s32.totalorder %s76, %s79
      %p85 = scmp.eq.s32.totalorder %s24, 0
      %p86 = por %p84, %p85
      %p87 = scmp.ne.s32.totalorder %s76, %s79
      %p88 = scmp.eq.s32.totalorder %s29, 1
      %p89 = por %p87, %p88
      %p90 = scmp.ne.s32.totalorder %s79, %s80
      %p91 = scmp.eq.s32.totalorder %s29, 0
      %p92 = por %p90, %p91
      %p93 = scmp.ne.s32.totalorder %s79, %s80
      %p94 = scmp.eq.s32.totalorder %s30, 1
      %p95 = por %p93, %p94
      %p97 = scmp.ne.s32.totalorder %s80, %s96
      %p98 = scmp.eq.s32.totalorder %s30, 0
      %p99 = por %p97, %p98
      %s101 = sadd.s32 %s100, 1
      %p104 = scmp.eq.s32.totalorder %s24, 1
      %p105 = scmp.ne.s32.totalorder %s100, %s102
      %p106 = scmp.eq.s32.totalorder %s24, 0
      %p107 = por %p105, %p106
      %p108 = scmp.ne.s32.totalorder %s100, %s102
      %p109 = scmp.eq.s32.totalorder %s29, 1
      %p110 = por %p108, %p109
      %p111 = scmp.ne.s32.totalorder %s102, %s103
      %p112 = scmp.eq.s32.totalorder %s29, 0
      %p113 = por %p111, %p112
      %p114 = scmp.ne.s32.totalorder %s102, %s103
      %p115 = scmp.eq.s32.totalorder %s30, 1
      %p116 = por %p114, %p115
      %p118 = scmp.ne.s32.totalorder %s103, %s117
      %p119 = scmp.eq.s32.totalorder %s30, 0
      %p120 = por %p118, %p119
      %s122 = sadd.s32 %s121, 1
      %p125 = scmp.eq.s32.totalorder %s24, 1
      %p126 = scmp.ne.s32.totalorder %s121, %s123
      %p127 = scmp.eq.s32.totalorder %s24, 0
      %p128 = por %p126, %p127
      %p129 = scmp.ne.s32.totalorder %s121, %s123
      %p130 = scmp.eq.s32.totalorder %s29, 1
      %p131 = por %p129, %p130
      %p132 = scmp.ne.s32.totalorder %s123, %s124
      %p133 = scmp.eq.s32.totalorder %s29, 0
      %p134 = por %p132, %p133
      %p135 = scmp.ne.s32.totalorder %s123, %s124
      %p136 = scmp.eq.s32.totalorder %s30, 1
      %p137 = por %p135, %p136
      %p139 = scmp.ne.s32.totalorder %s124, %s138
      %p140 = scmp.eq.s32.totalorder %s30, 0
      %p141 = por %p139, %p140
      %s143 = sadd.s32 %s142, 1
      %p146 = scmp.eq.s32.totalorder %s24, 1
      %p147 = scmp.ne.s32.totalorder %s142, %s144
      %p148 = scmp.eq.s32.totalorder %s24, 0
      %p149 = por %p147, %p148
      %p150 = scmp.ne.s32.totalorder %s142, %s144
      %p151 = scmp.eq.s32.totalorder %s29, 1
      %p152 = por %p150, %p151
      %p153 = scmp.ne.s32.totalorder %s144, %s145
      %p154 = scmp.eq.s32.totalorder %s29, 0
      %p155 = por %p153, %p154
      %p156 = scmp.ne.s32.totalorder %s144, %s145
      %p157 = scmp.eq.s32.totalorder %s30, 1
      %p158 = por %p156, %p157
      %p160 = scmp.ne.s32.totalorder %s145, %s159
      %p161 = scmp.eq.s32.totalorder %s30, 0
      %p162 = por %p160, %p161
      %s164 = sadd.s32 %s163, 1
      %p167 = scmp.eq.s32.totalorder %s24, 1
      %p168 = scmp.ne.s32.totalorder %s163, %s165
      %p169 = scmp.eq.s32.totalorder %s24, 0
      %p170 = por %p168, %p169
      %p171 = scmp.ne.s32.totalorder %s163, %s165
      %p172 = scmp.eq.s32.totalorder %s29, 1
      %p173 = por %p171, %p172
      %p174 = scmp.ne.s32.totalorder %s165, %s166
      %p175 = scmp.eq.s32.totalorder %s29, 0
      %p176 = por %p174, %p175
      %p177 = scmp.ne.s32.totalorder %s165, %s166
      %p178 = scmp.eq.s32.totalorder %s30, 1
      %p179 = por %p177, %p178
      %p181 = scmp.ne.s32.totalorder %s166, %s180
      %p182 = scmp.eq.s32.totalorder %s30, 0
      %p183 = por %p181, %p182
      %s185 = sadd.s32 %s184, 1
      %p188 = scmp.eq.s32.totalorder %s24, 1
      %p189 = scmp.ne.s32.totalorder %s184, %s186
      %p190 = scmp.eq.s32.totalorder %s24, 0
      %p191 = por %p189, %p190
      %p192 = scmp.ne.s32.totalorder %s184, %s186
      %p193 = scmp.eq.s32.totalorder %s29, 1
      %p194 = por %p192, %p193
      %p195 = scmp.ne.s32.totalorder %s186, %s187
      %p196 = scmp.eq.s32.totalorder %s29, 0
      %p197 = por %p195, %p196
      %p198 = scmp.ne.s32.totalorder %s186, %s187
      %p199 = scmp.eq.s32.totalorder %s30, 1
      %p200 = por %p198, %p199
      %p202 = scmp.ne.s32.totalorder %s187, %s201
      %p203 = scmp.eq.s32.totalorder %s30, 0
      %p204 = por %p202, %p203
      %s206 = sadd.s32 %s205, 1
      %p209 = scmp.eq.s32.totalorder %s24, 1
      %p210 = scmp.ne.s32.totalorder %s205, %s207
      %p211 = scmp.eq.s32.totalorder %s24, 0
      %p212 = por %p210, %p211
      %p213 = scmp.ne.s32.totalorder %s205, %s207
      %p214 = scmp.eq.s32.totalorder %s29, 1
      %p215 = por %p213, %p214
      %p216 = scmp.ne.s32.totalorder %s207, %s208
      %p217 = scmp.eq.s32.totalorder %s29, 0
      %p218 = por %p216, %p217
      %p219 = scmp.ne.s32.totalorder %s207, %s208
      %p220 = scmp.eq.s32.totalorder %s30, 1
      %p221 = por %p219, %p220
      %p223 = scmp.ne.s32.totalorder %s208, %s222
      %p224 = scmp.eq.s32.totalorder %s30, 0
      %p225 = por %p223, %p224
      %s226 = ssub.s32 %s31, %s43
      %s227 = ssub.s32 %s32, %s39
      %s228 = sor.u32 %s226, %s227
      %p229 = scmp.eq.s32.totalorder %s228, 0
      %s231 = sadd.s32 %s230, 1
      %s232 = scalar_select %p229, %s230, %s231
      %p235 = pneg %p229
      %p236 = scmp.eq.s32.totalorder %s24, 1
      %p237 = por %p235, %p236
      %p238 = scmp.ne.s32.totalorder %s230, %s233
      %p239 = scmp.eq.s32.totalorder %s24, 0
      %p240 = por %p238, %p239
      %p241 = scmp.ne.s32.totalorder %s230, %s233
      %p242 = scmp.eq.s32.totalorder %s29, 1
      %p243 = por %p241, %p242
      %p244 = scmp.ne.s32.totalorder %s233, %s234
      %p245 = scmp.eq.s32.totalorder %s29, 0
      %p246 = por %p244, %p245
      %p247 = scmp.ne.s32.totalorder %s233, %s234
      %p248 = scmp.eq.s32.totalorder %s30, 1
      %p249 = por %p247, %p248
      %p251 = scmp.ne.s32.totalorder %s234, %s250
      %p252 = scmp.eq.s32.totalorder %s30, 0
      %p253 = por %p251, %p252
      %p254 = scmp.le.s32.totalorder 1, %s24
      %p255 = scmp.lt.s32.totalorder %s24, 3
      %p256 = pnand %p254, %p255
      %p257 = pneg %p256
      // Predicated region
      $region9: #{tpu_custom_call.1} parent=5 // pred_check
        _
      $region10: #{tpu_custom_call.1} parent=5 // pred_check_branch
        %259 = sbr.rel (%p256) target = $region12
      $region11: #{tpu_custom_call.1} parent=5 // pred_region
        %s260 = ssub.s32 %s24, 1
        // Predicated region
        $region13: #{tpu_custom_call.1} parent=11 // pred_check
          %p261 = pneg %p113
        $region14: #{tpu_custom_call.1} parent=11 // pred_check_branch
          %263 = sbr.rel (%p261) target = $region16
        $region15: #{tpu_custom_call.1} parent=11 // pred_region
          %265 = vsyncadd [#allocation7], 0
          %s266 = sshll.u32 %s2, 4
          %s267 = int_to_ptr.hbm [resolvable:$true] %s266
          %s268 = sshll.u32 [#allocation8], 4
          %s269 = int_to_ptr.vmem [resolvable:$true] %s268
          %274 = dma.hbm_to_vmem [thread:$0]  %s267, 2048, %s269, [#allocation7], 64, 64, 4
        $region16: #{tpu_custom_call.1} parent=11 // pred_fallthru
          _
        // Predicated region
        $region17: #{tpu_custom_call.1} parent=11 // pred_check
          %p275 = pneg %p134
        $region18: #{tpu_custom_call.1} parent=11 // pred_check_branch
          %277 = sbr.rel (%p275) target = $region20
        $region19: #{tpu_custom_call.1} parent=11 // pred_region
          _
        $region20: #{tpu_custom_call.1} parent=11 // pred_fallthru
          _
        // Predicated region
        $region21: #{tpu_custom_call.1} parent=11 // pred_check
          %p278 = pneg %p155
        $region22: #{tpu_custom_call.1} parent=11 // pred_check_branch
          %280 = sbr.rel (%p278) target = $region24
        $region23: #{tpu_custom_call.1} parent=11 // pred_region
          %282 = vsyncadd [#allocation10], 0
          %s283 = sshll.u32 %s4, 4
          %s284 = int_to_ptr.hbm [resolvable:$true] %s283
          %s285 = sshll.u32 [#allocation9], 4
          %s286 = int_to_ptr.vmem [resolvable:$true] %s285
          %291 = dma.hbm_to_vmem [thread:$0]  %s284, 9216, %s286, [#allocation10], 64, 64, 4
        $region24: #{tpu_custom_call.1} parent=11 // pred_fallthru
          _
        // Predicated region
        $region25: #{tpu_custom_call.1} parent=11 // pred_check
          %p292 = pneg %p176
        $region26: #{tpu_custom_call.1} parent=11 // pred_check_branch
          %294 = sbr.rel (%p292) target = $region28
        $region27: #{tpu_custom_call.1} parent=11 // pred_region
          _
        $region28: #{tpu_custom_call.1} parent=11 // pred_fallthru
          _
        // Predicated region
        $region29: #{tpu_custom_call.1} parent=11 // pred_check
          %p295 = pneg %p197
        $region30: #{tpu_custom_call.1} parent=11 // pred_check_branch
          %297 = sbr.rel (%p295) target = $region32
        $region31: #{tpu_custom_call.1} parent=11 // pred_region
          %299 = vsyncadd [#allocation10], 0
          %s300 = sshll.u32 %s6, 4
          %s301 = int_to_ptr.hbm [resolvable:$true] %s300
          %s302 = sshll.u32 [#allocation11], 4
          %s303 = int_to_ptr.vmem [resolvable:$true] %s302
          %308 = dma.hbm_to_vmem [thread:$0]  %s301, 2048, %s303, [#allocation10], 128, 128, 8
        $region32: #{tpu_custom_call.1} parent=11 // pred_fallthru
          _
        // Predicated region
        $region33: #{tpu_custom_call.1} parent=11 // pred_check
          %p309 = pneg %p218
        $region34: #{tpu_custom_call.1} parent=11 // pred_check_branch
          %311 = sbr.rel (%p309) target = $region36
        $region35: #{tpu_custom_call.1} parent=11 // pred_region
          _
        $region36: #{tpu_custom_call.1} parent=11 // pred_fallthru
          _
      $region12: #{tpu_custom_call.1} parent=5 // pred_fallthru
        _
      %p312 = scmp.lt.s32.totalorder %s24, 2
      // Predicated region
      $region37: #{tpu_custom_call.1} parent=5 // pred_check
        %p313 = pneg %p312
      $region38: #{tpu_custom_call.1} parent=5 // pred_check_branch
        %315 = sbr.rel (%p313) target = $region40
      $region39: #{tpu_custom_call.1} parent=5 // pred_region
        // Predicated region
        $region41: #{tpu_custom_call.1} parent=39 // pred_check
          %p316 = pneg %p58
        $region42: #{tpu_custom_call.1} parent=39 // pred_check_branch
          %318 = sbr.rel (%p316) target = $region44
        $region43: #{tpu_custom_call.1} parent=39 // pred_region
          %s319 = sand.u32 %s48, 1
          %s320 = scalar_lea.sflag [#allocation4], %s319
          %s321 = sand.u32 %s48, 1
          %s322 = smul.addr %s321, 256
          %s323 = scalar_lea.vmem [#allocation3], %s322
          %s324 = smul.u32 16, %s32
          %326 = vsyncadd %s320, 0
          %s327 = smul.addr %s324, 4
          %s328 = smul.addr %s31, 64
          %s329 = sadd.s32 %s327, %s328
          %s330 = smul.addr %s329, 4
          %s331 = scalar_lea.hbm %s0, %s330
          %s332 = sshll.u32 %s331, 4
          %s333 = int_to_ptr.hbm [resolvable:$true] %s332
          %s334 = sshll.u32 %s323, 4
          %s335 = int_to_ptr.vmem [resolvable:$true] %s334
          %340 = dma.hbm_to_vmem [thread:$0]  %s333, 4096, %s335, %s320, 128, 128, 8
        $region44: #{tpu_custom_call.1} parent=39 // pred_fallthru
          _
        // Predicated region
        $region45: #{tpu_custom_call.1} parent=39 // pred_check
          %p341 = pneg %p86
        $region46: #{tpu_custom_call.1} parent=39 // pred_check_branch
          %343 = sbr.rel (%p341) target = $region48
        $region47: #{tpu_custom_call.1} parent=39 // pred_region
          %s344 = sand.u32 %s24, 1
          %s345 = scalar_lea.sflag [#allocation7], %s344
          %s346 = sand.u32 %s76, 1
          %s347 = smul.addr %s346, 32
          %s348 = scalar_lea.vmem [#allocation6], %s347
          %350 = vsyncadd %s345, 0
          %s351 = smul.addr %s32, 8
          %s352 = smul.addr %s31, 8
          %s353 = sadd.s32 %s351, %s352
          %s354 = smul.addr %s353, 4
          %s355 = scalar_lea.hbm %s1, %s354
          %s356 = sshll.u32 %s355, 4
          %s357 = int_to_ptr.hbm [resolvable:$true] %s356
          %s358 = sshll.u32 %s348, 4
          %s359 = int_to_ptr.vmem [resolvable:$true] %s358
          %364 = dma.hbm_to_vmem [thread:$0]  %s357, 512, %s359, %s345, 128, 128, 8
        $region48: #{tpu_custom_call.1} parent=39 // pred_fallthru
          _
      $region40: #{tpu_custom_call.1} parent=5 // pred_fallthru
        _
      %p365 = scmp.le.s32.totalorder 1, %s24
      %p366 = scmp.lt.s32.totalorder %s24, 3
      %p367 = pnand %p365, %p366
      %p368 = pneg %p367
      // Predicated region
      $region49: #{tpu_custom_call.1} parent=5 // pred_check
        _
      $region50: #{tpu_custom_call.1} parent=5 // pred_check_branch
        %370 = sbr.rel (%p367) target = $region52
      $region51: #{tpu_custom_call.1} parent=5 // pred_region
        %s371 = ssub.s32 %s24, 1
        %s372 = sand.u32 %s51, 1
        %s373 = scalar_lea.sflag [#allocation4], %s372
        %s374 = sand.u32 %s51, 1
        %s375 = smul.addr %s374, 256
        %s376 = scalar_lea.vmem [#allocation3], %s375
        // Predicated region
        $region53: #{tpu_custom_call.1} parent=51 // pred_check
          %p377 = pneg %p64
        $region54: #{tpu_custom_call.1} parent=51 // pred_check_branch
          %379 = sbr.rel (%p377) target = $region56
        $region55: #{tpu_custom_call.1} parent=51 // pred_region
          %381 = dma.done %s373, 4096
        $region56: #{tpu_custom_call.1} parent=51 // pred_fallthru
          _
        %s382 = sand.u32 %s29, 1
        %s383 = scalar_lea.sflag [#allocation7], %s382
        %s384 = sand.u32 %s79, 1
        %s385 = smul.addr %s384, 32
        %s386 = scalar_lea.vmem [#allocation6], %s385
        // Predicated region
        $region57: #{tpu_custom_call.1} parent=51 // pred_check
          %p387 = pneg %p92
        $region58: #{tpu_custom_call.1} parent=51 // pred_check_branch
          %389 = sbr.rel (%p387) target = $region60
        $region59: #{tpu_custom_call.1} parent=51 // pred_region
          %391 = dma.done %s383, 512
        $region60: #{tpu_custom_call.1} parent=51 // pred_fallthru
          _
        // Predicated region
        $region61: #{tpu_custom_call.1} parent=51 // pred_check
          %p392 = pneg %p113
        $region62: #{tpu_custom_call.1} parent=51 // pred_check_branch
          %394 = sbr.rel (%p392) target = $region64
        $region63: #{tpu_custom_call.1} parent=51 // pred_region
          %396 = dma.done [#allocation7], 2048
        $region64: #{tpu_custom_call.1} parent=51 // pred_fallthru
          _
        // Predicated region
        $region65: #{tpu_custom_call.1} parent=51 // pred_check
          %p397 = pneg %p155
        $region66: #{tpu_custom_call.1} parent=51 // pred_check_branch
          %399 = sbr.rel (%p397) target = $region68
        $region67: #{tpu_custom_call.1} parent=51 // pred_region
          %401 = dma.done [#allocation10], 9216
        $region68: #{tpu_custom_call.1} parent=51 // pred_fallthru
          _
        // Predicated region
        $region69: #{tpu_custom_call.1} parent=51 // pred_check
          %p402 = pneg %p197
        $region70: #{tpu_custom_call.1} parent=51 // pred_check_branch
          %404 = sbr.rel (%p402) target = $region72
        $region71: #{tpu_custom_call.1} parent=51 // pred_region
          %406 = dma.done [#allocation10], 2048
        $region72: #{tpu_custom_call.1} parent=51 // pred_fallthru
          _
        %s407 = sand.u32 %s51, 1
        %s408 = scalar_lea.sflag [#allocation4], %s407
        %s409 = sand.u32 %s51, 1
        %s410 = smul.addr %s409, 256
        %s411 = scalar_lea.vmem [#allocation3], %s410
        %p412 = pneg %p64
        %p413 = pneg %p61
        %s414 = sand.u32 %s29, 1
        %s415 = scalar_lea.sflag [#allocation7], %s414
        %s416 = sand.u32 %s79, 1
        %s417 = smul.addr %s416, 32
        %s418 = scalar_lea.vmem [#allocation6], %s417
        %p419 = pneg %p92
        %p420 = pneg %p89
        %p421 = pneg %p113
        %p422 = pneg %p110
        %p423 = pneg %p134
        %p424 = pneg %p131
        %p425 = pneg %p155
        %p426 = pneg %p152
        %p427 = pneg %p176
        %p428 = pneg %p173
        %p429 = pneg %p197
        %p430 = pneg %p194
        %p431 = pneg %p218
        %p432 = pneg %p215
        %p433 = pneg %p246
        %p434 = pneg %p243
        %s435 = sand.u32 %s233, 1
        %s436 = scalar_lea.sflag [#allocation5], %s435
        %s437 = sand.u32 %s233, 1
        %s438 = smul.addr %s437, 256
        %s439 = scalar_lea.vmem [#allocation12], %s438
        %s440 = smul.u32 16, %s34
        %s441 = smul.u32 16, %s34
        %s443 = smul.u32 %s34, 16
        %v444 = vld [vmem:[%s376] sm:$0xff]
        %v445 = vld [vmem:[%s376 + $0x8] sm:$0xff]
        %v446 = vld [vmem:[%s376 + $0x10] sm:$0xff]
        %v447 = vld [vmem:[%s376 + $0x18] sm:$0xff]
        %v448 = vld [vmem:[%s376 + $0x20] sm:$0xff]
        %v449 = vld [vmem:[%s376 + $0x28] sm:$0xff]
        %v450 = vld [vmem:[%s376 + $0x30] sm:$0xff]
        %v451 = vld [vmem:[%s376 + $0x38] sm:$0xff]
        %v452 = vld [vmem:[%s376 + $0x40] sm:$0xff]
        %v453 = vld [vmem:[%s376 + $0x48] sm:$0xff]
        %v454 = vld [vmem:[%s376 + $0x50] sm:$0xff]
        %v455 = vld [vmem:[%s376 + $0x58] sm:$0xff]
        %v456 = vld [vmem:[%s376 + $0x60] sm:$0xff]
        %v457 = vld [vmem:[%s376 + $0x68] sm:$0xff]
        %v458 = vld [vmem:[%s376 + $0x70] sm:$0xff]
        %v459 = vld [vmem:[%s376 + $0x78] sm:$0xff]
        %v460 = vld [vmem:[%s376 + $0x80] sm:$0xff]
        %v461 = vld [vmem:[%s376 + $0x88] sm:$0xff]
        %v462 = vld [vmem:[%s376 + $0x90] sm:$0xff]
        %v463 = vld [vmem:[%s376 + $0x98] sm:$0xff]
        %v464 = vld [vmem:[%s376 + $0xa0] sm:$0xff]
        %v465 = vld [vmem:[%s376 + $0xa8] sm:$0xff]
        %v466 = vld [vmem:[%s376 + $0xb0] sm:$0xff]
        %v467 = vld [vmem:[%s376 + $0xb8] sm:$0xff]
        %v468 = vld [vmem:[%s376 + $0xc0] sm:$0xff]
        %v469 = vld [vmem:[%s376 + $0xc8] sm:$0xff]
        %v470 = vld [vmem:[%s376 + $0xd0] sm:$0xff]
        %v471 = vld [vmem:[%s376 + $0xd8] sm:$0xff]
        %v472 = vld [vmem:[%s376 + $0xe0] sm:$0xff]
        %v473 = vld [vmem:[%s376 + $0xe8] sm:$0xff]
        %v474 = vld [vmem:[%s376 + $0xf0] sm:$0xff]
        %v475 = vld [vmem:[%s376 + $0xf8] sm:$0xff]
        %v476 = vld [vmem:[#allocation8] sm:$0xf]
        %v477 = vld [vmem:[#allocation8 + $0x4] sm:$0xf]
        %v478 = vld [vmem:[#allocation8 + $0x8] sm:$0xf]
        %v479 = vld [vmem:[#allocation8 + $0xc] sm:$0xf]
        %v480 = vld [vmem:[#allocation8 + $0x10] sm:$0xf]
        %v481 = vld [vmem:[#allocation8 + $0x14] sm:$0xf]
        %v482 = vld [vmem:[#allocation8 + $0x18] sm:$0xf]
        %v483 = vld [vmem:[#allocation8 + $0x1c] sm:$0xf]
        %v484 = vld [vmem:[#allocation8 + $0x20] sm:$0xf]
        %v485 = vld [vmem:[#allocation8 + $0x24] sm:$0xf]
        %v486 = vld [vmem:[#allocation8 + $0x28] sm:$0xf]
        %v487 = vld [vmem:[#allocation8 + $0x2c] sm:$0xf]
        %v488 = vld [vmem:[#allocation8 + $0x30] sm:$0xf]
        %v489 = vld [vmem:[#allocation8 + $0x34] sm:$0xf]
        %v490 = vld [vmem:[#allocation8 + $0x38] sm:$0xf]
        %v491 = vld [vmem:[#allocation8 + $0x3c] sm:$0xf]
        %v492 = vld [vmem:[#allocation8 + $0x40] sm:$0xf]
        %v493 = vld [vmem:[#allocation8 + $0x44] sm:$0xf]
        %v494 = vld [vmem:[#allocation8 + $0x48] sm:$0xf]
        %v495 = vld [vmem:[#allocation8 + $0x4c] sm:$0xf]
        %v496 = vld [vmem:[#allocation8 + $0x50] sm:$0xf]
        %v497 = vld [vmem:[#allocation8 + $0x54] sm:$0xf]
        %v498 = vld [vmem:[#allocation8 + $0x58] sm:$0xf]
        %v499 = vld [vmem:[#allocation8 + $0x5c] sm:$0xf]
        %v500 = vld [vmem:[#allocation8 + $0x60] sm:$0xf]
        %v501 = vld [vmem:[#allocation8 + $0x64] sm:$0xf]
        %v502 = vld [vmem:[#allocation8 + $0x68] sm:$0xf]
        %v503 = vld [vmem:[#allocation8 + $0x6c] sm:$0xf]
        %v504 = vld [vmem:[#allocation8 + $0x70] sm:$0xf]
        %v505 = vld [vmem:[#allocation8 + $0x74] sm:$0xf]
        %v506 = vld [vmem:[#allocation8 + $0x78] sm:$0xf]
        %v507 = vld [vmem:[#allocation8 + $0x7c] sm:$0xf]
        %v508 = vld [vmem:[%s3] sm:$0x1]
        %v510 = vperm.slane %v508, 0
        %v544 = vunpack.c.l.b16 %v444
        %v545 = vunpack.c.h.b16 %v444
        %v546 = vunpack.c.l.b16 %v445
        %v547 = vunpack.c.h.b16 %v445
        %v548 = vunpack.c.l.b16 %v446
        %v549 = vunpack.c.h.b16 %v446
        %v550 = vunpack.c.l.b16 %v447
        %v551 = vunpack.c.h.b16 %v447
        %v552 = vunpack.c.l.b16 %v448
        %v553 = vunpack.c.h.b16 %v448
        %v554 = vunpack.c.l.b16 %v449
        %v555 = vunpack.c.h.b16 %v449
        %v556 = vunpack.c.l.b16 %v450
        %v557 = vunpack.c.h.b16 %v450
        %v558 = vunpack.c.l.b16 %v451
        %v559 = vunpack.c.h.b16 %v451
        %v560 = vunpack.c.l.b16 %v452
        %v561 = vunpack.c.h.b16 %v452
        %v562 = vunpack.c.l.b16 %v453
        %v563 = vunpack.c.h.b16 %v453
        %v564 = vunpack.c.l.b16 %v454
        %v565 = vunpack.c.h.b16 %v454
        %v566 = vunpack.c.l.b16 %v455
        %v567 = vunpack.c.h.b16 %v455
        %v568 = vunpack.c.l.b16 %v456
        %v569 = vunpack.c.h.b16 %v456
        %v570 = vunpack.c.l.b16 %v457
        %v571 = vunpack.c.h.b16 %v457
        %v572 = vunpack.c.l.b16 %v458
        %v573 = vunpack.c.h.b16 %v458
        %v574 = vunpack.c.l.b16 %v459
        %v575 = vunpack.c.h.b16 %v459
        %v576 = vunpack.c.l.b16 %v460
        %v577 = vunpack.c.h.b16 %v460
        %v578 = vunpack.c.l.b16 %v461
        %v579 = vunpack.c.h.b16 %v461
        %v580 = vunpack.c.l.b16 %v462
        %v581 = vunpack.c.h.b16 %v462
        %v582 = vunpack.c.l.b16 %v463
        %v583 = vunpack.c.h.b16 %v463
        %v584 = vunpack.c.l.b16 %v464
        %v585 = vunpack.c.h.b16 %v464
        %v586 = vunpack.c.l.b16 %v465
        %v587 = vunpack.c.h.b16 %v465
        %v588 = vunpack.c.l.b16 %v466
        %v589 = vunpack.c.h.b16 %v466
        %v590 = vunpack.c.l.b16 %v467
        %v591 = vunpack.c.h.b16 %v467
        %v592 = vunpack.c.l.b16 %v468
        %v593 = vunpack.c.h.b16 %v468
        %v594 = vunpack.c.l.b16 %v469
        %v595 = vunpack.c.h.b16 %v469
        %v596 = vunpack.c.l.b16 %v470
        %v597 = vunpack.c.h.b16 %v470
        %v598 = vunpack.c.l.b16 %v471
        %v599 = vunpack.c.h.b16 %v471
        %v600 = vunpack.c.l.b16 %v472
        %v601 = vunpack.c.h.b16 %v472
        %v602 = vunpack.c.l.b16 %v473
        %v603 = vunpack.c.h.b16 %v473
        %v604 = vunpack.c.l.b16 %v474
        %v605 = vunpack.c.h.b16 %v474
        %v606 = vunpack.c.l.b16 %v475
        %v607 = vunpack.c.h.b16 %v475
        %v608 = vpack.c.b16 %v546, %v544
        %v609 = vpack.c.b16 %v547, %v545
        %v610 = vpack.c.b16 %v550, %v548
        %v611 = vpack.c.b16 %v551, %v549
        %v612 = vpack.c.b16 %v554, %v552
        %v613 = vpack.c.b16 %v555, %v553
        %v614 = vpack.c.b16 %v558, %v556
        %v615 = vpack.c.b16 %v559, %v557
        %v616 = vpack.c.b16 %v562, %v560
        %v617 = vpack.c.b16 %v563, %v561
        %v618 = vpack.c.b16 %v566, %v564
        %v619 = vpack.c.b16 %v567, %v565
        %v620 = vpack.c.b16 %v570, %v568
        %v621 = vpack.c.b16 %v571, %v569
        %v622 = vpack.c.b16 %v574, %v572
        %v623 = vpack.c.b16 %v575, %v573
        %v624 = vpack.c.b16 %v578, %v576
        %v625 = vpack.c.b16 %v579, %v577
        %v626 = vpack.c.b16 %v582, %v580
        %v627 = vpack.c.b16 %v583, %v581
        %v628 = vpack.c.b16 %v586, %v584
        %v629 = vpack.c.b16 %v587, %v585
        %v630 = vpack.c.b16 %v590, %v588
        %v631 = vpack.c.b16 %v591, %v589
        %v632 = vpack.c.b16 %v594, %v592
        %v633 = vpack.c.b16 %v595, %v593
        %v634 = vpack.c.b16 %v598, %v596
        %v635 = vpack.c.b16 %v599, %v597
        %v636 = vpack.c.b16 %v602, %v600
        %v637 = vpack.c.b16 %v603, %v601
        %v638 = vpack.c.b16 %v606, %v604
        %v639 = vpack.c.b16 %v607, %v605
        %v704 = vunpack.c.l.b16 %v476
        %v705 = vunpack.c.l.b16 %v477
        %v706 = vunpack.c.l.b16 %v478
        %v707 = vunpack.c.l.b16 %v479
        %v708 = vunpack.c.l.b16 %v480
        %v709 = vunpack.c.l.b16 %v481
        %v710 = vunpack.c.l.b16 %v482
        %v711 = vunpack.c.l.b16 %v483
        %v712 = vunpack.c.l.b16 %v484
        %v713 = vunpack.c.l.b16 %v485
        %v714 = vunpack.c.l.b16 %v486
        %v715 = vunpack.c.l.b16 %v487
        %v716 = vunpack.c.l.b16 %v488
        %v717 = vunpack.c.l.b16 %v489
        %v718 = vunpack.c.l.b16 %v490
        %v719 = vunpack.c.l.b16 %v491
        %v720 = vunpack.c.l.b16 %v492
        %v721 = vunpack.c.l.b16 %v493
        %v722 = vunpack.c.l.b16 %v494
        %v723 = vunpack.c.l.b16 %v495
        %v724 = vunpack.c.l.b16 %v496
        %v725 = vunpack.c.l.b16 %v497
        %v726 = vunpack.c.l.b16 %v498
        %v727 = vunpack.c.l.b16 %v499
        %v728 = vunpack.c.l.b16 %v500
        %v729 = vunpack.c.l.b16 %v501
        %v730 = vunpack.c.l.b16 %v502
        %v731 = vunpack.c.l.b16 %v503
        %v732 = vunpack.c.l.b16 %v504
        %v733 = vunpack.c.l.b16 %v505
        %v734 = vunpack.c.l.b16 %v506
        %v735 = vunpack.c.l.b16 %v507
        %v736 = vpack.c.b16 %v705, %v704
        %v737 = vpack.c.b16 %v707, %v706
        %v738 = vpack.c.b16 %v709, %v708
        %v739 = vpack.c.b16 %v711, %v710
        %v740 = vpack.c.b16 %v713, %v712
        %v741 = vpack.c.b16 %v715, %v714
        %v742 = vpack.c.b16 %v717, %v716
        %v743 = vpack.c.b16 %v719, %v718
        %v744 = vpack.c.b16 %v721, %v720
        %v745 = vpack.c.b16 %v723, %v722
        %v746 = vpack.c.b16 %v725, %v724
        %v747 = vpack.c.b16 %v727, %v726
        %v748 = vpack.c.b16 %v729, %v728
        %v749 = vpack.c.b16 %v731, %v730
        %v750 = vpack.c.b16 %v733, %v732
        %v751 = vpack.c.b16 %v735, %v734
        %768 = vmatpush.bf16.msra.mxu0 %v743
        %769 = vmatpush.bf16.msra.mxu0 %v742
        %770 = vmatpush.bf16.msra.mxu0 %v741
        %771 = vmatpush.bf16.msra.mxu0 %v740
        %772 = vmatpush.bf16.msra.mxu0 %v739
        %773 = vmatpush.bf16.msra.mxu0 %v738
        %774 = vmatpush.bf16.msra.mxu0 %v737
        %775 = vmatpush.bf16.msra.mxu0 %v736
        %776 = vmatmul.bf16.gmra.mxu0 %v608
        %v777 = vpop.f32.mrf.mxu0
        %v778 = vadd.f32 %v510, %v777
        %v779 = vpop.f32.mrf.mxu0
        %v780 = vadd.f32 %v510, %v779
        %781 = vmatmul.bf16.gmra.mxu0 %v610
        %v782 = vpop.f32.mrf.mxu0
        %v783 = vadd.f32 %v510, %v782
        %v784 = vpop.f32.mrf.mxu0
        %v785 = vadd.f32 %v510, %v784
        %786 = vmatmul.bf16.gmra.mxu0 %v612
        %v787 = vpop.f32.mrf.mxu0
        %v788 = vadd.f32 %v510, %v787
        %v789 = vpop.f32.mrf.mxu0
        %v790 = vadd.f32 %v510, %v789
        %791 = vmatmul.bf16.gmra.mxu0 %v614
        %v792 = vpop.f32.mrf.mxu0
        %v793 = vadd.f32 %v510, %v792
        %v794 = vpop.f32.mrf.mxu0
        %v795 = vadd.f32 %v510, %v794
        %796 = vmatmul.bf16.gmra.mxu0 %v616
        %v797 = vpop.f32.mrf.mxu0
        %v798 = vadd.f32 %v510, %v797
        %v799 = vpop.f32.mrf.mxu0
        %v800 = vadd.f32 %v510, %v799
        %801 = vmatmul.bf16.gmra.mxu0 %v618
        %v802 = vpop.f32.mrf.mxu0
        %v803 = vadd.f32 %v510, %v802
        %v804 = vpop.f32.mrf.mxu0
        %v805 = vadd.f32 %v510, %v804
        %806 = vmatmul.bf16.gmra.mxu0 %v620
        %v807 = vpop.f32.mrf.mxu0
        %v808 = vadd.f32 %v510, %v807
        %v809 = vpop.f32.mrf.mxu0
        %v810 = vadd.f32 %v510, %v809
        %811 = vmatmul.bf16.gmra.mxu0 %v622
        %v812 = vpop.f32.mrf.mxu0
        %v813 = vadd.f32 %v510, %v812
        %v814 = vpop.f32.mrf.mxu0
        %v815 = vadd.f32 %v510, %v814
        %816 = vmatmul.bf16.gmra.mxu0 %v624
        %v817 = vpop.f32.mrf.mxu0
        %v818 = vadd.f32 %v510, %v817
        %v819 = vpop.f32.mrf.mxu0
        %v820 = vadd.f32 %v510, %v819
        %821 = vmatmul.bf16.gmra.mxu0 %v626
        %v822 = vpop.f32.mrf.mxu0
        %v823 = vadd.f32 %v510, %v822
        %v824 = vpop.f32.mrf.mxu0
        %v825 = vadd.f32 %v510, %v824
        %826 = vmatmul.bf16.gmra.mxu0 %v628
        %v827 = vpop.f32.mrf.mxu0
        %v828 = vadd.f32 %v510, %v827
        %v829 = vpop.f32.mrf.mxu0
        %v830 = vadd.f32 %v510, %v829
        %831 = vmatmul.bf16.gmra.mxu0 %v630
        %v832 = vpop.f32.mrf.mxu0
        %v833 = vadd.f32 %v510, %v832
        %v834 = vpop.f32.mrf.mxu0
        %v835 = vadd.f32 %v510, %v834
        %836 = vmatmul.bf16.gmra.mxu0 %v632
        %v837 = vpop.f32.mrf.mxu0
        %v838 = vadd.f32 %v510, %v837
        %v839 = vpop.f32.mrf.mxu0
        %v840 = vadd.f32 %v510, %v839
        %841 = vmatmul.bf16.gmra.mxu0 %v634
        %v842 = vpop.f32.mrf.mxu0
        %v843 = vadd.f32 %v510, %v842
        %v844 = vpop.f32.mrf.mxu0
        %v845 = vadd.f32 %v510, %v844
        %846 = vmatmul.bf16.gmra.mxu0 %v636
        %v847 = vpop.f32.mrf.mxu0
        %v848 = vadd.f32 %v510, %v847
        %v849 = vpop.f32.mrf.mxu0
        %v850 = vadd.f32 %v510, %v849
        %851 = vmatmul.bf16.gmra.mxu0 %v638
        %v852 = vpop.f32.mrf.mxu0
        %v853 = vadd.f32 %v510, %v852
        %v854 = vpop.f32.mrf.mxu0
        %v855 = vadd.f32 %v510, %v854
        %856 = vdwg.mxu0
        %857 = vmatpush.bf16.msra.mxu0 %v751
        %858 = vmatpush.bf16.msra.mxu0 %v750
        %859 = vmatpush.bf16.msra.mxu0 %v749
        %860 = vmatpush.bf16.msra.mxu0 %v748
        %861 = vmatpush.bf16.msra.mxu0 %v747
        %862 = vmatpush.bf16.msra.mxu0 %v746
        %863 = vmatpush.bf16.msra.mxu0 %v745
        %864 = vmatpush.bf16.msra.mxu0 %v744
        %865 = vmatmul.bf16.gmra.mxu0 %v609
        %v866 = vpop.f32.mrf.mxu0
        %v867 = vadd.f32 %v778, %v866
        %v868 = vpop.f32.mrf.mxu0
        %v869 = vadd.f32 %v780, %v868
        %870 = vmatmul.bf16.gmra.mxu0 %v611
        %v871 = vpop.f32.mrf.mxu0
        %v872 = vadd.f32 %v783, %v871
        %v873 = vpop.f32.mrf.mxu0
        %v874 = vadd.f32 %v785, %v873
        %875 = vmatmul.bf16.gmra.mxu0 %v613
        %v876 = vpop.f32.mrf.mxu0
        %v877 = vadd.f32 %v788, %v876
        %v878 = vpop.f32.mrf.mxu0
        %v879 = vadd.f32 %v790, %v878
        %880 = vmatmul.bf16.gmra.mxu0 %v615
        %v881 = vpop.f32.mrf.mxu0
        %v882 = vadd.f32 %v793, %v881
        %v883 = vpop.f32.mrf.mxu0
        %v884 = vadd.f32 %v795, %v883
        %885 = vmatmul.bf16.gmra.mxu0 %v617
        %v886 = vpop.f32.mrf.mxu0
        %v887 = vadd.f32 %v798, %v886
        %v888 = vpop.f32.mrf.mxu0
        %v889 = vadd.f32 %v800, %v888
        %890 = vmatmul.bf16.gmra.mxu0 %v619
        %v891 = vpop.f32.mrf.mxu0
        %v892 = vadd.f32 %v803, %v891
        %v893 = vpop.f32.mrf.mxu0
        %v894 = vadd.f32 %v805, %v893
        %895 = vmatmul.bf16.gmra.mxu0 %v621
        %v896 = vpop.f32.mrf.mxu0
        %v897 = vadd.f32 %v808, %v896
        %v898 = vpop.f32.mrf.mxu0
        %v899 = vadd.f32 %v810, %v898
        %900 = vmatmul.bf16.gmra.mxu0 %v623
        %v901 = vpop.f32.mrf.mxu0
        %v902 = vadd.f32 %v813, %v901
        %v903 = vpop.f32.mrf.mxu0
        %v904 = vadd.f32 %v815, %v903
        %905 = vmatmul.bf16.gmra.mxu0 %v625
        %v906 = vpop.f32.mrf.mxu0
        %v907 = vadd.f32 %v818, %v906
        %v908 = vpop.f32.mrf.mxu0
        %v909 = vadd.f32 %v820, %v908
        %910 = vmatmul.bf16.gmra.mxu0 %v627
        %v911 = vpop.f32.mrf.mxu0
        %v912 = vadd.f32 %v823, %v911
        %v913 = vpop.f32.mrf.mxu0
        %v914 = vadd.f32 %v825, %v913
        %915 = vmatmul.bf16.gmra.mxu0 %v629
        %v916 = vpop.f32.mrf.mxu0
        %v917 = vadd.f32 %v828, %v916
        %v918 = vpop.f32.mrf.mxu0
        %v919 = vadd.f32 %v830, %v918
        %920 = vmatmul.bf16.gmra.mxu0 %v631
        %v921 = vpop.f32.mrf.mxu0
        %v922 = vadd.f32 %v833, %v921
        %v923 = vpop.f32.mrf.mxu0
        %v924 = vadd.f32 %v835, %v923
        %925 = vmatmul.bf16.gmra.mxu0 %v633
        %v926 = vpop.f32.mrf.mxu0
        %v927 = vadd.f32 %v838, %v926
        %v928 = vpop.f32.mrf.mxu0
        %v929 = vadd.f32 %v840, %v928
        %930 = vmatmul.bf16.gmra.mxu0 %v635
        %v931 = vpop.f32.mrf.mxu0
        %v932 = vadd.f32 %v843, %v931
        %v933 = vpop.f32.mrf.mxu0
        %v934 = vadd.f32 %v845, %v933
        %935 = vmatmul.bf16.gmra.mxu0 %v637
        %v936 = vpop.f32.mrf.mxu0
        %v937 = vadd.f32 %v848, %v936
        %v938 = vpop.f32.mrf.mxu0
        %v939 = vadd.f32 %v850, %v938
        %940 = vmatmul.bf16.gmra.mxu0 %v639
        %v941 = vpop.f32.mrf.mxu0
        %v942 = vadd.f32 %v853, %v941
        %v943 = vpop.f32.mrf.mxu0
        %v944 = vadd.f32 %v855, %v943
        %945 = vdwg.mxu0
        %v946 = vpack.c.bf16 %v867, %v867
        %v947 = vpack.c.bf16 %v869, %v869
        %v948 = vpack.c.bf16 %v872, %v872
        %v949 = vpack.c.bf16 %v874, %v874
        %v950 = vpack.c.bf16 %v877, %v877
        %v951 = vpack.c.bf16 %v879, %v879
        %v952 = vpack.c.bf16 %v882, %v882
        %v953 = vpack.c.bf16 %v884, %v884
        %v954 = vpack.c.bf16 %v887, %v887
        %v955 = vpack.c.bf16 %v889, %v889
        %v956 = vpack.c.bf16 %v892, %v892
        %v957 = vpack.c.bf16 %v894, %v894
        %v958 = vpack.c.bf16 %v897, %v897
        %v959 = vpack.c.bf16 %v899, %v899
        %v960 = vpack.c.bf16 %v902, %v902
        %v961 = vpack.c.bf16 %v904, %v904
        %v962 = vpack.c.bf16 %v907, %v907
        %v963 = vpack.c.bf16 %v909, %v909
        %v964 = vpack.c.bf16 %v912, %v912
        %v965 = vpack.c.bf16 %v914, %v914
        %v966 = vpack.c.bf16 %v917, %v917
        %v967 = vpack.c.bf16 %v919, %v919
        %v968 = vpack.c.bf16 %v922, %v922
        %v969 = vpack.c.bf16 %v924, %v924
        %v970 = vpack.c.bf16 %v927, %v927
        %v971 = vpack.c.bf16 %v929, %v929
        %v972 = vpack.c.bf16 %v932, %v932
        %v973 = vpack.c.bf16 %v934, %v934
        %v974 = vpack.c.bf16 %v937, %v937
        %v975 = vpack.c.bf16 %v939, %v939
        %v976 = vpack.c.bf16 %v942, %v942
        %v977 = vpack.c.bf16 %v944, %v944
        %v978 = vld [vmem:[%s386] sm:$0xff]
        %v979 = vld [vmem:[%s386 + $0x8] sm:$0xff]
        %v980 = vld [vmem:[%s386 + $0x10] sm:$0xff]
        %v981 = vld [vmem:[%s386 + $0x18] sm:$0xff]
        %v986 = vunpack.c.l.b16 %v978
        %v987 = vunpack.c.h.b16 %v978
        %v988 = vunpack.c.l.b16 %v979
        %v989 = vunpack.c.h.b16 %v979
        %v990 = vunpack.c.l.b16 %v980
        %v991 = vunpack.c.h.b16 %v980
        %v992 = vunpack.c.l.b16 %v981
        %v993 = vunpack.c.h.b16 %v981
        %v994 = vpack.c.b16 %v988, %v986
        %v995 = vpack.c.b16 %v989, %v987
        %v996 = vpack.c.b16 %v992, %v990
        %v997 = vpack.c.b16 %v993, %v991
        %1002 = vmatpush.bf16.msra.mxu0 %v743
        %1003 = vmatpush.bf16.msra.mxu0 %v742
        %1004 = vmatpush.bf16.msra.mxu0 %v741
        %1005 = vmatpush.bf16.msra.mxu0 %v740
        %1006 = vmatpush.bf16.msra.mxu0 %v739
        %1007 = vmatpush.bf16.msra.mxu0 %v738
        %1008 = vmatpush.bf16.msra.mxu0 %v737
        %1009 = vmatpush.bf16.msra.mxu0 %v736
        %1010 = vmatmul.bf16.gmra.mxu0 %v994
        %v1011 = vpop.f32.mrf.mxu0
        %v1012 = vadd.f32 %v510, %v1011
        %v1013 = vpop.f32.mrf.mxu0
        %v1014 = vadd.f32 %v510, %v1013
        %1015 = vmatmul.bf16.gmra.mxu0 %v996
        %v1016 = vpop.f32.mrf.mxu0
        %v1017 = vadd.f32 %v510, %v1016
        %v1018 = vpop.f32.mrf.mxu0
        %v1019 = vadd.f32 %v510, %v1018
        %1020 = vdwg.mxu0
        %1021 = vmatpush.bf16.msra.mxu0 %v751
        %1022 = vmatpush.bf16.msra.mxu0 %v750
        %1023 = vmatpush.bf16.msra.mxu0 %v749
        %1024 = vmatpush.bf16.msra.mxu0 %v748
        %1025 = vmatpush.bf16.msra.mxu0 %v747
        %1026 = vmatpush.bf16.msra.mxu0 %v746
        %1027 = vmatpush.bf16.msra.mxu0 %v745
        %1028 = vmatpush.bf16.msra.mxu0 %v744
        %1029 = vmatmul.bf16.gmra.mxu0 %v995
        %v1030 = vpop.f32.mrf.mxu0
        %v1031 = vadd.f32 %v1012, %v1030
        %v1032 = vpop.f32.mrf.mxu0
        %v1033 = vadd.f32 %v1014, %v1032
        %1034 = vmatmul.bf16.gmra.mxu0 %v997
        %v1035 = vpop.f32.mrf.mxu0
        %v1036 = vadd.f32 %v1017, %v1035
        %v1037 = vpop.f32.mrf.mxu0
        %v1038 = vadd.f32 %v1019, %v1037
        %1039 = vdwg.mxu0
        %p1040 = scmp.gt.s32.totalorder %s443, 0
        %s1041 = scalar_select %p1040, 1, 0
        %s1042 = scvt.s32.f32 %s1041
        %s1043 = sadd.s32 %s443, 16
        %p1044 = scmp.lt.s32.totalorder %s1043, 16
        %s1045 = scalar_select %p1044, 1, 0
        %s1046 = scvt.s32.f32 %s1045
        %v1047 = vstv %s1042
        %v1048 = vmul.f32 %v1031, %v1047
        %v1049 = vmul.f32 %v1033, %v1047
        %v1050 = vpack.c.bf16 %v1048, %v1048
        %v1051 = vpack.c.bf16 %v1049, %v1049
        %v1052 = vstv %s1046
        %v1053 = vmul.f32 %v1036, %v1052
        %v1054 = vmul.f32 %v1038, %v1052
        %v1055 = vpack.c.bf16 %v1053, %v1053
        %v1056 = vpack.c.bf16 %v1054, %v1054
        %v1093 = vunpack.c.l.b16 %v1050
        %v1094 = vunpack.c.l.b16 %v1051
        %v1095 = vunpack.c.l.b16 %v946
        %v1096 = vunpack.c.l.b16 %v947
        %v1097 = vunpack.c.l.b16 %v948
        %v1098 = vunpack.c.l.b16 %v949
        %v1099 = vunpack.c.l.b16 %v950
        %v1100 = vunpack.c.l.b16 %v951
        %v1101 = vunpack.c.l.b16 %v952
        %v1102 = vunpack.c.l.b16 %v953
        %v1103 = vunpack.c.l.b16 %v954
        %v1104 = vunpack.c.l.b16 %v955
        %v1105 = vunpack.c.l.b16 %v956
        %v1106 = vunpack.c.l.b16 %v957
        %v1107 = vunpack.c.l.b16 %v958
        %v1108 = vunpack.c.l.b16 %v959
        %v1109 = vunpack.c.l.b16 %v960
        %v1110 = vunpack.c.l.b16 %v961
        %v1111 = vunpack.c.l.b16 %v962
        %v1112 = vunpack.c.l.b16 %v963
        %v1113 = vunpack.c.l.b16 %v964
        %v1114 = vunpack.c.l.b16 %v965
        %v1115 = vunpack.c.l.b16 %v966
        %v1116 = vunpack.c.l.b16 %v967
        %v1117 = vunpack.c.l.b16 %v968
        %v1118 = vunpack.c.l.b16 %v969
        %v1119 = vunpack.c.l.b16 %v970
        %v1120 = vunpack.c.l.b16 %v971
        %v1121 = vunpack.c.l.b16 %v972
        %v1122 = vunpack.c.l.b16 %v973
        %v1123 = vunpack.c.l.b16 %v974
        %v1124 = vunpack.c.l.b16 %v975
        %v1125 = vunpack.c.l.b16 %v976
        %v1126 = vunpack.c.l.b16 %v977
        %v1127 = vunpack.c.l.b16 %v1055
        %v1128 = vunpack.c.l.b16 %v1056
        %v1129 = vpack.c.b16 %v1094, %v1093
        %v1130 = vpack.c.b16 %v1096, %v1095
        %v1131 = vpack.c.b16 %v1098, %v1097
        %v1132 = vpack.c.b16 %v1100, %v1099
        %v1133 = vpack.c.b16 %v1102, %v1101
        %v1134 = vpack.c.b16 %v1104, %v1103
        %v1135 = vpack.c.b16 %v1106, %v1105
        %v1136 = vpack.c.b16 %v1108, %v1107
        %v1137 = vpack.c.b16 %v1110, %v1109
        %v1138 = vpack.c.b16 %v1112, %v1111
        %v1139 = vpack.c.b16 %v1114, %v1113
        %v1140 = vpack.c.b16 %v1116, %v1115
        %v1141 = vpack.c.b16 %v1118, %v1117
        %v1142 = vpack.c.b16 %v1120, %v1119
        %v1143 = vpack.c.b16 %v1122, %v1121
        %v1144 = vpack.c.b16 %v1124, %v1123
        %v1145 = vpack.c.b16 %v1126, %v1125
        %v1146 = vpack.c.b16 %v1128, %v1127
        %v1148 = vshrl.u32 %v1129, 16
        %v1150 = vrot.slane %v1148, 7
        %v1151 = vshll.u32 %v1129, 16
        %v1153 = vor.u32 %v1150, %v1151
        %v1155 = vshrl.u32 %v1130, 16
        %v1157 = vrot.slane %v1155, 7
        %v1158 = vshll.u32 %v1130, 16
        %v1160 = vor.u32 %v1157, %v1158
        %v1162 = vshrl.u32 %v1131, 16
        %v1164 = vrot.slane %v1162, 7
        %v1165 = vshll.u32 %v1131, 16
        %v1167 = vor.u32 %v1164, %v1165
        %v1169 = vshrl.u32 %v1132, 16
        %v1171 = vrot.slane %v1169, 7
        %v1172 = vshll.u32 %v1132, 16
        %v1174 = vor.u32 %v1171, %v1172
        %v1176 = vshrl.u32 %v1133, 16
        %v1178 = vrot.slane %v1176, 7
        %v1179 = vshll.u32 %v1133, 16
        %v1181 = vor.u32 %v1178, %v1179
        %v1183 = vshrl.u32 %v1134, 16
        %v1185 = vrot.slane %v1183, 7
        %v1186 = vshll.u32 %v1134, 16
        %v1188 = vor.u32 %v1185, %v1186
        %v1190 = vshrl.u32 %v1135, 16
        %v1192 = vrot.slane %v1190, 7
        %v1193 = vshll.u32 %v1135, 16
        %v1195 = vor.u32 %v1192, %v1193
        %v1197 = vshrl.u32 %v1136, 16
        %v1199 = vrot.slane %v1197, 7
        %v1200 = vshll.u32 %v1136, 16
        %v1202 = vor.u32 %v1199, %v1200
        %v1204 = vshrl.u32 %v1137, 16
        %v1206 = vrot.slane %v1204, 7
        %v1207 = vshll.u32 %v1137, 16
        %v1209 = vor.u32 %v1206, %v1207
        %v1211 = vshrl.u32 %v1138, 16
        %v1213 = vrot.slane %v1211, 7
        %v1214 = vshll.u32 %v1138, 16
        %v1216 = vor.u32 %v1213, %v1214
        %v1218 = vshrl.u32 %v1139, 16
        %v1220 = vrot.slane %v1218, 7
        %v1221 = vshll.u32 %v1139, 16
        %v1223 = vor.u32 %v1220, %v1221
        %v1225 = vshrl.u32 %v1140, 16
        %v1227 = vrot.slane %v1225, 7
        %v1228 = vshll.u32 %v1140, 16
        %v1230 = vor.u32 %v1227, %v1228
        %v1232 = vshrl.u32 %v1141, 16
        %v1234 = vrot.slane %v1232, 7
        %v1235 = vshll.u32 %v1141, 16
        %v1237 = vor.u32 %v1234, %v1235
        %v1239 = vshrl.u32 %v1142, 16
        %v1241 = vrot.slane %v1239, 7
        %v1242 = vshll.u32 %v1142, 16
        %v1244 = vor.u32 %v1241, %v1242
        %v1246 = vshrl.u32 %v1143, 16
        %v1248 = vrot.slane %v1246, 7
        %v1249 = vshll.u32 %v1143, 16
        %v1251 = vor.u32 %v1248, %v1249
        %v1253 = vshrl.u32 %v1144, 16
        %v1255 = vrot.slane %v1253, 7
        %v1256 = vshll.u32 %v1144, 16
        %v1258 = vor.u32 %v1255, %v1256
        %v1260 = vshrl.u32 %v1145, 16
        %v1262 = vrot.slane %v1260, 7
        %v1263 = vshll.u32 %v1145, 16
        %v1265 = vor.u32 %v1262, %v1263
        %v1267 = vshrl.u32 %v1146, 16
        %v1269 = vrot.slane %v1267, 7
        %v1270 = vshll.u32 %v1146, 16
        %v1272 = vor.u32 %v1269, %v1270
        %vm1309 = vcmask 1040384
        %vm1310 = vsmask.f32 256
        %vm1311 = vmand %vm1309, %vm1310
        %v1312 = vsel %vm1311, 0, %v1153
        %v1313 = vsel %vm1311, 0, %v1160
        %v1314 = vsel %vm1311, 0, %v1167
        %v1315 = vsel %vm1311, 0, %v1174
        %v1316 = vsel %vm1311, 0, %v1181
        %v1317 = vsel %vm1311, 0, %v1188
        %v1318 = vsel %vm1311, 0, %v1195
        %v1319 = vsel %vm1311, 0, %v1202
        %v1320 = vsel %vm1311, 0, %v1209
        %v1321 = vsel %vm1311, 0, %v1216
        %v1322 = vsel %vm1311, 0, %v1223
        %v1323 = vsel %vm1311, 0, %v1230
        %v1324 = vsel %vm1311, 0, %v1237
        %v1325 = vsel %vm1311, 0, %v1244
        %v1326 = vsel %vm1311, 0, %v1251
        %v1327 = vsel %vm1311, 0, %v1258
        %v1328 = vsel %vm1311, 0, %v1265
        %v1329 = vsel %vm1311, 0, %v1272
        %v1330 = vsel %vm1311, %v1150, 0
        %v1331 = vsel %vm1311, %v1157, 0
        %v1332 = vsel %vm1311, %v1164, 0
        %v1333 = vsel %vm1311, %v1171, 0
        %v1334 = vsel %vm1311, %v1178, 0
        %v1335 = vsel %vm1311, %v1185, 0
        %v1336 = vsel %vm1311, %v1192, 0
        %v1337 = vsel %vm1311, %v1199, 0
        %v1338 = vsel %vm1311, %v1206, 0
        %v1339 = vsel %vm1311, %v1213, 0
        %v1340 = vsel %vm1311, %v1220, 0
        %v1341 = vsel %vm1311, %v1227, 0
        %v1342 = vsel %vm1311, %v1234, 0
        %v1343 = vsel %vm1311, %v1241, 0
        %v1344 = vsel %vm1311, %v1248, 0
        %v1345 = vsel %vm1311, %v1255, 0
        %v1346 = vsel %vm1311, %v1262, 0
        %v1347 = vsel %vm1311, %v1269, 0
        %v1367 = vrot.slane %v1312, 1
        %v1368 = vrot.slane %v1312, 2
        %v1369 = vrot.slane %v1312, 3
        %v1370 = vrot.slane %v1312, 4
        %v1371 = vrot.slane %v1312, 5
        %v1372 = vrot.slane %v1312, 6
        %v1373 = vrot.slane %v1312, 7
        %v1374 = vrot.slane %v1313, 1
        %v1375 = vrot.slane %v1313, 2
        %v1376 = vrot.slane %v1313, 3
        %v1377 = vrot.slane %v1313, 4
        %v1378 = vrot.slane %v1313, 5
        %v1379 = vrot.slane %v1313, 6
        %v1380 = vrot.slane %v1313, 7
        %v1381 = vrot.slane %v1314, 1
        %v1382 = vrot.slane %v1314, 2
        %v1383 = vrot.slane %v1314, 3
        %v1384 = vrot.slane %v1314, 4
        %v1385 = vrot.slane %v1314, 5
        %v1386 = vrot.slane %v1314, 6
        %v1387 = vrot.slane %v1314, 7
        %v1388 = vrot.slane %v1315, 1
        %v1389 = vrot.slane %v1315, 2
        %v1390 = vrot.slane %v1315, 3
        %v1391 = vrot.slane %v1315, 4
        %v1392 = vrot.slane %v1315, 5
        %v1393 = vrot.slane %v1315, 6
        %v1394 = vrot.slane %v1315, 7
        %v1395 = vrot.slane %v1316, 1
        %v1396 = vrot.slane %v1316, 2
        %v1397 = vrot.slane %v1316, 3
        %v1398 = vrot.slane %v1316, 4
        %v1399 = vrot.slane %v1316, 5
        %v1400 = vrot.slane %v1316, 6
        %v1401 = vrot.slane %v1316, 7
        %v1402 = vrot.slane %v1317, 1
        %v1403 = vrot.slane %v1317, 2
        %v1404 = vrot.slane %v1317, 3
        %v1405 = vrot.slane %v1317, 4
        %v1406 = vrot.slane %v1317, 5
        %v1407 = vrot.slane %v1317, 6
        %v1408 = vrot.slane %v1317, 7
        %v1409 = vrot.slane %v1318, 1
        %v1410 = vrot.slane %v1318, 2
        %v1411 = vrot.slane %v1318, 3
        %v1412 = vrot.slane %v1318, 4
        %v1413 = vrot.slane %v1318, 5
        %v1414 = vrot.slane %v1318, 6
        %v1415 = vrot.slane %v1318, 7
        %v1416 = vrot.slane %v1319, 1
        %v1417 = vrot.slane %v1319, 2
        %v1418 = vrot.slane %v1319, 3
        %v1419 = vrot.slane %v1319, 4
        %v1420 = vrot.slane %v1319, 5
        %v1421 = vrot.slane %v1319, 6
        %v1422 = vrot.slane %v1319, 7
        %v1423 = vrot.slane %v1320, 1
        %v1424 = vrot.slane %v1320, 2
        %v1425 = vrot.slane %v1320, 3
        %v1426 = vrot.slane %v1320, 4
        %v1427 = vrot.slane %v1320, 5
        %v1428 = vrot.slane %v1320, 6
        %v1429 = vrot.slane %v1320, 7
        %v1430 = vrot.slane %v1321, 1
        %v1431 = vrot.slane %v1321, 2
        %v1432 = vrot.slane %v1321, 3
        %v1433 = vrot.slane %v1321, 4
        %v1434 = vrot.slane %v1321, 5
        %v1435 = vrot.slane %v1321, 6
        %v1436 = vrot.slane %v1321, 7
        %v1437 = vrot.slane %v1322, 1
        %v1438 = vrot.slane %v1322, 2
        %v1439 = vrot.slane %v1322, 3
        %v1440 = vrot.slane %v1322, 4
        %v1441 = vrot.slane %v1322, 5
        %v1442 = vrot.slane %v1322, 6
        %v1443 = vrot.slane %v1322, 7
        %v1444 = vrot.slane %v1323, 1
        %v1445 = vrot.slane %v1323, 2
        %v1446 = vrot.slane %v1323, 3
        %v1447 = vrot.slane %v1323, 4
        %v1448 = vrot.slane %v1323, 5
        %v1449 = vrot.slane %v1323, 6
        %v1450 = vrot.slane %v1323, 7
        %v1451 = vrot.slane %v1324, 1
        %v1452 = vrot.slane %v1324, 2
        %v1453 = vrot.slane %v1324, 3
        %v1454 = vrot.slane %v1324, 4
        %v1455 = vrot.slane %v1324, 5
        %v1456 = vrot.slane %v1324, 6
        %v1457 = vrot.slane %v1324, 7
        %v1458 = vrot.slane %v1325, 1
        %v1459 = vrot.slane %v1325, 2
        %v1460 = vrot.slane %v1325, 3
        %v1461 = vrot.slane %v1325, 4
        %v1462 = vrot.slane %v1325, 5
        %v1463 = vrot.slane %v1325, 6
        %v1464 = vrot.slane %v1325, 7
        %v1465 = vrot.slane %v1326, 1
        %v1466 = vrot.slane %v1326, 2
        %v1467 = vrot.slane %v1326, 3
        %v1468 = vrot.slane %v1326, 4
        %v1469 = vrot.slane %v1326, 5
        %v1470 = vrot.slane %v1326, 6
        %v1471 = vrot.slane %v1326, 7
        %v1472 = vrot.slane %v1327, 1
        %v1473 = vrot.slane %v1327, 2
        %v1474 = vrot.slane %v1327, 3
        %v1475 = vrot.slane %v1327, 4
        %v1476 = vrot.slane %v1327, 5
        %v1477 = vrot.slane %v1327, 6
        %v1478 = vrot.slane %v1327, 7
        %v1479 = vrot.slane %v1328, 1
        %v1480 = vrot.slane %v1328, 2
        %v1481 = vrot.slane %v1328, 3
        %v1482 = vrot.slane %v1328, 4
        %v1483 = vrot.slane %v1328, 5
        %v1484 = vrot.slane %v1328, 6
        %v1485 = vrot.slane %v1328, 7
        %v1486 = vrot.slane %v1329, 1
        %v1487 = vrot.slane %v1329, 2
        %v1488 = vrot.slane %v1329, 3
        %v1489 = vrot.slane %v1329, 4
        %v1490 = vrot.slane %v1329, 5
        %v1491 = vrot.slane %v1329, 6
        %v1492 = vrot.slane %v1329, 7
        %v1493 = vrot.slane 0, 1
        %v1494 = vrot.slane 0, 2
        %v1495 = vrot.slane 0, 3
        %v1496 = vrot.slane 0, 4
        %v1497 = vrot.slane 0, 5
        %v1498 = vrot.slane 0, 6
        %v1499 = vrot.slane 0, 7
        %1501 = vst [vmem:[#allocation1] ss:$4 sm:$0xff] %v1312
        %s1503 = scalar_lea.vmem [#allocation1], 1
        %1504 = vst [vmem:[%s1503] ss:$4 sm:$0xff] %v1367
        %s1506 = scalar_lea.vmem [#allocation1], 2
        %1507 = vst [vmem:[%s1506] ss:$4 sm:$0xff] %v1368
        %s1509 = scalar_lea.vmem [#allocation1], 3
        %1510 = vst [vmem:[%s1509] ss:$4 sm:$0xff] %v1369
        %s1512 = scalar_lea.vmem [#allocation1], 32
        %1513 = vst [vmem:[%s1512] ss:$4 sm:$0xff] %v1370
        %s1515 = scalar_lea.vmem [#allocation1], 33
        %1516 = vst [vmem:[%s1515] ss:$4 sm:$0xff] %v1371
        %s1518 = scalar_lea.vmem [#allocation1], 34
        %1519 = vst [vmem:[%s1518] ss:$4 sm:$0xff] %v1372
        %s1521 = scalar_lea.vmem [#allocation1], 35
        %1522 = vst [vmem:[%s1521] ss:$4 sm:$0xff] %v1373
        %v1523 = vld [vmem:[#allocation1] sm:$0xff]
        %v1524 = vld [vmem:[#allocation1 + $0x20] sm:$0xff]
        %1526 = vst [vmem:[#allocation1] ss:$4 sm:$0xff] %v1330
        %1528 = vst [vmem:[%s1503] ss:$4 sm:$0xff] %v1313
        %1530 = vst [vmem:[%s1506] ss:$4 sm:$0xff] %v1374
        %1532 = vst [vmem:[%s1509] ss:$4 sm:$0xff] %v1375
        %1534 = vst [vmem:[%s1512] ss:$4 sm:$0xff] %v1376
        %1536 = vst [vmem:[%s1515] ss:$4 sm:$0xff] %v1377
        %1538 = vst [vmem:[%s1518] ss:$4 sm:$0xff] %v1378
        %1540 = vst [vmem:[%s1521] ss:$4 sm:$0xff] %v1379
        %v1541 = vld [vmem:[#allocation1] sm:$0xff]
        %v1542 = vld [vmem:[#allocation1 + $0x20] sm:$0xff]
        %1544 = vst [vmem:[#allocation1] ss:$4 sm:$0xff] %v1380
        %1546 = vst [vmem:[%s1503] ss:$4 sm:$0xff] %v1331
        %1548 = vst [vmem:[%s1506] ss:$4 sm:$0xff] %v1314
        %1550 = vst [vmem:[%s1509] ss:$4 sm:$0xff] %v1381
        %1552 = vst [vmem:[%s1512] ss:$4 sm:$0xff] %v1382
        %1554 = vst [vmem:[%s1515] ss:$4 sm:$0xff] %v1383
        %1556 = vst [vmem:[%s1518] ss:$4 sm:$0xff] %v1384
        %1558 = vst [vmem:[%s1521] ss:$4 sm:$0xff] %v1385
        %v1559 = vld [vmem:[#allocation1] sm:$0xff]
        %v1560 = vld [vmem:[#allocation1 + $0x20] sm:$0xff]
        %1562 = vst [vmem:[#allocation1] ss:$4 sm:$0xff] %v1386
        %1564 = vst [vmem:[%s1503] ss:$4 sm:$0xff] %v1387
        %1566 = vst [vmem:[%s1506] ss:$4 sm:$0xff] %v1332
        %1568 = vst [vmem:[%s1509] ss:$4 sm:$0xff] %v1315
        %1570 = vst [vmem:[%s1512] ss:$4 sm:$0xff] %v1388
        %1572 = vst [vmem:[%s1515] ss:$4 sm:$0xff] %v1389
        %1574 = vst [vmem:[%s1518] ss:$4 sm:$0xff] %v1390
        %1576 = vst [vmem:[%s1521] ss:$4 sm:$0xff] %v1391
        %v1577 = vld [vmem:[#allocation1] sm:$0xff]
        %v1578 = vld [vmem:[#allocation1 + $0x20] sm:$0xff]
        %1580 = vst [vmem:[#allocation1] ss:$4 sm:$0xff] %v1392
        %1582 = vst [vmem:[%s1503] ss:$4 sm:$0xff] %v1393
        %1584 = vst [vmem:[%s1506] ss:$4 sm:$0xff] %v1394
        %1586 = vst [vmem:[%s1509] ss:$4 sm:$0xff] %v1333
        %1588 = vst [vmem:[%s1512] ss:$4 sm:$0xff] %v1316
        %1590 = vst [vmem:[%s1515] ss:$4 sm:$0xff] %v1395
        %1592 = vst [vmem:[%s1518] ss:$4 sm:$0xff] %v1396
        %1594 = vst [vmem:[%s1521] ss:$4 sm:$0xff] %v1397
        %v1595 = vld [vmem:[#allocation1] sm:$0xff]
        %v1596 = vld [vmem:[#allocation1 + $0x20] sm:$0xff]
        %1598 = vst [vmem:[#allocation1] ss:$4 sm:$0xff] %v1398
        %1600 = vst [vmem:[%s1503] ss:$4 sm:$0xff] %v1399
        %1602 = vst [vmem:[%s1506] ss:$4 sm:$0xff] %v1400
        %1604 = vst [vmem:[%s1509] ss:$4 sm:$0xff] %v1401
        %1606 = vst [vmem:[%s1512] ss:$4 sm:$0xff] %v1334
        %1608 = vst [vmem:[%s1515] ss:$4 sm:$0xff] %v1317
        %1610 = vst [vmem:[%s1518] ss:$4 sm:$0xff] %v1402
        %1612 = vst [vmem:[%s1521] ss:$4 sm:$0xff] %v1403
        %v1613 = vld [vmem:[#allocation1] sm:$0xff]
        %v1614 = vld [vmem:[#allocation1 + $0x20] sm:$0xff]
        %1616 = vst [vmem:[#allocation1] ss:$4 sm:$0xff] %v1404
        %1618 = vst [vmem:[%s1503] ss:$4 sm:$0xff] %v1405
        %1620 = vst [vmem:[%s1506] ss:$4 sm:$0xff] %v1406
        %1622 = vst [vmem:[%s1509] ss:$4 sm:$0xff] %v1407
        %1624 = vst [vmem:[%s1512] ss:$4 sm:$0xff] %v1408
        %1626 = vst [vmem:[%s1515] ss:$4 sm:$0xff] %v1335
        %1628 = vst [vmem:[%s1518] ss:$4 sm:$0xff] %v1318
        %1630 = vst [vmem:[%s1521] ss:$4 sm:$0xff] %v1409
        %v1631 = vld [vmem:[#allocation1] sm:$0xff]
        %v1632 = vld [vmem:[#allocation1 + $0x20] sm:$0xff]
        %1634 = vst [vmem:[#allocation1] ss:$4 sm:$0xff] %v1410
        %1636 = vst [vmem:[%s1503] ss:$4 sm:$0xff] %v1411
        %1638 = vst [vmem:[%s1506] ss:$4 sm:$0xff] %v1412
        %1640 = vst [vmem:[%s1509] ss:$4 sm:$0xff] %v1413
        %1642 = vst [vmem:[%s1512] ss:$4 sm:$0xff] %v1414
        %1644 = vst [vmem:[%s1515] ss:$4 sm:$0xff] %v1415
        %1646 = vst [vmem:[%s1518] ss:$4 sm:$0xff] %v1336
        %1648 = vst [vmem:[%s1521] ss:$4 sm:$0xff] %v1319
        %v1649 = vld [vmem:[#allocation1] sm:$0xff]
        %v1650 = vld [vmem:[#allocation1 + $0x20] sm:$0xff]
        %1652 = vst [vmem:[#allocation1] ss:$4 sm:$0xff] %v1416
        %1654 = vst [vmem:[%s1503] ss:$4 sm:$0xff] %v1417
        %1656 = vst [vmem:[%s1506] ss:$4 sm:$0xff] %v1418
        %1658 = vst [vmem:[%s1509] ss:$4 sm:$0xff] %v1419
        %1660 = vst [vmem:[%s1512] ss:$4 sm:$0xff] %v1420
        %1662 = vst [vmem:[%s1515] ss:$4 sm:$0xff] %v1421
        %1664 = vst [vmem:[%s1518] ss:$4 sm:$0xff] %v1422
        %1666 = vst [vmem:[%s1521] ss:$4 sm:$0xff] %v1337
        %v1667 = vld [vmem:[#allocation1] sm:$0xff]
        %v1668 = vld [vmem:[#allocation1 + $0x20] sm:$0xff]
        %1670 = vst [vmem:[#allocation1] ss:$4 sm:$0xff] %v1320
        %1672 = vst [vmem:[%s1503] ss:$4 sm:$0xff] %v1423
        %1674 = vst [vmem:[%s1506] ss:$4 sm:$0xff] %v1424
        %1676 = vst [vmem:[%s1509] ss:$4 sm:$0xff] %v1425
        %1678 = vst [vmem:[%s1512] ss:$4 sm:$0xff] %v1426
        %1680 = vst [vmem:[%s1515] ss:$4 sm:$0xff] %v1427
        %1682 = vst [vmem:[%s1518] ss:$4 sm:$0xff] %v1428
        %1684 = vst [vmem:[%s1521] ss:$4 sm:$0xff] %v1429
        %v1685 = vld [vmem:[#allocation1] sm:$0xff]
        %v1686 = vld [vmem:[#allocation1 + $0x20] sm:$0xff]
        %1688 = vst [vmem:[#allocation1] ss:$4 sm:$0xff] %v1338
        %1690 = vst [vmem:[%s1503] ss:$4 sm:$0xff] %v1321
        %1692 = vst [vmem:[%s1506] ss:$4 sm:$0xff] %v1430
        %1694 = vst [vmem:[%s1509] ss:$4 sm:$0xff] %v1431
        %1696 = vst [vmem:[%s1512] ss:$4 sm:$0xff] %v1432
        %1698 = vst [vmem:[%s1515] ss:$4 sm:$0xff] %v1433
        %1700 = vst [vmem:[%s1518] ss:$4 sm:$0xff] %v1434
        %1702 = vst [vmem:[%s1521] ss:$4 sm:$0xff] %v1435
        %v1703 = vld [vmem:[#allocation1] sm:$0xff]
        %v1704 = vld [vmem:[#allocation1 + $0x20] sm:$0xff]
        %1706 = vst [vmem:[#allocation1] ss:$4 sm:$0xff] %v1436
        %1708 = vst [vmem:[%s1503] ss:$4 sm:$0xff] %v1339
        %1710 = vst [vmem:[%s1506] ss:$4 sm:$0xff] %v1322
        %1712 = vst [vmem:[%s1509] ss:$4 sm:$0xff] %v1437
        %1714 = vst [vmem:[%s1512] ss:$4 sm:$0xff] %v1438
        %1716 = vst [vmem:[%s1515] ss:$4 sm:$0xff] %v1439
        %1718 = vst [vmem:[%s1518] ss:$4 sm:$0xff] %v1440
        %1720 = vst [vmem:[%s1521] ss:$4 sm:$0xff] %v1441
        %v1721 = vld [vmem:[#allocation1] sm:$0xff]
        %v1722 = vld [vmem:[#allocation1 + $0x20] sm:$0xff]
        %1724 = vst [vmem:[#allocation1] ss:$4 sm:$0xff] %v1442
        %1726 = vst [vmem:[%s1503] ss:$4 sm:$0xff] %v1443
        %1728 = vst [vmem:[%s1506] ss:$4 sm:$0xff] %v1340
        %1730 = vst [vmem:[%s1509] ss:$4 sm:$0xff] %v1323
        %1732 = vst [vmem:[%s1512] ss:$4 sm:$0xff] %v1444
        %1734 = vst [vmem:[%s1515] ss:$4 sm:$0xff] %v1445
        %1736 = vst [vmem:[%s1518] ss:$4 sm:$0xff] %v1446
        %1738 = vst [vmem:[%s1521] ss:$4 sm:$0xff] %v1447
        %v1739 = vld [vmem:[#allocation1] sm:$0xff]
        %v1740 = vld [vmem:[#allocation1 + $0x20] sm:$0xff]
        %1742 = vst [vmem:[#allocation1] ss:$4 sm:$0xff] %v1448
        %1744 = vst [vmem:[%s1503] ss:$4 sm:$0xff] %v1449
        %1746 = vst [vmem:[%s1506] ss:$4 sm:$0xff] %v1450
        %1748 = vst [vmem:[%s1509] ss:$4 sm:$0xff] %v1341
        %1750 = vst [vmem:[%s1512] ss:$4 sm:$0xff] %v1324
        %1752 = vst [vmem:[%s1515] ss:$4 sm:$0xff] %v1451
        %1754 = vst [vmem:[%s1518] ss:$4 sm:$0xff] %v1452
        %1756 = vst [vmem:[%s1521] ss:$4 sm:$0xff] %v1453
        %v1757 = vld [vmem:[#allocation1] sm:$0xff]
        %v1758 = vld [vmem:[#allocation1 + $0x20] sm:$0xff]
        %1760 = vst [vmem:[#allocation1] ss:$4 sm:$0xff] %v1454
        %1762 = vst [vmem:[%s1503] ss:$4 sm:$0xff] %v1455
        %1764 = vst [vmem:[%s1506] ss:$4 sm:$0xff] %v1456
        %1766 = vst [vmem:[%s1509] ss:$4 sm:$0xff] %v1457
        %1768 = vst [vmem:[%s1512] ss:$4 sm:$0xff] %v1342
        %1770 = vst [vmem:[%s1515] ss:$4 sm:$0xff] %v1325
        %1772 = vst [vmem:[%s1518] ss:$4 sm:$0xff] %v1458
        %1774 = vst [vmem:[%s1521] ss:$4 sm:$0xff] %v1459
        %v1775 = vld [vmem:[#allocation1] sm:$0xff]
        %v1776 = vld [vmem:[#allocation1 + $0x20] sm:$0xff]
        %1778 = vst [vmem:[#allocation1] ss:$4 sm:$0xff] %v1460
        %1780 = vst [vmem:[%s1503] ss:$4 sm:$0xff] %v1461
        %1782 = vst [vmem:[%s1506] ss:$4 sm:$0xff] %v1462
        %1784 = vst [vmem:[%s1509] ss:$4 sm:$0xff] %v1463
        %1786 = vst [vmem:[%s1512] ss:$4 sm:$0xff] %v1464
        %1788 = vst [vmem:[%s1515] ss:$4 sm:$0xff] %v1343
        %1790 = vst [vmem:[%s1518] ss:$4 sm:$0xff] %v1326
        %1792 = vst [vmem:[%s1521] ss:$4 sm:$0xff] %v1465
        %v1793 = vld [vmem:[#allocation1] sm:$0xff]
        %v1794 = vld [vmem:[#allocation1 + $0x20] sm:$0xff]
        %1796 = vst [vmem:[#allocation1] ss:$4 sm:$0xff] %v1466
        %1798 = vst [vmem:[%s1503] ss:$4 sm:$0xff] %v1467
        %1800 = vst [vmem:[%s1506] ss:$4 sm:$0xff] %v1468
        %1802 = vst [vmem:[%s1509] ss:$4 sm:$0xff] %v1469
        %1804 = vst [vmem:[%s1512] ss:$4 sm:$0xff] %v1470
        %1806 = vst [vmem:[%s1515] ss:$4 sm:$0xff] %v1471
        %1808 = vst [vmem:[%s1518] ss:$4 sm:$0xff] %v1344
        %1810 = vst [vmem:[%s1521] ss:$4 sm:$0xff] %v1327
        %v1811 = vld [vmem:[#allocation1] sm:$0xff]
        %v1812 = vld [vmem:[#allocation1 + $0x20] sm:$0xff]
        %1814 = vst [vmem:[#allocation1] ss:$4 sm:$0xff] %v1472
        %1816 = vst [vmem:[%s1503] ss:$4 sm:$0xff] %v1473
        %1818 = vst [vmem:[%s1506] ss:$4 sm:$0xff] %v1474
        %1820 = vst [vmem:[%s1509] ss:$4 sm:$0xff] %v1475
        %1822 = vst [vmem:[%s1512] ss:$4 sm:$0xff] %v1476
        %1824 = vst [vmem:[%s1515] ss:$4 sm:$0xff] %v1477
        %1826 = vst [vmem:[%s1518] ss:$4 sm:$0xff] %v1478
        %1828 = vst [vmem:[%s1521] ss:$4 sm:$0xff] %v1345
        %v1829 = vld [vmem:[#allocation1] sm:$0xff]
        %v1830 = vld [vmem:[#allocation1 + $0x20] sm:$0xff]
        %1832 = vst [vmem:[#allocation1] ss:$4 sm:$0xff] %v1328
        %1834 = vst [vmem:[%s1503] ss:$4 sm:$0xff] %v1479
        %1836 = vst [vmem:[%s1506] ss:$4 sm:$0xff] %v1480
        %1838 = vst [vmem:[%s1509] ss:$4 sm:$0xff] %v1481
        %1840 = vst [vmem:[%s1512] ss:$4 sm:$0xff] %v1482
        %1842 = vst [vmem:[%s1515] ss:$4 sm:$0xff] %v1483
        %1844 = vst [vmem:[%s1518] ss:$4 sm:$0xff] %v1484
        %1846 = vst [vmem:[%s1521] ss:$4 sm:$0xff] %v1485
        %v1847 = vld [vmem:[#allocation1] sm:$0xff]
        %v1848 = vld [vmem:[#allocation1 + $0x20] sm:$0xff]
        %1850 = vst [vmem:[#allocation1] ss:$4 sm:$0xff] %v1346
        %1852 = vst [vmem:[%s1503] ss:$4 sm:$0xff] %v1329
        %1854 = vst [vmem:[%s1506] ss:$4 sm:$0xff] %v1486
        %1856 = vst [vmem:[%s1509] ss:$4 sm:$0xff] %v1487
        %1858 = vst [vmem:[%s1512] ss:$4 sm:$0xff] %v1488
        %1860 = vst [vmem:[%s1515] ss:$4 sm:$0xff] %v1489
        %1862 = vst [vmem:[%s1518] ss:$4 sm:$0xff] %v1490
        %1864 = vst [vmem:[%s1521] ss:$4 sm:$0xff] %v1491
        %v1865 = vld [vmem:[#allocation1] sm:$0xff]
        %v1866 = vld [vmem:[#allocation1 + $0x20] sm:$0xff]
        %1868 = vst [vmem:[#allocation1] ss:$4 sm:$0xff] %v1492
        %1870 = vst [vmem:[%s1503] ss:$4 sm:$0xff] %v1347
        %1872 = vst [vmem:[%s1506] ss:$4 sm:$0xff] 0
        %1874 = vst [vmem:[%s1509] ss:$4 sm:$0xff] %v1493
        %1876 = vst [vmem:[%s1512] ss:$4 sm:$0xff] %v1494
        %1878 = vst [vmem:[%s1515] ss:$4 sm:$0xff] %v1495
        %1880 = vst [vmem:[%s1518] ss:$4 sm:$0xff] %v1496
        %1882 = vst [vmem:[%s1521] ss:$4 sm:$0xff] %v1497
        %v1883 = vld [vmem:[#allocation1] sm:$0xff]
        %v1884 = vld [vmem:[#allocation1 + $0x20] sm:$0xff]
        %1886 = vst [vmem:[#allocation1] ss:$4 sm:$0xff] %v1498
        %1888 = vst [vmem:[%s1503] ss:$4 sm:$0xff] %v1499
        %1889 = vst [vmem:[%s1506] ss:$4 sm:$0xff] 0
        %v1890 = vld [vmem:[#allocation1] sm:$0xff]
        %1934 = vst [vmem:[#allocation2] sm:$0xf] %v1523
        %1935 = vst [vmem:[#allocation2 + $0x4] sm:$0xf] %v1524
        %1936 = vst [vmem:[#allocation2 + $0x8] sm:$0xf] %v1541
        %1937 = vst [vmem:[#allocation2 + $0xc] sm:$0xf] %v1542
        %1938 = vst [vmem:[#allocation2 + $0x10] sm:$0xf] %v1559
        %1939 = vst [vmem:[#allocation2 + $0x14] sm:$0xf] %v1560
        %1940 = vst [vmem:[#allocation2 + $0x18] sm:$0xf] %v1577
        %1941 = vst [vmem:[#allocation2 + $0x1c] sm:$0xf] %v1578
        %1942 = vst [vmem:[#allocation2 + $0x20] sm:$0xf] %v1595
        %1943 = vst [vmem:[#allocation2 + $0x24] sm:$0xf] %v1596
        %1944 = vst [vmem:[#allocation2 + $0x28] sm:$0xf] %v1613
        %1945 = vst [vmem:[#allocation2 + $0x2c] sm:$0xf] %v1614
        %1946 = vst [vmem:[#allocation2 + $0x30] sm:$0xf] %v1631
        %1947 = vst [vmem:[#allocation2 + $0x34] sm:$0xf] %v1632
        %1948 = vst [vmem:[#allocation2 + $0x38] sm:$0xf] %v1649
        %1949 = vst [vmem:[#allocation2 + $0x3c] sm:$0xf] %v1650
        %1950 = vst [vmem:[#allocation2 + $0x40] sm:$0xf] %v1667
        %1951 = vst [vmem:[#allocation2 + $0x44] sm:$0xf] %v1668
        %1952 = vst [vmem:[#allocation2 + $0x48] sm:$0xf] %v1685
        %1953 = vst [vmem:[#allocation2 + $0x4c] sm:$0xf] %v1686
        %1954 = vst [vmem:[#allocation2 + $0x50] sm:$0xf] %v1703
        %1955 = vst [vmem:[#allocation2 + $0x54] sm:$0xf] %v1704
        %1956 = vst [vmem:[#allocation2 + $0x58] sm:$0xf] %v1721
        %1957 = vst [vmem:[#allocation2 + $0x5c] sm:$0xf] %v1722
        %1958 = vst [vmem:[#allocation2 + $0x60] sm:$0xf] %v1739
        %1959 = vst [vmem:[#allocation2 + $0x64] sm:$0xf] %v1740
        %1960 = vst [vmem:[#allocation2 + $0x68] sm:$0xf] %v1757
        %1961 = vst [vmem:[#allocation2 + $0x6c] sm:$0xf] %v1758
        %1962 = vst [vmem:[#allocation2 + $0x70] sm:$0xf] %v1775
        %1963 = vst [vmem:[#allocation2 + $0x74] sm:$0xf] %v1776
        %1964 = vst [vmem:[#allocation2 + $0x78] sm:$0xf] %v1793
        %1965 = vst [vmem:[#allocation2 + $0x7c] sm:$0xf] %v1794
        %1966 = vst [vmem:[#allocation2 + $0x80] sm:$0xf] %v1811
        %1967 = vst [vmem:[#allocation2 + $0x84] sm:$0xf] %v1812
        %1968 = vst [vmem:[#allocation2 + $0x88] sm:$0xf] %v1829
        %1969 = vst [vmem:[#allocation2 + $0x8c] sm:$0xf] %v1830
        %1970 = vst [vmem:[#allocation2 + $0x90] sm:$0xf] %v1847
        %1971 = vst [vmem:[#allocation2 + $0x94] sm:$0xf] %v1848
        %1972 = vst [vmem:[#allocation2 + $0x98] sm:$0xf] %v1865
        %1973 = vst [vmem:[#allocation2 + $0x9c] sm:$0xf] %v1866
        %1974 = vst [vmem:[#allocation2 + $0xa0] sm:$0xf] %v1883
        %1975 = vst [vmem:[#allocation2 + $0xa4] sm:$0xf] %v1884
        %1976 = vst [vmem:[#allocation2 + $0xa8] sm:$0x7] %v1890
        %v1977 = vld [vmem:[#allocation2] sm:$0xf]
        %v1978 = vld [vmem:[#allocation2 + $0x4] sm:$0xf]
        %v1979 = vld [vmem:[#allocation2 + $0x8] sm:$0xf]
        %v1980 = vld [vmem:[#allocation2 + $0xc] sm:$0xf]
        %v1981 = vld [vmem:[#allocation2 + $0x10] sm:$0xf]
        %v1982 = vld [vmem:[#allocation2 + $0x14] sm:$0xf]
        %v1983 = vld [vmem:[#allocation2 + $0x18] sm:$0xf]
        %v1984 = vld [vmem:[#allocation2 + $0x1c] sm:$0xf]
        %v1985 = vld [vmem:[#allocation2 + $0x20] sm:$0xf]
        %v1986 = vld [vmem:[#allocation2 + $0x24] sm:$0xf]
        %v1987 = vld [vmem:[#allocation2 + $0x28] sm:$0xf]
        %v1988 = vld [vmem:[#allocation2 + $0x2c] sm:$0xf]
        %v1989 = vld [vmem:[#allocation2 + $0x30] sm:$0xf]
        %v1990 = vld [vmem:[#allocation2 + $0x34] sm:$0xf]
        %v1991 = vld [vmem:[#allocation2 + $0x38] sm:$0xf]
        %v1992 = vld [vmem:[#allocation2 + $0x3c] sm:$0xf]
        %v1993 = vld [vmem:[#allocation2 + $0x40] sm:$0xf]
        %v1994 = vld [vmem:[#allocation2 + $0x44] sm:$0xf]
        %v1995 = vld [vmem:[#allocation2 + $0x48] sm:$0xf]
        %v1996 = vld [vmem:[#allocation2 + $0x4c] sm:$0xf]
        %v1997 = vld [vmem:[#allocation2 + $0x50] sm:$0xf]
        %v1998 = vld [vmem:[#allocation2 + $0x54] sm:$0xf]
        %v1999 = vld [vmem:[#allocation2 + $0x58] sm:$0xf]
        %v2000 = vld [vmem:[#allocation2 + $0x5c] sm:$0xf]
        %v2001 = vld [vmem:[#allocation2 + $0x60] sm:$0xf]
        %v2002 = vld [vmem:[#allocation2 + $0x64] sm:$0xf]
        %v2003 = vld [vmem:[#allocation2 + $0x68] sm:$0xf]
        %v2004 = vld [vmem:[#allocation2 + $0x6c] sm:$0xf]
        %v2005 = vld [vmem:[#allocation2 + $0x70] sm:$0xf]
        %v2006 = vld [vmem:[#allocation2 + $0x74] sm:$0xf]
        %v2007 = vld [vmem:[#allocation2 + $0x78] sm:$0xf]
        %v2008 = vld [vmem:[#allocation2 + $0x7c] sm:$0xf]
        %v2009 = vld [vmem:[#allocation2 + $0x80] sm:$0xf]
        %v2010 = vld [vmem:[#allocation2 + $0x84] sm:$0xf]
        %v2011 = vld [vmem:[#allocation2 + $0x88] sm:$0xf]
        %v2012 = vld [vmem:[#allocation2 + $0x8c] sm:$0xf]
        %v2013 = vld [vmem:[#allocation9] sm:$0xf]
        %v2014 = vld [vmem:[#allocation9 + $0x4] sm:$0xf]
        %v2015 = vld [vmem:[#allocation9 + $0x8] sm:$0xf]
        %v2016 = vld [vmem:[#allocation9 + $0xc] sm:$0xf]
        %v2017 = vld [vmem:[#allocation9 + $0x10] sm:$0xf]
        %v2018 = vld [vmem:[#allocation9 + $0x14] sm:$0xf]
        %v2019 = vld [vmem:[#allocation9 + $0x18] sm:$0xf]
        %v2020 = vld [vmem:[#allocation9 + $0x1c] sm:$0xf]
        %v2021 = vld [vmem:[#allocation9 + $0x20] sm:$0xf]
        %v2022 = vld [vmem:[#allocation9 + $0x24] sm:$0xf]
        %v2023 = vld [vmem:[#allocation9 + $0x28] sm:$0xf]
        %v2024 = vld [vmem:[#allocation9 + $0x2c] sm:$0xf]
        %v2025 = vld [vmem:[#allocation9 + $0x30] sm:$0xf]
        %v2026 = vld [vmem:[#allocation9 + $0x34] sm:$0xf]
        %v2027 = vld [vmem:[#allocation9 + $0x38] sm:$0xf]
        %v2028 = vld [vmem:[#allocation9 + $0x3c] sm:$0xf]
        %v2029 = vld [vmem:[#allocation2 + $0x90] sm:$0x1]
        %s2030 = scalar_lea.vmem [#allocation9], 64
        %v2031 = vld [vmem:[%s2030] sm:$0xf]
        %v2032 = vld [vmem:[%s2030 + $0x4] sm:$0xf]
        %v2033 = vld [vmem:[%s2030 + $0x8] sm:$0xf]
        %v2034 = vld [vmem:[%s2030 + $0xc] sm:$0xf]
        %v2035 = vld [vmem:[%s2030 + $0x10] sm:$0xf]
        %v2036 = vld [vmem:[%s2030 + $0x14] sm:$0xf]
        %v2037 = vld [vmem:[%s2030 + $0x18] sm:$0xf]
        %v2038 = vld [vmem:[%s2030 + $0x1c] sm:$0xf]
        %v2039 = vld [vmem:[%s2030 + $0x20] sm:$0xf]
        %v2040 = vld [vmem:[%s2030 + $0x24] sm:$0xf]
        %v2041 = vld [vmem:[%s2030 + $0x28] sm:$0xf]
        %v2042 = vld [vmem:[%s2030 + $0x2c] sm:$0xf]
        %v2043 = vld [vmem:[%s2030 + $0x30] sm:$0xf]
        %v2044 = vld [vmem:[%s2030 + $0x34] sm:$0xf]
        %v2045 = vld [vmem:[%s2030 + $0x38] sm:$0xf]
        %v2046 = vld [vmem:[%s2030 + $0x3c] sm:$0xf]
        %v2084 = vunpack.c.l.b16 %v1977
        %v2085 = vunpack.c.l.b16 %v1978
        %v2086 = vunpack.c.l.b16 %v1979
        %v2087 = vunpack.c.l.b16 %v1980
        %v2088 = vunpack.c.l.b16 %v1981
        %v2089 = vunpack.c.l.b16 %v1982
        %v2090 = vunpack.c.l.b16 %v1983
        %v2091 = vunpack.c.l.b16 %v1984
        %v2092 = vunpack.c.l.b16 %v1985
        %v2093 = vunpack.c.l.b16 %v1986
        %v2094 = vunpack.c.l.b16 %v1987
        %v2095 = vunpack.c.l.b16 %v1988
        %v2096 = vunpack.c.l.b16 %v1989
        %v2097 = vunpack.c.l.b16 %v1990
        %v2098 = vunpack.c.l.b16 %v1991
        %v2099 = vunpack.c.l.b16 %v1992
        %v2100 = vunpack.c.l.b16 %v1993
        %v2101 = vunpack.c.l.b16 %v1994
        %v2102 = vunpack.c.l.b16 %v1995
        %v2103 = vunpack.c.l.b16 %v1996
        %v2104 = vunpack.c.l.b16 %v1997
        %v2105 = vunpack.c.l.b16 %v1998
        %v2106 = vunpack.c.l.b16 %v1999
        %v2107 = vunpack.c.l.b16 %v2000
        %v2108 = vunpack.c.l.b16 %v2001
        %v2109 = vunpack.c.l.b16 %v2002
        %v2110 = vunpack.c.l.b16 %v2003
        %v2111 = vunpack.c.l.b16 %v2004
        %v2112 = vunpack.c.l.b16 %v2005
        %v2113 = vunpack.c.l.b16 %v2006
        %v2114 = vunpack.c.l.b16 %v2007
        %v2115 = vunpack.c.l.b16 %v2008
        %v2116 = vunpack.c.l.b16 %v2009
        %v2117 = vunpack.c.l.b16 %v2010
        %v2118 = vunpack.c.l.b16 %v2011
        %v2119 = vunpack.c.l.b16 %v2012
        %v2120 = vunpack.c.l.b16 %v2029
        %v2121 = vpack.c.b16 %v2085, %v2084
        %v2122 = vpack.c.b16 %v2087, %v2086
        %v2123 = vpack.c.b16 %v2089, %v2088
        %v2124 = vpack.c.b16 %v2091, %v2090
        %v2125 = vpack.c.b16 %v2093, %v2092
        %v2126 = vpack.c.b16 %v2095, %v2094
        %v2127 = vpack.c.b16 %v2097, %v2096
        %v2128 = vpack.c.b16 %v2099, %v2098
        %v2129 = vpack.c.b16 %v2101, %v2100
        %v2130 = vpack.c.b16 %v2103, %v2102
        %v2131 = vpack.c.b16 %v2105, %v2104
        %v2132 = vpack.c.b16 %v2107, %v2106
        %v2133 = vpack.c.b16 %v2109, %v2108
        %v2134 = vpack.c.b16 %v2111, %v2110
        %v2135 = vpack.c.b16 %v2113, %v2112
        %v2136 = vpack.c.b16 %v2115, %v2114
        %v2137 = vpack.c.b16 %v2117, %v2116
        %v2138 = vpack.c.b16 %v2119, %v2118
        %v2139 = vpack.c.b16 %v2120, %v2120
        %vm2140 = vsmask.f32 7424
        %v2142 = vshrl.u32 %v2121, 16
        %v2144 = vshll.u32 %v2121, 16
        %v2146 = vrot.slane %v2144, 1
        %v2147 = vor.u32 %v2142, %v2146
        %v2149 = vshll.u32 %v2122, 16
        %v2151 = vrot.slane %v2149, 1
        %v2152 = vsel %vm2140, %v2147, %v2151
        %v2153 = vshrl.u32 %v2122, 16
        %v2155 = vor.u32 %v2153, %v2151
        %v2157 = vshll.u32 %v2123, 16
        %v2159 = vrot.slane %v2157, 1
        %v2160 = vsel %vm2140, %v2155, %v2159
        %v2161 = vshrl.u32 %v2123, 16
        %v2163 = vor.u32 %v2161, %v2159
        %v2165 = vshll.u32 %v2124, 16
        %v2167 = vrot.slane %v2165, 1
        %v2168 = vsel %vm2140, %v2163, %v2167
        %v2169 = vshrl.u32 %v2124, 16
        %v2171 = vor.u32 %v2169, %v2167
        %v2173 = vshll.u32 %v2125, 16
        %v2175 = vrot.slane %v2173, 1
        %v2176 = vsel %vm2140, %v2171, %v2175
        %v2177 = vshrl.u32 %v2125, 16
        %v2179 = vor.u32 %v2177, %v2175
        %v2181 = vshll.u32 %v2126, 16
        %v2183 = vrot.slane %v2181, 1
        %v2184 = vsel %vm2140, %v2179, %v2183
        %v2185 = vshrl.u32 %v2126, 16
        %v2187 = vor.u32 %v2185, %v2183
        %v2189 = vshll.u32 %v2127, 16
        %v2191 = vrot.slane %v2189, 1
        %v2192 = vsel %vm2140, %v2187, %v2191
        %v2193 = vshrl.u32 %v2127, 16
        %v2195 = vor.u32 %v2193, %v2191
        %v2197 = vshll.u32 %v2128, 16
        %v2199 = vrot.slane %v2197, 1
        %v2200 = vsel %vm2140, %v2195, %v2199
        %v2201 = vshrl.u32 %v2128, 16
        %v2203 = vor.u32 %v2201, %v2199
        %v2205 = vshll.u32 %v2129, 16
        %v2207 = vrot.slane %v2205, 1
        %v2208 = vsel %vm2140, %v2203, %v2207
        %v2209 = vshrl.u32 %v2129, 16
        %v2211 = vor.u32 %v2209, %v2207
        %v2213 = vshll.u32 %v2130, 16
        %v2215 = vrot.slane %v2213, 1
        %v2216 = vsel %vm2140, %v2211, %v2215
        %v2217 = vshrl.u32 %v2130, 16
        %v2219 = vor.u32 %v2217, %v2215
        %v2221 = vshll.u32 %v2131, 16
        %v2223 = vrot.slane %v2221, 1
        %v2224 = vsel %vm2140, %v2219, %v2223
        %v2225 = vshrl.u32 %v2131, 16
        %v2227 = vor.u32 %v2225, %v2223
        %v2229 = vshll.u32 %v2132, 16
        %v2231 = vrot.slane %v2229, 1
        %v2232 = vsel %vm2140, %v2227, %v2231
        %v2233 = vshrl.u32 %v2132, 16
        %v2235 = vor.u32 %v2233, %v2231
        %v2237 = vshll.u32 %v2133, 16
        %v2239 = vrot.slane %v2237, 1
        %v2240 = vsel %vm2140, %v2235, %v2239
        %v2241 = vshrl.u32 %v2133, 16
        %v2243 = vor.u32 %v2241, %v2239
        %v2245 = vshll.u32 %v2134, 16
        %v2247 = vrot.slane %v2245, 1
        %v2248 = vsel %vm2140, %v2243, %v2247
        %v2249 = vshrl.u32 %v2134, 16
        %v2251 = vor.u32 %v2249, %v2247
        %v2253 = vshll.u32 %v2135, 16
        %v2255 = vrot.slane %v2253, 1
        %v2256 = vsel %vm2140, %v2251, %v2255
        %v2257 = vshrl.u32 %v2135, 16
        %v2259 = vor.u32 %v2257, %v2255
        %v2261 = vshll.u32 %v2136, 16
        %v2263 = vrot.slane %v2261, 1
        %v2264 = vsel %vm2140, %v2259, %v2263
        %v2265 = vshrl.u32 %v2136, 16
        %v2267 = vor.u32 %v2265, %v2263
        %v2269 = vshll.u32 %v2137, 16
        %v2271 = vrot.slane %v2269, 1
        %v2272 = vsel %vm2140, %v2267, %v2271
        %v2273 = vshrl.u32 %v2137, 16
        %v2275 = vor.u32 %v2273, %v2271
        %v2277 = vshll.u32 %v2138, 16
        %v2279 = vrot.slane %v2277, 1
        %v2280 = vsel %vm2140, %v2275, %v2279
        %v2281 = vshrl.u32 %v2138, 16
        %v2283 = vor.u32 %v2281, %v2279
        %v2285 = vshll.u32 %v2139, 16
        %v2287 = vrot.slane %v2285, 1
        %v2288 = vsel %vm2140, %v2283, %v2287
        %v2323 = vunpack.c.l.b16 %v2031
        %v2324 = vunpack.c.l.b16 %v2032
        %v2325 = vunpack.c.l.b16 %v2033
        %v2326 = vunpack.c.l.b16 %v2034
        %v2327 = vunpack.c.l.b16 %v2035
        %v2328 = vunpack.c.l.b16 %v2036
        %v2329 = vunpack.c.l.b16 %v2037
        %v2330 = vunpack.c.l.b16 %v2038
        %v2331 = vunpack.c.l.b16 %v2039
        %v2332 = vunpack.c.l.b16 %v2040
        %v2333 = vunpack.c.l.b16 %v2041
        %v2334 = vunpack.c.l.b16 %v2042
        %v2335 = vunpack.c.l.b16 %v2043
        %v2336 = vunpack.c.l.b16 %v2044
        %v2337 = vunpack.c.l.b16 %v2045
        %v2338 = vunpack.c.l.b16 %v2046
        %v2339 = vpack.c.b16 %v2324, %v2323
        %v2340 = vpack.c.b16 %v2326, %v2325
        %v2341 = vpack.c.b16 %v2328, %v2327
        %v2342 = vpack.c.b16 %v2330, %v2329
        %v2343 = vpack.c.b16 %v2332, %v2331
        %v2344 = vpack.c.b16 %v2334, %v2333
        %v2345 = vpack.c.b16 %v2336, %v2335
        %v2346 = vpack.c.b16 %v2338, %v2337
        %2355 = vmatpush.bf16.msra.mxu0 %v2346
        %2356 = vmatpush.bf16.msra.mxu0 %v2345
        %2357 = vmatpush.bf16.msra.mxu0 %v2344
        %2358 = vmatpush.bf16.msra.mxu0 %v2343
        %2359 = vmatpush.bf16.msra.mxu0 %v2342
        %2360 = vmatpush.bf16.msra.mxu0 %v2341
        %2361 = vmatpush.bf16.msra.mxu0 %v2340
        %2362 = vmatpush.bf16.msra.mxu0 %v2339
        %2363 = vmatmul.bf16.gmra.mxu0 %v2152
        %v2364 = vpop.f32.mrf.mxu0
        %v2365 = vadd.f32 0.0, %v2364
        %v2366 = vpop.f32.mrf.mxu0
        %v2367 = vadd.f32 0.0, %v2366
        %2368 = vmatmul.bf16.gmra.mxu0 %v2160
        %v2369 = vpop.f32.mrf.mxu0
        %v2370 = vadd.f32 0.0, %v2369
        %v2371 = vpop.f32.mrf.mxu0
        %v2372 = vadd.f32 0.0, %v2371
        %2373 = vmatmul.bf16.gmra.mxu0 %v2168
        %v2374 = vpop.f32.mrf.mxu0
        %v2375 = vadd.f32 0.0, %v2374
        %v2376 = vpop.f32.mrf.mxu0
        %v2377 = vadd.f32 0.0, %v2376
        %2378 = vmatmul.bf16.gmra.mxu0 %v2176
        %v2379 = vpop.f32.mrf.mxu0
        %v2380 = vadd.f32 0.0, %v2379
        %v2381 = vpop.f32.mrf.mxu0
        %v2382 = vadd.f32 0.0, %v2381
        %2383 = vmatmul.bf16.gmra.mxu0 %v2184
        %v2384 = vpop.f32.mrf.mxu0
        %v2385 = vadd.f32 0.0, %v2384
        %v2386 = vpop.f32.mrf.mxu0
        %v2387 = vadd.f32 0.0, %v2386
        %2388 = vmatmul.bf16.gmra.mxu0 %v2192
        %v2389 = vpop.f32.mrf.mxu0
        %v2390 = vadd.f32 0.0, %v2389
        %v2391 = vpop.f32.mrf.mxu0
        %v2392 = vadd.f32 0.0, %v2391
        %2393 = vmatmul.bf16.gmra.mxu0 %v2200
        %v2394 = vpop.f32.mrf.mxu0
        %v2395 = vadd.f32 0.0, %v2394
        %v2396 = vpop.f32.mrf.mxu0
        %v2397 = vadd.f32 0.0, %v2396
        %2398 = vmatmul.bf16.gmra.mxu0 %v2208
        %v2399 = vpop.f32.mrf.mxu0
        %v2400 = vadd.f32 0.0, %v2399
        %v2401 = vpop.f32.mrf.mxu0
        %v2402 = vadd.f32 0.0, %v2401
        %2403 = vmatmul.bf16.gmra.mxu0 %v2216
        %v2404 = vpop.f32.mrf.mxu0
        %v2405 = vadd.f32 0.0, %v2404
        %v2406 = vpop.f32.mrf.mxu0
        %v2407 = vadd.f32 0.0, %v2406
        %2408 = vmatmul.bf16.gmra.mxu0 %v2224
        %v2409 = vpop.f32.mrf.mxu0
        %v2410 = vadd.f32 0.0, %v2409
        %v2411 = vpop.f32.mrf.mxu0
        %v2412 = vadd.f32 0.0, %v2411
        %2413 = vmatmul.bf16.gmra.mxu0 %v2232
        %v2414 = vpop.f32.mrf.mxu0
        %v2415 = vadd.f32 0.0, %v2414
        %v2416 = vpop.f32.mrf.mxu0
        %v2417 = vadd.f32 0.0, %v2416
        %2418 = vmatmul.bf16.gmra.mxu0 %v2240
        %v2419 = vpop.f32.mrf.mxu0
        %v2420 = vadd.f32 0.0, %v2419
        %v2421 = vpop.f32.mrf.mxu0
        %v2422 = vadd.f32 0.0, %v2421
        %2423 = vmatmul.bf16.gmra.mxu0 %v2248
        %v2424 = vpop.f32.mrf.mxu0
        %v2425 = vadd.f32 0.0, %v2424
        %v2426 = vpop.f32.mrf.mxu0
        %v2427 = vadd.f32 0.0, %v2426
        %2428 = vmatmul.bf16.gmra.mxu0 %v2256
        %v2429 = vpop.f32.mrf.mxu0
        %v2430 = vadd.f32 0.0, %v2429
        %v2431 = vpop.f32.mrf.mxu0
        %v2432 = vadd.f32 0.0, %v2431
        %2433 = vmatmul.bf16.gmra.mxu0 %v2264
        %v2434 = vpop.f32.mrf.mxu0
        %v2435 = vadd.f32 0.0, %v2434
        %v2436 = vpop.f32.mrf.mxu0
        %v2437 = vadd.f32 0.0, %v2436
        %2438 = vmatmul.bf16.gmra.mxu0 %v2272
        %v2439 = vpop.f32.mrf.mxu0
        %v2440 = vadd.f32 0.0, %v2439
        %v2441 = vpop.f32.mrf.mxu0
        %v2442 = vadd.f32 0.0, %v2441
        %2443 = vmatmul.bf16.gmra.mxu0 %v2280
        %v2444 = vpop.f32.mrf.mxu0
        %v2445 = vadd.f32 0.0, %v2444
        %v2446 = vpop.f32.mrf.mxu0
        %v2447 = vadd.f32 0.0, %v2446
        %2448 = vmatmul.bf16.gmra.mxu0 %v2288
        %v2449 = vpop.f32.mrf.mxu0
        %v2450 = vadd.f32 0.0, %v2449
        %v2451 = vpop.f32.mrf.mxu0
        %v2452 = vadd.f32 0.0, %v2451
        %2453 = vdwg.mxu0
        %v2488 = vunpack.c.l.b16 %v2013
        %v2489 = vunpack.c.l.b16 %v2014
        %v2490 = vunpack.c.l.b16 %v2015
        %v2491 = vunpack.c.l.b16 %v2016
        %v2492 = vunpack.c.l.b16 %v2017
        %v2493 = vunpack.c.l.b16 %v2018
        %v2494 = vunpack.c.l.b16 %v2019
        %v2495 = vunpack.c.l.b16 %v2020
        %v2496 = vunpack.c.l.b16 %v2021
        %v2497 = vunpack.c.l.b16 %v2022
        %v2498 = vunpack.c.l.b16 %v2023
        %v2499 = vunpack.c.l.b16 %v2024
        %v2500 = vunpack.c.l.b16 %v2025
        %v2501 = vunpack.c.l.b16 %v2026
        %v2502 = vunpack.c.l.b16 %v2027
        %v2503 = vunpack.c.l.b16 %v2028
        %v2504 = vpack.c.b16 %v2489, %v2488
        %v2505 = vpack.c.b16 %v2491, %v2490
        %v2506 = vpack.c.b16 %v2493, %v2492
        %v2507 = vpack.c.b16 %v2495, %v2494
        %v2508 = vpack.c.b16 %v2497, %v2496
        %v2509 = vpack.c.b16 %v2499, %v2498
        %v2510 = vpack.c.b16 %v2501, %v2500
        %v2511 = vpack.c.b16 %v2503, %v2502
        %2520 = vmatpush.bf16.msra.mxu0 %v2511
        %2521 = vmatpush.bf16.msra.mxu0 %v2510
        %2522 = vmatpush.bf16.msra.mxu0 %v2509
        %2523 = vmatpush.bf16.msra.mxu0 %v2508
        %2524 = vmatpush.bf16.msra.mxu0 %v2507
        %2525 = vmatpush.bf16.msra.mxu0 %v2506
        %2526 = vmatpush.bf16.msra.mxu0 %v2505
        %2527 = vmatpush.bf16.msra.mxu0 %v2504
        %2528 = vmatmul.bf16.gmra.mxu0 %v2121
        %v2529 = vpop.f32.mrf.mxu0
        %v2530 = vadd.f32 %v2365, %v2529
        %v2531 = vpop.f32.mrf.mxu0
        %v2532 = vadd.f32 %v2367, %v2531
        %2533 = vmatmul.bf16.gmra.mxu0 %v2122
        %v2534 = vpop.f32.mrf.mxu0
        %v2535 = vadd.f32 %v2370, %v2534
        %v2536 = vpop.f32.mrf.mxu0
        %v2537 = vadd.f32 %v2372, %v2536
        %2538 = vmatmul.bf16.gmra.mxu0 %v2123
        %v2539 = vpop.f32.mrf.mxu0
        %v2540 = vadd.f32 %v2375, %v2539
        %v2541 = vpop.f32.mrf.mxu0
        %v2542 = vadd.f32 %v2377, %v2541
        %2543 = vmatmul.bf16.gmra.mxu0 %v2124
        %v2544 = vpop.f32.mrf.mxu0
        %v2545 = vadd.f32 %v2380, %v2544
        %v2546 = vpop.f32.mrf.mxu0
        %v2547 = vadd.f32 %v2382, %v2546
        %2548 = vmatmul.bf16.gmra.mxu0 %v2125
        %v2549 = vpop.f32.mrf.mxu0
        %v2550 = vadd.f32 %v2385, %v2549
        %v2551 = vpop.f32.mrf.mxu0
        %v2552 = vadd.f32 %v2387, %v2551
        %2553 = vmatmul.bf16.gmra.mxu0 %v2126
        %v2554 = vpop.f32.mrf.mxu0
        %v2555 = vadd.f32 %v2390, %v2554
        %v2556 = vpop.f32.mrf.mxu0
        %v2557 = vadd.f32 %v2392, %v2556
        %2558 = vmatmul.bf16.gmra.mxu0 %v2127
        %v2559 = vpop.f32.mrf.mxu0
        %v2560 = vadd.f32 %v2395, %v2559
        %v2561 = vpop.f32.mrf.mxu0
        %v2562 = vadd.f32 %v2397, %v2561
        %2563 = vmatmul.bf16.gmra.mxu0 %v2128
        %v2564 = vpop.f32.mrf.mxu0
        %v2565 = vadd.f32 %v2400, %v2564
        %v2566 = vpop.f32.mrf.mxu0
        %v2567 = vadd.f32 %v2402, %v2566
        %2568 = vmatmul.bf16.gmra.mxu0 %v2129
        %v2569 = vpop.f32.mrf.mxu0
        %v2570 = vadd.f32 %v2405, %v2569
        %v2571 = vpop.f32.mrf.mxu0
        %v2572 = vadd.f32 %v2407, %v2571
        %2573 = vmatmul.bf16.gmra.mxu0 %v2130
        %v2574 = vpop.f32.mrf.mxu0
        %v2575 = vadd.f32 %v2410, %v2574
        %v2576 = vpop.f32.mrf.mxu0
        %v2577 = vadd.f32 %v2412, %v2576
        %2578 = vmatmul.bf16.gmra.mxu0 %v2131
        %v2579 = vpop.f32.mrf.mxu0
        %v2580 = vadd.f32 %v2415, %v2579
        %v2581 = vpop.f32.mrf.mxu0
        %v2582 = vadd.f32 %v2417, %v2581
        %2583 = vmatmul.bf16.gmra.mxu0 %v2132
        %v2584 = vpop.f32.mrf.mxu0
        %v2585 = vadd.f32 %v2420, %v2584
        %v2586 = vpop.f32.mrf.mxu0
        %v2587 = vadd.f32 %v2422, %v2586
        %2588 = vmatmul.bf16.gmra.mxu0 %v2133
        %v2589 = vpop.f32.mrf.mxu0
        %v2590 = vadd.f32 %v2425, %v2589
        %v2591 = vpop.f32.mrf.mxu0
        %v2592 = vadd.f32 %v2427, %v2591
        %2593 = vmatmul.bf16.gmra.mxu0 %v2134
        %v2594 = vpop.f32.mrf.mxu0
        %v2595 = vadd.f32 %v2430, %v2594
        %v2596 = vpop.f32.mrf.mxu0
        %v2597 = vadd.f32 %v2432, %v2596
        %2598 = vmatmul.bf16.gmra.mxu0 %v2135
        %v2599 = vpop.f32.mrf.mxu0
        %v2600 = vadd.f32 %v2435, %v2599
        %v2601 = vpop.f32.mrf.mxu0
        %v2602 = vadd.f32 %v2437, %v2601
        %2603 = vmatmul.bf16.gmra.mxu0 %v2136
        %v2604 = vpop.f32.mrf.mxu0
        %v2605 = vadd.f32 %v2440, %v2604
        %v2606 = vpop.f32.mrf.mxu0
        %v2607 = vadd.f32 %v2442, %v2606
        %2608 = vmatmul.bf16.gmra.mxu0 %v2137
        %v2609 = vpop.f32.mrf.mxu0
        %v2610 = vadd.f32 %v2445, %v2609
        %v2611 = vpop.f32.mrf.mxu0
        %v2612 = vadd.f32 %v2447, %v2611
        %2613 = vmatmul.bf16.gmra.mxu0 %v2138
        %v2614 = vpop.f32.mrf.mxu0
        %v2615 = vadd.f32 %v2450, %v2614
        %v2616 = vpop.f32.mrf.mxu0
        %v2617 = vadd.f32 %v2452, %v2616
        %2618 = vdwg.mxu0
        %v2619 = vld [vmem:[#allocation2] sm:$0xe]
        %s2620 = scalar_lea.vmem [#allocation9], 128
        %v2621 = vld [vmem:[%s2620] sm:$0xf]
        %v2622 = vld [vmem:[%s2620 + $0x4] sm:$0xf]
        %v2623 = vld [vmem:[%s2620 + $0x8] sm:$0xf]
        %v2624 = vld [vmem:[%s2620 + $0xc] sm:$0xf]
        %v2625 = vld [vmem:[%s2620 + $0x10] sm:$0xf]
        %v2626 = vld [vmem:[%s2620 + $0x14] sm:$0xf]
        %v2627 = vld [vmem:[%s2620 + $0x18] sm:$0xf]
        %v2628 = vld [vmem:[%s2620 + $0x1c] sm:$0xf]
        %v2629 = vld [vmem:[%s2620 + $0x20] sm:$0xf]
        %v2630 = vld [vmem:[%s2620 + $0x24] sm:$0xf]
        %v2631 = vld [vmem:[%s2620 + $0x28] sm:$0xf]
        %v2632 = vld [vmem:[%s2620 + $0x2c] sm:$0xf]
        %v2633 = vld [vmem:[%s2620 + $0x30] sm:$0xf]
        %v2634 = vld [vmem:[%s2620 + $0x34] sm:$0xf]
        %v2635 = vld [vmem:[%s2620 + $0x38] sm:$0xf]
        %v2636 = vld [vmem:[%s2620 + $0x3c] sm:$0xf]
        %v2638 = vunpack.c.l.b16 %v2619
        %v2639 = vpack.c.b16 %v2085, %v2638
        %vm2640 = vcmask 1046528
        %v2641 = vrot.slane %v2639, 1
        %v2642 = vrot.slane %v2122, 1
        %v2643 = vsel %vm2640, %v2641, %v2642
        %v2644 = vrot.slane %v2123, 1
        %v2645 = vsel %vm2640, %v2642, %v2644
        %v2646 = vrot.slane %v2124, 1
        %v2647 = vsel %vm2640, %v2644, %v2646
        %v2648 = vrot.slane %v2125, 1
        %v2649 = vsel %vm2640, %v2646, %v2648
        %v2650 = vrot.slane %v2126, 1
        %v2651 = vsel %vm2640, %v2648, %v2650
        %v2652 = vrot.slane %v2127, 1
        %v2653 = vsel %vm2640, %v2650, %v2652
        %v2654 = vrot.slane %v2128, 1
        %v2655 = vsel %vm2640, %v2652, %v2654
        %v2656 = vrot.slane %v2129, 1
        %v2657 = vsel %vm2640, %v2654, %v2656
        %v2658 = vrot.slane %v2130, 1
        %v2659 = vsel %vm2640, %v2656, %v2658
        %v2660 = vrot.slane %v2131, 1
        %v2661 = vsel %vm2640, %v2658, %v2660
        %v2662 = vrot.slane %v2132, 1
        %v2663 = vsel %vm2640, %v2660, %v2662
        %v2664 = vrot.slane %v2133, 1
        %v2665 = vsel %vm2640, %v2662, %v2664
        %v2666 = vrot.slane %v2134, 1
        %v2667 = vsel %vm2640, %v2664, %v2666
        %v2668 = vrot.slane %v2135, 1
        %v2669 = vsel %vm2640, %v2666, %v2668
        %v2670 = vrot.slane %v2136, 1
        %v2671 = vsel %vm2640, %v2668, %v2670
        %v2672 = vrot.slane %v2137, 1
        %v2673 = vsel %vm2640, %v2670, %v2672
        %v2674 = vrot.slane %v2138, 1
        %v2675 = vsel %vm2640, %v2672, %v2674
        %v2676 = vrot.slane %v2139, 1
        %v2677 = vsel %vm2640, %v2674, %v2676
        %v2712 = vunpack.c.l.b16 %v2621
        %v2713 = vunpack.c.l.b16 %v2622
        %v2714 = vunpack.c.l.b16 %v2623
        %v2715 = vunpack.c.l.b16 %v2624
        %v2716 = vunpack.c.l.b16 %v2625
        %v2717 = vunpack.c.l.b16 %v2626
        %v2718 = vunpack.c.l.b16 %v2627
        %v2719 = vunpack.c.l.b16 %v2628
        %v2720 = vunpack.c.l.b16 %v2629
        %v2721 = vunpack.c.l.b16 %v2630
        %v2722 = vunpack.c.l.b16 %v2631
        %v2723 = vunpack.c.l.b16 %v2632
        %v2724 = vunpack.c.l.b16 %v2633
        %v2725 = vunpack.c.l.b16 %v2634
        %v2726 = vunpack.c.l.b16 %v2635
        %v2727 = vunpack.c.l.b16 %v2636
        %v2728 = vpack.c.b16 %v2713, %v2712
        %v2729 = vpack.c.b16 %v2715, %v2714
        %v2730 = vpack.c.b16 %v2717, %v2716
        %v2731 = vpack.c.b16 %v2719, %v2718
        %v2732 = vpack.c.b16 %v2721, %v2720
        %v2733 = vpack.c.b16 %v2723, %v2722
        %v2734 = vpack.c.b16 %v2725, %v2724
        %v2735 = vpack.c.b16 %v2727, %v2726
        %2744 = vmatpush.bf16.msra.mxu0 %v2735
        %2745 = vmatpush.bf16.msra.mxu0 %v2734
        %2746 = vmatpush.bf16.msra.mxu0 %v2733
        %2747 = vmatpush.bf16.msra.mxu0 %v2732
        %2748 = vmatpush.bf16.msra.mxu0 %v2731
        %2749 = vmatpush.bf16.msra.mxu0 %v2730
        %2750 = vmatpush.bf16.msra.mxu0 %v2729
        %2751 = vmatpush.bf16.msra.mxu0 %v2728
        %2752 = vmatmul.bf16.gmra.mxu0 %v2643
        %v2753 = vpop.f32.mrf.mxu0
        %v2754 = vadd.f32 0.0, %v2753
        %v2755 = vpop.f32.mrf.mxu0
        %v2756 = vadd.f32 0.0, %v2755
        %2757 = vmatmul.bf16.gmra.mxu0 %v2645
        %v2758 = vpop.f32.mrf.mxu0
        %v2759 = vadd.f32 0.0, %v2758
        %v2760 = vpop.f32.mrf.mxu0
        %v2761 = vadd.f32 0.0, %v2760
        %2762 = vmatmul.bf16.gmra.mxu0 %v2647
        %v2763 = vpop.f32.mrf.mxu0
        %v2764 = vadd.f32 0.0, %v2763
        %v2765 = vpop.f32.mrf.mxu0
        %v2766 = vadd.f32 0.0, %v2765
        %2767 = vmatmul.bf16.gmra.mxu0 %v2649
        %v2768 = vpop.f32.mrf.mxu0
        %v2769 = vadd.f32 0.0, %v2768
        %v2770 = vpop.f32.mrf.mxu0
        %v2771 = vadd.f32 0.0, %v2770
        %2772 = vmatmul.bf16.gmra.mxu0 %v2651
        %v2773 = vpop.f32.mrf.mxu0
        %v2774 = vadd.f32 0.0, %v2773
        %v2775 = vpop.f32.mrf.mxu0
        %v2776 = vadd.f32 0.0, %v2775
        %2777 = vmatmul.bf16.gmra.mxu0 %v2653
        %v2778 = vpop.f32.mrf.mxu0
        %v2779 = vadd.f32 0.0, %v2778
        %v2780 = vpop.f32.mrf.mxu0
        %v2781 = vadd.f32 0.0, %v2780
        %2782 = vmatmul.bf16.gmra.mxu0 %v2655
        %v2783 = vpop.f32.mrf.mxu0
        %v2784 = vadd.f32 0.0, %v2783
        %v2785 = vpop.f32.mrf.mxu0
        %v2786 = vadd.f32 0.0, %v2785
        %2787 = vmatmul.bf16.gmra.mxu0 %v2657
        %v2788 = vpop.f32.mrf.mxu0
        %v2789 = vadd.f32 0.0, %v2788
        %v2790 = vpop.f32.mrf.mxu0
        %v2791 = vadd.f32 0.0, %v2790
        %2792 = vmatmul.bf16.gmra.mxu0 %v2659
        %v2793 = vpop.f32.mrf.mxu0
        %v2794 = vadd.f32 0.0, %v2793
        %v2795 = vpop.f32.mrf.mxu0
        %v2796 = vadd.f32 0.0, %v2795
        %2797 = vmatmul.bf16.gmra.mxu0 %v2661
        %v2798 = vpop.f32.mrf.mxu0
        %v2799 = vadd.f32 0.0, %v2798
        %v2800 = vpop.f32.mrf.mxu0
        %v2801 = vadd.f32 0.0, %v2800
        %2802 = vmatmul.bf16.gmra.mxu0 %v2663
        %v2803 = vpop.f32.mrf.mxu0
        %v2804 = vadd.f32 0.0, %v2803
        %v2805 = vpop.f32.mrf.mxu0
        %v2806 = vadd.f32 0.0, %v2805
        %2807 = vmatmul.bf16.gmra.mxu0 %v2665
        %v2808 = vpop.f32.mrf.mxu0
        %v2809 = vadd.f32 0.0, %v2808
        %v2810 = vpop.f32.mrf.mxu0
        %v2811 = vadd.f32 0.0, %v2810
        %2812 = vmatmul.bf16.gmra.mxu0 %v2667
        %v2813 = vpop.f32.mrf.mxu0
        %v2814 = vadd.f32 0.0, %v2813
        %v2815 = vpop.f32.mrf.mxu0
        %v2816 = vadd.f32 0.0, %v2815
        %2817 = vmatmul.bf16.gmra.mxu0 %v2669
        %v2818 = vpop.f32.mrf.mxu0
        %v2819 = vadd.f32 0.0, %v2818
        %v2820 = vpop.f32.mrf.mxu0
        %v2821 = vadd.f32 0.0, %v2820
        %2822 = vmatmul.bf16.gmra.mxu0 %v2671
        %v2823 = vpop.f32.mrf.mxu0
        %v2824 = vadd.f32 0.0, %v2823
        %v2825 = vpop.f32.mrf.mxu0
        %v2826 = vadd.f32 0.0, %v2825
        %2827 = vmatmul.bf16.gmra.mxu0 %v2673
        %v2828 = vpop.f32.mrf.mxu0
        %v2829 = vadd.f32 0.0, %v2828
        %v2830 = vpop.f32.mrf.mxu0
        %v2831 = vadd.f32 0.0, %v2830
        %2832 = vmatmul.bf16.gmra.mxu0 %v2675
        %v2833 = vpop.f32.mrf.mxu0
        %v2834 = vadd.f32 0.0, %v2833
        %v2835 = vpop.f32.mrf.mxu0
        %v2836 = vadd.f32 0.0, %v2835
        %2837 = vmatmul.bf16.gmra.mxu0 %v2677
        %v2838 = vpop.f32.mrf.mxu0
        %v2839 = vadd.f32 0.0, %v2838
        %v2840 = vpop.f32.mrf.mxu0
        %v2841 = vadd.f32 0.0, %v2840
        %2842 = vdwg.mxu0
        %v2843 = vadd.f32 %v2530, %v2754
        %v2844 = vadd.f32 %v2532, %v2756
        %v2845 = vadd.f32 %v2535, %v2759
        %v2846 = vadd.f32 %v2537, %v2761
        %v2847 = vadd.f32 %v2540, %v2764
        %v2848 = vadd.f32 %v2542, %v2766
        %v2849 = vadd.f32 %v2545, %v2769
        %v2850 = vadd.f32 %v2547, %v2771
        %v2851 = vadd.f32 %v2550, %v2774
        %v2852 = vadd.f32 %v2552, %v2776
        %v2853 = vadd.f32 %v2555, %v2779
        %v2854 = vadd.f32 %v2557, %v2781
        %v2855 = vadd.f32 %v2560, %v2784
        %v2856 = vadd.f32 %v2562, %v2786
        %v2857 = vadd.f32 %v2565, %v2789
        %v2858 = vadd.f32 %v2567, %v2791
        %v2859 = vadd.f32 %v2570, %v2794
        %v2860 = vadd.f32 %v2572, %v2796
        %v2861 = vadd.f32 %v2575, %v2799
        %v2862 = vadd.f32 %v2577, %v2801
        %v2863 = vadd.f32 %v2580, %v2804
        %v2864 = vadd.f32 %v2582, %v2806
        %v2865 = vadd.f32 %v2585, %v2809
        %v2866 = vadd.f32 %v2587, %v2811
        %v2867 = vadd.f32 %v2590, %v2814
        %v2868 = vadd.f32 %v2592, %v2816
        %v2869 = vadd.f32 %v2595, %v2819
        %v2870 = vadd.f32 %v2597, %v2821
        %v2871 = vadd.f32 %v2600, %v2824
        %v2872 = vadd.f32 %v2602, %v2826
        %v2873 = vadd.f32 %v2605, %v2829
        %v2874 = vadd.f32 %v2607, %v2831
        %v2875 = vadd.f32 %v2610, %v2834
        %v2876 = vadd.f32 %v2612, %v2836
        %v2877 = vadd.f32 %v2615, %v2839
        %v2878 = vadd.f32 %v2617, %v2841
        %v2879 = vld [vmem:[#allocation2 + $0x8] sm:$0xe]
        %v2880 = vld [vmem:[#allocation2 + $0xc] sm:$0xf]
        %v2881 = vld [vmem:[#allocation2 + $0x10] sm:$0xf]
        %v2882 = vld [vmem:[#allocation2 + $0x14] sm:$0xf]
        %v2883 = vld [vmem:[#allocation2 + $0x18] sm:$0xf]
        %v2884 = vld [vmem:[#allocation2 + $0x1c] sm:$0xf]
        %v2885 = vld [vmem:[#allocation2 + $0x20] sm:$0xf]
        %v2886 = vld [vmem:[#allocation2 + $0x24] sm:$0xf]
        %v2887 = vld [vmem:[#allocation2 + $0x28] sm:$0xf]
        %v2888 = vld [vmem:[#allocation2 + $0x2c] sm:$0xf]
        %v2889 = vld [vmem:[#allocation2 + $0x30] sm:$0xf]
        %v2890 = vld [vmem:[#allocation2 + $0x34] sm:$0xf]
        %v2891 = vld [vmem:[#allocation2 + $0x38] sm:$0xf]
        %v2892 = vld [vmem:[#allocation2 + $0x3c] sm:$0xf]
        %v2893 = vld [vmem:[#allocation2 + $0x40] sm:$0xf]
        %v2894 = vld [vmem:[#allocation2 + $0x44] sm:$0xf]
        %v2895 = vld [vmem:[#allocation2 + $0x48] sm:$0xf]
        %v2896 = vld [vmem:[#allocation2 + $0x4c] sm:$0xf]
        %v2897 = vld [vmem:[#allocation2 + $0x50] sm:$0xf]
        %v2898 = vld [vmem:[#allocation2 + $0x54] sm:$0xf]
        %v2899 = vld [vmem:[#allocation2 + $0x58] sm:$0xf]
        %v2900 = vld [vmem:[#allocation2 + $0x5c] sm:$0xf]
        %v2901 = vld [vmem:[#allocation2 + $0x60] sm:$0xf]
        %v2902 = vld [vmem:[#allocation2 + $0x64] sm:$0xf]
        %v2903 = vld [vmem:[#allocation2 + $0x68] sm:$0xf]
        %v2904 = vld [vmem:[#allocation2 + $0x6c] sm:$0xf]
        %v2905 = vld [vmem:[#allocation2 + $0x70] sm:$0xf]
        %v2906 = vld [vmem:[#allocation2 + $0x74] sm:$0xf]
        %v2907 = vld [vmem:[#allocation2 + $0x78] sm:$0xf]
        %v2908 = vld [vmem:[#allocation2 + $0x7c] sm:$0xf]
        %v2909 = vld [vmem:[#allocation2 + $0x80] sm:$0xf]
        %v2910 = vld [vmem:[#allocation2 + $0x84] sm:$0xf]
        %v2911 = vld [vmem:[#allocation2 + $0x88] sm:$0xf]
        %v2912 = vld [vmem:[#allocation2 + $0x8c] sm:$0xf]
        %v2913 = vld [vmem:[#allocation2 + $0x90] sm:$0xf]
        %v2914 = vld [vmem:[#allocation2 + $0x94] sm:$0xf]
        %v2915 = vld [vmem:[#allocation2 + $0x98] sm:$0x1]
        %s2916 = scalar_lea.vmem [#allocation9], 192
        %v2917 = vld [vmem:[%s2916] sm:$0xf]
        %v2918 = vld [vmem:[%s2916 + $0x4] sm:$0xf]
        %v2919 = vld [vmem:[%s2916 + $0x8] sm:$0xf]
        %v2920 = vld [vmem:[%s2916 + $0xc] sm:$0xf]
        %v2921 = vld [vmem:[%s2916 + $0x10] sm:$0xf]
        %v2922 = vld [vmem:[%s2916 + $0x14] sm:$0xf]
        %v2923 = vld [vmem:[%s2916 + $0x18] sm:$0xf]
        %v2924 = vld [vmem:[%s2916 + $0x1c] sm:$0xf]
        %v2925 = vld [vmem:[%s2916 + $0x20] sm:$0xf]
        %v2926 = vld [vmem:[%s2916 + $0x24] sm:$0xf]
        %v2927 = vld [vmem:[%s2916 + $0x28] sm:$0xf]
        %v2928 = vld [vmem:[%s2916 + $0x2c] sm:$0xf]
        %v2929 = vld [vmem:[%s2916 + $0x30] sm:$0xf]
        %v2930 = vld [vmem:[%s2916 + $0x34] sm:$0xf]
        %v2931 = vld [vmem:[%s2916 + $0x38] sm:$0xf]
        %v2932 = vld [vmem:[%s2916 + $0x3c] sm:$0xf]
        %v2970 = vunpack.c.l.b16 %v2879
        %v2971 = vunpack.c.l.b16 %v2880
        %v2972 = vunpack.c.l.b16 %v2881
        %v2973 = vunpack.c.l.b16 %v2882
        %v2974 = vunpack.c.l.b16 %v2883
        %v2975 = vunpack.c.l.b16 %v2884
        %v2976 = vunpack.c.l.b16 %v2885
        %v2977 = vunpack.c.l.b16 %v2886
        %v2978 = vunpack.c.l.b16 %v2887
        %v2979 = vunpack.c.l.b16 %v2888
        %v2980 = vunpack.c.l.b16 %v2889
        %v2981 = vunpack.c.l.b16 %v2890
        %v2982 = vunpack.c.l.b16 %v2891
        %v2983 = vunpack.c.l.b16 %v2892
        %v2984 = vunpack.c.l.b16 %v2893
        %v2985 = vunpack.c.l.b16 %v2894
        %v2986 = vunpack.c.l.b16 %v2895
        %v2987 = vunpack.c.l.b16 %v2896
        %v2988 = vunpack.c.l.b16 %v2897
        %v2989 = vunpack.c.l.b16 %v2898
        %v2990 = vunpack.c.l.b16 %v2899
        %v2991 = vunpack.c.l.b16 %v2900
        %v2992 = vunpack.c.l.b16 %v2901
        %v2993 = vunpack.c.l.b16 %v2902
        %v2994 = vunpack.c.l.b16 %v2903
        %v2995 = vunpack.c.l.b16 %v2904
        %v2996 = vunpack.c.l.b16 %v2905
        %v2997 = vunpack.c.l.b16 %v2906
        %v2998 = vunpack.c.l.b16 %v2907
        %v2999 = vunpack.c.l.b16 %v2908
        %v3000 = vunpack.c.l.b16 %v2909
        %v3001 = vunpack.c.l.b16 %v2910
        %v3002 = vunpack.c.l.b16 %v2911
        %v3003 = vunpack.c.l.b16 %v2912
        %v3004 = vunpack.c.l.b16 %v2913
        %v3005 = vunpack.c.l.b16 %v2914
        %v3006 = vunpack.c.l.b16 %v2915
        %v3007 = vpack.c.b16 %v2971, %v2970
        %v3008 = vpack.c.b16 %v2973, %v2972
        %v3009 = vpack.c.b16 %v2975, %v2974
        %v3010 = vpack.c.b16 %v2977, %v2976
        %v3011 = vpack.c.b16 %v2979, %v2978
        %v3012 = vpack.c.b16 %v2981, %v2980
        %v3013 = vpack.c.b16 %v2983, %v2982
        %v3014 = vpack.c.b16 %v2985, %v2984
        %v3015 = vpack.c.b16 %v2987, %v2986
        %v3016 = vpack.c.b16 %v2989, %v2988
        %v3017 = vpack.c.b16 %v2991, %v2990
        %v3018 = vpack.c.b16 %v2993, %v2992
        %v3019 = vpack.c.b16 %v2995, %v2994
        %v3020 = vpack.c.b16 %v2997, %v2996
        %v3021 = vpack.c.b16 %v2999, %v2998
        %v3022 = vpack.c.b16 %v3001, %v3000
        %v3023 = vpack.c.b16 %v3003, %v3002
        %v3024 = vpack.c.b16 %v3005, %v3004
        %v3025 = vpack.c.b16 %v3006, %v3006
        %v3026 = vrot.slane %v3007, 1
        %v3027 = vrot.slane %v3008, 1
        %v3028 = vsel %vm2640, %v3026, %v3027
        %v3029 = vrot.slane %v3009, 1
        %v3030 = vsel %vm2640, %v3027, %v3029
        %v3031 = vrot.slane %v3010, 1
        %v3032 = vsel %vm2640, %v3029, %v3031
        %v3033 = vrot.slane %v3011, 1
        %v3034 = vsel %vm2640, %v3031, %v3033
        %v3035 = vrot.slane %v3012, 1
        %v3036 = vsel %vm2640, %v3033, %v3035
        %v3037 = vrot.slane %v3013, 1
        %v3038 = vsel %vm2640, %v3035, %v3037
        %v3039 = vrot.slane %v3014, 1
        %v3040 = vsel %vm2640, %v3037, %v3039
        %v3041 = vrot.slane %v3015, 1
        %v3042 = vsel %vm2640, %v3039, %v3041
        %v3043 = vrot.slane %v3016, 1
        %v3044 = vsel %vm2640, %v3041, %v3043
        %v3045 = vrot.slane %v3017, 1
        %v3046 = vsel %vm2640, %v3043, %v3045
        %v3047 = vrot.slane %v3018, 1
        %v3048 = vsel %vm2640, %v3045, %v3047
        %v3049 = vrot.slane %v3019, 1
        %v3050 = vsel %vm2640, %v3047, %v3049
        %v3051 = vrot.slane %v3020, 1
        %v3052 = vsel %vm2640, %v3049, %v3051
        %v3053 = vrot.slane %v3021, 1
        %v3054 = vsel %vm2640, %v3051, %v3053
        %v3055 = vrot.slane %v3022, 1
        %v3056 = vsel %vm2640, %v3053, %v3055
        %v3057 = vrot.slane %v3023, 1
        %v3058 = vsel %vm2640, %v3055, %v3057
        %v3059 = vrot.slane %v3024, 1
        %v3060 = vsel %vm2640, %v3057, %v3059
        %v3061 = vrot.slane %v3025, 1
        %v3062 = vsel %vm2640, %v3059, %v3061
        %v3097 = vunpack.c.l.b16 %v2917
        %v3098 = vunpack.c.l.b16 %v2918
        %v3099 = vunpack.c.l.b16 %v2919
        %v3100 = vunpack.c.l.b16 %v2920
        %v3101 = vunpack.c.l.b16 %v2921
        %v3102 = vunpack.c.l.b16 %v2922
        %v3103 = vunpack.c.l.b16 %v2923
        %v3104 = vunpack.c.l.b16 %v2924
        %v3105 = vunpack.c.l.b16 %v2925
        %v3106 = vunpack.c.l.b16 %v2926
        %v3107 = vunpack.c.l.b16 %v2927
        %v3108 = vunpack.c.l.b16 %v2928
        %v3109 = vunpack.c.l.b16 %v2929
        %v3110 = vunpack.c.l.b16 %v2930
        %v3111 = vunpack.c.l.b16 %v2931
        %v3112 = vunpack.c.l.b16 %v2932
        %v3113 = vpack.c.b16 %v3098, %v3097
        %v3114 = vpack.c.b16 %v3100, %v3099
        %v3115 = vpack.c.b16 %v3102, %v3101
        %v3116 = vpack.c.b16 %v3104, %v3103
        %v3117 = vpack.c.b16 %v3106, %v3105
        %v3118 = vpack.c.b16 %v3108, %v3107
        %v3119 = vpack.c.b16 %v3110, %v3109
        %v3120 = vpack.c.b16 %v3112, %v3111
        %3129 = vmatpush.bf16.msra.mxu0 %v3120
        %3130 = vmatpush.bf16.msra.mxu0 %v3119
        %3131 = vmatpush.bf16.msra.mxu0 %v3118
        %3132 = vmatpush.bf16.msra.mxu0 %v3117
        %3133 = vmatpush.bf16.msra.mxu0 %v3116
        %3134 = vmatpush.bf16.msra.mxu0 %v3115
        %3135 = vmatpush.bf16.msra.mxu0 %v3114
        %3136 = vmatpush.bf16.msra.mxu0 %v3113
        %3137 = vmatmul.bf16.gmra.mxu0 %v3028
        %v3138 = vpop.f32.mrf.mxu0
        %v3139 = vadd.f32 0.0, %v3138
        %v3140 = vpop.f32.mrf.mxu0
        %v3141 = vadd.f32 0.0, %v3140
        %3142 = vmatmul.bf16.gmra.mxu0 %v3030
        %v3143 = vpop.f32.mrf.mxu0
        %v3144 = vadd.f32 0.0, %v3143
        %v3145 = vpop.f32.mrf.mxu0
        %v3146 = vadd.f32 0.0, %v3145
        %3147 = vmatmul.bf16.gmra.mxu0 %v3032
        %v3148 = vpop.f32.mrf.mxu0
        %v3149 = vadd.f32 0.0, %v3148
        %v3150 = vpop.f32.mrf.mxu0
        %v3151 = vadd.f32 0.0, %v3150
        %3152 = vmatmul.bf16.gmra.mxu0 %v3034
        %v3153 = vpop.f32.mrf.mxu0
        %v3154 = vadd.f32 0.0, %v3153
        %v3155 = vpop.f32.mrf.mxu0
        %v3156 = vadd.f32 0.0, %v3155
        %3157 = vmatmul.bf16.gmra.mxu0 %v3036
        %v3158 = vpop.f32.mrf.mxu0
        %v3159 = vadd.f32 0.0, %v3158
        %v3160 = vpop.f32.mrf.mxu0
        %v3161 = vadd.f32 0.0, %v3160
        %3162 = vmatmul.bf16.gmra.mxu0 %v3038
        %v3163 = vpop.f32.mrf.mxu0
        %v3164 = vadd.f32 0.0, %v3163
        %v3165 = vpop.f32.mrf.mxu0
        %v3166 = vadd.f32 0.0, %v3165
        %3167 = vmatmul.bf16.gmra.mxu0 %v3040
        %v3168 = vpop.f32.mrf.mxu0
        %v3169 = vadd.f32 0.0, %v3168
        %v3170 = vpop.f32.mrf.mxu0
        %v3171 = vadd.f32 0.0, %v3170
        %3172 = vmatmul.bf16.gmra.mxu0 %v3042
        %v3173 = vpop.f32.mrf.mxu0
        %v3174 = vadd.f32 0.0, %v3173
        %v3175 = vpop.f32.mrf.mxu0
        %v3176 = vadd.f32 0.0, %v3175
        %3177 = vmatmul.bf16.gmra.mxu0 %v3044
        %v3178 = vpop.f32.mrf.mxu0
        %v3179 = vadd.f32 0.0, %v3178
        %v3180 = vpop.f32.mrf.mxu0
        %v3181 = vadd.f32 0.0, %v3180
        %3182 = vmatmul.bf16.gmra.mxu0 %v3046
        %v3183 = vpop.f32.mrf.mxu0
        %v3184 = vadd.f32 0.0, %v3183
        %v3185 = vpop.f32.mrf.mxu0
        %v3186 = vadd.f32 0.0, %v3185
        %3187 = vmatmul.bf16.gmra.mxu0 %v3048
        %v3188 = vpop.f32.mrf.mxu0
        %v3189 = vadd.f32 0.0, %v3188
        %v3190 = vpop.f32.mrf.mxu0
        %v3191 = vadd.f32 0.0, %v3190
        %3192 = vmatmul.bf16.gmra.mxu0 %v3050
        %v3193 = vpop.f32.mrf.mxu0
        %v3194 = vadd.f32 0.0, %v3193
        %v3195 = vpop.f32.mrf.mxu0
        %v3196 = vadd.f32 0.0, %v3195
        %3197 = vmatmul.bf16.gmra.mxu0 %v3052
        %v3198 = vpop.f32.mrf.mxu0
        %v3199 = vadd.f32 0.0, %v3198
        %v3200 = vpop.f32.mrf.mxu0
        %v3201 = vadd.f32 0.0, %v3200
        %3202 = vmatmul.bf16.gmra.mxu0 %v3054
        %v3203 = vpop.f32.mrf.mxu0
        %v3204 = vadd.f32 0.0, %v3203
        %v3205 = vpop.f32.mrf.mxu0
        %v3206 = vadd.f32 0.0, %v3205
        %3207 = vmatmul.bf16.gmra.mxu0 %v3056
        %v3208 = vpop.f32.mrf.mxu0
        %v3209 = vadd.f32 0.0, %v3208
        %v3210 = vpop.f32.mrf.mxu0
        %v3211 = vadd.f32 0.0, %v3210
        %3212 = vmatmul.bf16.gmra.mxu0 %v3058
        %v3213 = vpop.f32.mrf.mxu0
        %v3214 = vadd.f32 0.0, %v3213
        %v3215 = vpop.f32.mrf.mxu0
        %v3216 = vadd.f32 0.0, %v3215
        %3217 = vmatmul.bf16.gmra.mxu0 %v3060
        %v3218 = vpop.f32.mrf.mxu0
        %v3219 = vadd.f32 0.0, %v3218
        %v3220 = vpop.f32.mrf.mxu0
        %v3221 = vadd.f32 0.0, %v3220
        %3222 = vmatmul.bf16.gmra.mxu0 %v3062
        %v3223 = vpop.f32.mrf.mxu0
        %v3224 = vadd.f32 0.0, %v3223
        %v3225 = vpop.f32.mrf.mxu0
        %v3226 = vadd.f32 0.0, %v3225
        %3227 = vdwg.mxu0
        %v3228 = vadd.f32 %v2843, %v3139
        %v3229 = vadd.f32 %v2844, %v3141
        %v3230 = vadd.f32 %v2845, %v3144
        %v3231 = vadd.f32 %v2846, %v3146
        %v3232 = vadd.f32 %v2847, %v3149
        %v3233 = vadd.f32 %v2848, %v3151
        %v3234 = vadd.f32 %v2849, %v3154
        %v3235 = vadd.f32 %v2850, %v3156
        %v3236 = vadd.f32 %v2851, %v3159
        %v3237 = vadd.f32 %v2852, %v3161
        %v3238 = vadd.f32 %v2853, %v3164
        %v3239 = vadd.f32 %v2854, %v3166
        %v3240 = vadd.f32 %v2855, %v3169
        %v3241 = vadd.f32 %v2856, %v3171
        %v3242 = vadd.f32 %v2857, %v3174
        %v3243 = vadd.f32 %v2858, %v3176
        %v3244 = vadd.f32 %v2859, %v3179
        %v3245 = vadd.f32 %v2860, %v3181
        %v3246 = vadd.f32 %v2861, %v3184
        %v3247 = vadd.f32 %v2862, %v3186
        %v3248 = vadd.f32 %v2863, %v3189
        %v3249 = vadd.f32 %v2864, %v3191
        %v3250 = vadd.f32 %v2865, %v3194
        %v3251 = vadd.f32 %v2866, %v3196
        %v3252 = vadd.f32 %v2867, %v3199
        %v3253 = vadd.f32 %v2868, %v3201
        %v3254 = vadd.f32 %v2869, %v3204
        %v3255 = vadd.f32 %v2870, %v3206
        %v3256 = vadd.f32 %v2871, %v3209
        %v3257 = vadd.f32 %v2872, %v3211
        %v3258 = vadd.f32 %v2873, %v3214
        %v3259 = vadd.f32 %v2874, %v3216
        %v3260 = vadd.f32 %v2875, %v3219
        %v3261 = vadd.f32 %v2876, %v3221
        %v3262 = vadd.f32 %v2877, %v3224
        %v3263 = vadd.f32 %v2878, %v3226
        %v3264 = vld [vmem:[#allocation2 + $0x98] sm:$0x3]
        %s3265 = scalar_lea.vmem [#allocation9], 256
        %v3266 = vld [vmem:[%s3265] sm:$0xf]
        %v3267 = vld [vmem:[%s3265 + $0x4] sm:$0xf]
        %v3268 = vld [vmem:[%s3265 + $0x8] sm:$0xf]
        %v3269 = vld [vmem:[%s3265 + $0xc] sm:$0xf]
        %v3270 = vld [vmem:[%s3265 + $0x10] sm:$0xf]
        %v3271 = vld [vmem:[%s3265 + $0x14] sm:$0xf]
        %v3272 = vld [vmem:[%s3265 + $0x18] sm:$0xf]
        %v3273 = vld [vmem:[%s3265 + $0x1c] sm:$0xf]
        %v3274 = vld [vmem:[%s3265 + $0x20] sm:$0xf]
        %v3275 = vld [vmem:[%s3265 + $0x24] sm:$0xf]
        %v3276 = vld [vmem:[%s3265 + $0x28] sm:$0xf]
        %v3277 = vld [vmem:[%s3265 + $0x2c] sm:$0xf]
        %v3278 = vld [vmem:[%s3265 + $0x30] sm:$0xf]
        %v3279 = vld [vmem:[%s3265 + $0x34] sm:$0xf]
        %v3280 = vld [vmem:[%s3265 + $0x38] sm:$0xf]
        %v3281 = vld [vmem:[%s3265 + $0x3c] sm:$0xf]
        %v3283 = vunpack.c.l.b16 %v3264
        %v3284 = vpack.c.b16 %v3283, %v3283
        %vm3285 = vsmask.f32 6400
        %v3287 = vshrl.u32 %v3007, 16
        %v3289 = vrot.slane %v3287, 1
        %v3290 = vshll.u32 %v3007, 16
        %v3292 = vrot.slane %v3290, 2
        %v3293 = vor.u32 %v3289, %v3292
        %v3295 = vshrl.u32 %v3008, 16
        %v3297 = vrot.slane %v3295, 1
        %v3298 = vshll.u32 %v3008, 16
        %v3300 = vrot.slane %v3298, 2
        %v3301 = vor.u32 %v3297, %v3300
        %v3302 = vsel %vm3285, %v3293, %v3301
        %v3304 = vshrl.u32 %v3009, 16
        %v3306 = vrot.slane %v3304, 1
        %v3307 = vshll.u32 %v3009, 16
        %v3309 = vrot.slane %v3307, 2
        %v3310 = vor.u32 %v3306, %v3309
        %v3311 = vsel %vm3285, %v3301, %v3310
        %v3313 = vshrl.u32 %v3010, 16
        %v3315 = vrot.slane %v3313, 1
        %v3316 = vshll.u32 %v3010, 16
        %v3318 = vrot.slane %v3316, 2
        %v3319 = vor.u32 %v3315, %v3318
        %v3320 = vsel %vm3285, %v3310, %v3319
        %v3322 = vshrl.u32 %v3011, 16
        %v3324 = vrot.slane %v3322, 1
        %v3325 = vshll.u32 %v3011, 16
        %v3327 = vrot.slane %v3325, 2
        %v3328 = vor.u32 %v3324, %v3327
        %v3329 = vsel %vm3285, %v3319, %v3328
        %v3331 = vshrl.u32 %v3012, 16
        %v3333 = vrot.slane %v3331, 1
        %v3334 = vshll.u32 %v3012, 16
        %v3336 = vrot.slane %v3334, 2
        %v3337 = vor.u32 %v3333, %v3336
        %v3338 = vsel %vm3285, %v3328, %v3337
        %v3340 = vshrl.u32 %v3013, 16
        %v3342 = vrot.slane %v3340, 1
        %v3343 = vshll.u32 %v3013, 16
        %v3345 = vrot.slane %v3343, 2
        %v3346 = vor.u32 %v3342, %v3345
        %v3347 = vsel %vm3285, %v3337, %v3346
        %v3349 = vshrl.u32 %v3014, 16
        %v3351 = vrot.slane %v3349, 1
        %v3352 = vshll.u32 %v3014, 16
        %v3354 = vrot.slane %v3352, 2
        %v3355 = vor.u32 %v3351, %v3354
        %v3356 = vsel %vm3285, %v3346, %v3355
        %v3358 = vshrl.u32 %v3015, 16
        %v3360 = vrot.slane %v3358, 1
        %v3361 = vshll.u32 %v3015, 16
        %v3363 = vrot.slane %v3361, 2
        %v3364 = vor.u32 %v3360, %v3363
        %v3365 = vsel %vm3285, %v3355, %v3364
        %v3367 = vshrl.u32 %v3016, 16
        %v3369 = vrot.slane %v3367, 1
        %v3370 = vshll.u32 %v3016, 16
        %v3372 = vrot.slane %v3370, 2
        %v3373 = vor.u32 %v3369, %v3372
        %v3374 = vsel %vm3285, %v3364, %v3373
        %v3376 = vshrl.u32 %v3017, 16
        %v3378 = vrot.slane %v3376, 1
        %v3379 = vshll.u32 %v3017, 16
        %v3381 = vrot.slane %v3379, 2
        %v3382 = vor.u32 %v3378, %v3381
        %v3383 = vsel %vm3285, %v3373, %v3382
        %v3385 = vshrl.u32 %v3018, 16
        %v3387 = vrot.slane %v3385, 1
        %v3388 = vshll.u32 %v3018, 16
        %v3390 = vrot.slane %v3388, 2
        %v3391 = vor.u32 %v3387, %v3390
        %v3392 = vsel %vm3285, %v3382, %v3391
        %v3394 = vshrl.u32 %v3019, 16
        %v3396 = vrot.slane %v3394, 1
        %v3397 = vshll.u32 %v3019, 16
        %v3399 = vrot.slane %v3397, 2
        %v3400 = vor.u32 %v3396, %v3399
        %v3401 = vsel %vm3285, %v3391, %v3400
        %v3403 = vshrl.u32 %v3020, 16
        %v3405 = vrot.slane %v3403, 1
        %v3406 = vshll.u32 %v3020, 16
        %v3408 = vrot.slane %v3406, 2
        %v3409 = vor.u32 %v3405, %v3408
        %v3410 = vsel %vm3285, %v3400, %v3409
        %v3412 = vshrl.u32 %v3021, 16
        %v3414 = vrot.slane %v3412, 1
        %v3415 = vshll.u32 %v3021, 16
        %v3417 = vrot.slane %v3415, 2
        %v3418 = vor.u32 %v3414, %v3417
        %v3419 = vsel %vm3285, %v3409, %v3418
        %v3421 = vshrl.u32 %v3022, 16
        %v3423 = vrot.slane %v3421, 1
        %v3424 = vshll.u32 %v3022, 16
        %v3426 = vrot.slane %v3424, 2
        %v3427 = vor.u32 %v3423, %v3426
        %v3428 = vsel %vm3285, %v3418, %v3427
        %v3430 = vshrl.u32 %v3023, 16
        %v3432 = vrot.slane %v3430, 1
        %v3433 = vshll.u32 %v3023, 16
        %v3435 = vrot.slane %v3433, 2
        %v3436 = vor.u32 %v3432, %v3435
        %v3437 = vsel %vm3285, %v3427, %v3436
        %v3439 = vshrl.u32 %v3024, 16
        %v3441 = vrot.slane %v3439, 1
        %v3442 = vshll.u32 %v3024, 16
        %v3444 = vrot.slane %v3442, 2
        %v3445 = vor.u32 %v3441, %v3444
        %v3446 = vsel %vm3285, %v3436, %v3445
        %v3448 = vshrl.u32 %v3284, 16
        %v3450 = vrot.slane %v3448, 1
        %v3451 = vshll.u32 %v3284, 16
        %v3453 = vrot.slane %v3451, 2
        %v3454 = vor.u32 %v3450, %v3453
        %v3455 = vsel %vm3285, %v3445, %v3454
        %v3490 = vunpack.c.l.b16 %v3266
        %v3491 = vunpack.c.l.b16 %v3267
        %v3492 = vunpack.c.l.b16 %v3268
        %v3493 = vunpack.c.l.b16 %v3269
        %v3494 = vunpack.c.l.b16 %v3270
        %v3495 = vunpack.c.l.b16 %v3271
        %v3496 = vunpack.c.l.b16 %v3272
        %v3497 = vunpack.c.l.b16 %v3273
        %v3498 = vunpack.c.l.b16 %v3274
        %v3499 = vunpack.c.l.b16 %v3275
        %v3500 = vunpack.c.l.b16 %v3276
        %v3501 = vunpack.c.l.b16 %v3277
        %v3502 = vunpack.c.l.b16 %v3278
        %v3503 = vunpack.c.l.b16 %v3279
        %v3504 = vunpack.c.l.b16 %v3280
        %v3505 = vunpack.c.l.b16 %v3281
        %v3506 = vpack.c.b16 %v3491, %v3490
        %v3507 = vpack.c.b16 %v3493, %v3492
        %v3508 = vpack.c.b16 %v3495, %v3494
        %v3509 = vpack.c.b16 %v3497, %v3496
        %v3510 = vpack.c.b16 %v3499, %v3498
        %v3511 = vpack.c.b16 %v3501, %v3500
        %v3512 = vpack.c.b16 %v3503, %v3502
        %v3513 = vpack.c.b16 %v3505, %v3504
        %3522 = vmatpush.bf16.msra.mxu0 %v3513
        %3523 = vmatpush.bf16.msra.mxu0 %v3512
        %3524 = vmatpush.bf16.msra.mxu0 %v3511
        %3525 = vmatpush.bf16.msra.mxu0 %v3510
        %3526 = vmatpush.bf16.msra.mxu0 %v3509
        %3527 = vmatpush.bf16.msra.mxu0 %v3508
        %3528 = vmatpush.bf16.msra.mxu0 %v3507
        %3529 = vmatpush.bf16.msra.mxu0 %v3506
        %3530 = vmatmul.bf16.gmra.mxu0 %v3302
        %v3531 = vpop.f32.mrf.mxu0
        %v3532 = vadd.f32 0.0, %v3531
        %v3533 = vpop.f32.mrf.mxu0
        %v3534 = vadd.f32 0.0, %v3533
        %3535 = vmatmul.bf16.gmra.mxu0 %v3311
        %v3536 = vpop.f32.mrf.mxu0
        %v3537 = vadd.f32 0.0, %v3536
        %v3538 = vpop.f32.mrf.mxu0
        %v3539 = vadd.f32 0.0, %v3538
        %3540 = vmatmul.bf16.gmra.mxu0 %v3320
        %v3541 = vpop.f32.mrf.mxu0
        %v3542 = vadd.f32 0.0, %v3541
        %v3543 = vpop.f32.mrf.mxu0
        %v3544 = vadd.f32 0.0, %v3543
        %3545 = vmatmul.bf16.gmra.mxu0 %v3329
        %v3546 = vpop.f32.mrf.mxu0
        %v3547 = vadd.f32 0.0, %v3546
        %v3548 = vpop.f32.mrf.mxu0
        %v3549 = vadd.f32 0.0, %v3548
        %3550 = vmatmul.bf16.gmra.mxu0 %v3338
        %v3551 = vpop.f32.mrf.mxu0
        %v3552 = vadd.f32 0.0, %v3551
        %v3553 = vpop.f32.mrf.mxu0
        %v3554 = vadd.f32 0.0, %v3553
        %3555 = vmatmul.bf16.gmra.mxu0 %v3347
        %v3556 = vpop.f32.mrf.mxu0
        %v3557 = vadd.f32 0.0, %v3556
        %v3558 = vpop.f32.mrf.mxu0
        %v3559 = vadd.f32 0.0, %v3558
        %3560 = vmatmul.bf16.gmra.mxu0 %v3356
        %v3561 = vpop.f32.mrf.mxu0
        %v3562 = vadd.f32 0.0, %v3561
        %v3563 = vpop.f32.mrf.mxu0
        %v3564 = vadd.f32 0.0, %v3563
        %3565 = vmatmul.bf16.gmra.mxu0 %v3365
        %v3566 = vpop.f32.mrf.mxu0
        %v3567 = vadd.f32 0.0, %v3566
        %v3568 = vpop.f32.mrf.mxu0
        %v3569 = vadd.f32 0.0, %v3568
        %3570 = vmatmul.bf16.gmra.mxu0 %v3374
        %v3571 = vpop.f32.mrf.mxu0
        %v3572 = vadd.f32 0.0, %v3571
        %v3573 = vpop.f32.mrf.mxu0
        %v3574 = vadd.f32 0.0, %v3573
        %3575 = vmatmul.bf16.gmra.mxu0 %v3383
        %v3576 = vpop.f32.mrf.mxu0
        %v3577 = vadd.f32 0.0, %v3576
        %v3578 = vpop.f32.mrf.mxu0
        %v3579 = vadd.f32 0.0, %v3578
        %3580 = vmatmul.bf16.gmra.mxu0 %v3392
        %v3581 = vpop.f32.mrf.mxu0
        %v3582 = vadd.f32 0.0, %v3581
        %v3583 = vpop.f32.mrf.mxu0
        %v3584 = vadd.f32 0.0, %v3583
        %3585 = vmatmul.bf16.gmra.mxu0 %v3401
        %v3586 = vpop.f32.mrf.mxu0
        %v3587 = vadd.f32 0.0, %v3586
        %v3588 = vpop.f32.mrf.mxu0
        %v3589 = vadd.f32 0.0, %v3588
        %3590 = vmatmul.bf16.gmra.mxu0 %v3410
        %v3591 = vpop.f32.mrf.mxu0
        %v3592 = vadd.f32 0.0, %v3591
        %v3593 = vpop.f32.mrf.mxu0
        %v3594 = vadd.f32 0.0, %v3593
        %3595 = vmatmul.bf16.gmra.mxu0 %v3419
        %v3596 = vpop.f32.mrf.mxu0
        %v3597 = vadd.f32 0.0, %v3596
        %v3598 = vpop.f32.mrf.mxu0
        %v3599 = vadd.f32 0.0, %v3598
        %3600 = vmatmul.bf16.gmra.mxu0 %v3428
        %v3601 = vpop.f32.mrf.mxu0
        %v3602 = vadd.f32 0.0, %v3601
        %v3603 = vpop.f32.mrf.mxu0
        %v3604 = vadd.f32 0.0, %v3603
        %3605 = vmatmul.bf16.gmra.mxu0 %v3437
        %v3606 = vpop.f32.mrf.mxu0
        %v3607 = vadd.f32 0.0, %v3606
        %v3608 = vpop.f32.mrf.mxu0
        %v3609 = vadd.f32 0.0, %v3608
        %3610 = vmatmul.bf16.gmra.mxu0 %v3446
        %v3611 = vpop.f32.mrf.mxu0
        %v3612 = vadd.f32 0.0, %v3611
        %v3613 = vpop.f32.mrf.mxu0
        %v3614 = vadd.f32 0.0, %v3613
        %3615 = vmatmul.bf16.gmra.mxu0 %v3455
        %v3616 = vpop.f32.mrf.mxu0
        %v3617 = vadd.f32 0.0, %v3616
        %v3618 = vpop.f32.mrf.mxu0
        %v3619 = vadd.f32 0.0, %v3618
        %3620 = vdwg.mxu0
        %v3621 = vadd.f32 %v3228, %v3532
        %v3622 = vadd.f32 %v3229, %v3534
        %v3623 = vadd.f32 %v3230, %v3537
        %v3624 = vadd.f32 %v3231, %v3539
        %v3625 = vadd.f32 %v3232, %v3542
        %v3626 = vadd.f32 %v3233, %v3544
        %v3627 = vadd.f32 %v3234, %v3547
        %v3628 = vadd.f32 %v3235, %v3549
        %v3629 = vadd.f32 %v3236, %v3552
        %v3630 = vadd.f32 %v3237, %v3554
        %v3631 = vadd.f32 %v3238, %v3557
        %v3632 = vadd.f32 %v3239, %v3559
        %v3633 = vadd.f32 %v3240, %v3562
        %v3634 = vadd.f32 %v3241, %v3564
        %v3635 = vadd.f32 %v3242, %v3567
        %v3636 = vadd.f32 %v3243, %v3569
        %v3637 = vadd.f32 %v3244, %v3572
        %v3638 = vadd.f32 %v3245, %v3574
        %v3639 = vadd.f32 %v3246, %v3577
        %v3640 = vadd.f32 %v3247, %v3579
        %v3641 = vadd.f32 %v3248, %v3582
        %v3642 = vadd.f32 %v3249, %v3584
        %v3643 = vadd.f32 %v3250, %v3587
        %v3644 = vadd.f32 %v3251, %v3589
        %v3645 = vadd.f32 %v3252, %v3592
        %v3646 = vadd.f32 %v3253, %v3594
        %v3647 = vadd.f32 %v3254, %v3597
        %v3648 = vadd.f32 %v3255, %v3599
        %v3649 = vadd.f32 %v3256, %v3602
        %v3650 = vadd.f32 %v3257, %v3604
        %v3651 = vadd.f32 %v3258, %v3607
        %v3652 = vadd.f32 %v3259, %v3609
        %v3653 = vadd.f32 %v3260, %v3612
        %v3654 = vadd.f32 %v3261, %v3614
        %v3655 = vadd.f32 %v3262, %v3617
        %v3656 = vadd.f32 %v3263, %v3619
        %v3657 = vld [vmem:[#allocation2 + $0x8] sm:$0xc]
        %s3658 = scalar_lea.vmem [#allocation9], 320
        %v3659 = vld [vmem:[%s3658] sm:$0xf]
        %v3660 = vld [vmem:[%s3658 + $0x4] sm:$0xf]
        %v3661 = vld [vmem:[%s3658 + $0x8] sm:$0xf]
        %v3662 = vld [vmem:[%s3658 + $0xc] sm:$0xf]
        %v3663 = vld [vmem:[%s3658 + $0x10] sm:$0xf]
        %v3664 = vld [vmem:[%s3658 + $0x14] sm:$0xf]
        %v3665 = vld [vmem:[%s3658 + $0x18] sm:$0xf]
        %v3666 = vld [vmem:[%s3658 + $0x1c] sm:$0xf]
        %v3667 = vld [vmem:[%s3658 + $0x20] sm:$0xf]
        %v3668 = vld [vmem:[%s3658 + $0x24] sm:$0xf]
        %v3669 = vld [vmem:[%s3658 + $0x28] sm:$0xf]
        %v3670 = vld [vmem:[%s3658 + $0x2c] sm:$0xf]
        %v3671 = vld [vmem:[%s3658 + $0x30] sm:$0xf]
        %v3672 = vld [vmem:[%s3658 + $0x34] sm:$0xf]
        %v3673 = vld [vmem:[%s3658 + $0x38] sm:$0xf]
        %v3674 = vld [vmem:[%s3658 + $0x3c] sm:$0xf]
        %v3676 = vunpack.c.l.b16 %v3657
        %v3677 = vpack.c.b16 %v2971, %v3676
        %vm3678 = vcmask 1045504
        %v3679 = vrot.slane %v3677, 2
        %v3680 = vrot.slane %v3008, 2
        %v3681 = vsel %vm3678, %v3679, %v3680
        %v3682 = vrot.slane %v3009, 2
        %v3683 = vsel %vm3678, %v3680, %v3682
        %v3684 = vrot.slane %v3010, 2
        %v3685 = vsel %vm3678, %v3682, %v3684
        %v3686 = vrot.slane %v3011, 2
        %v3687 = vsel %vm3678, %v3684, %v3686
        %v3688 = vrot.slane %v3012, 2
        %v3689 = vsel %vm3678, %v3686, %v3688
        %v3690 = vrot.slane %v3013, 2
        %v3691 = vsel %vm3678, %v3688, %v3690
        %v3692 = vrot.slane %v3014, 2
        %v3693 = vsel %vm3678, %v3690, %v3692
        %v3694 = vrot.slane %v3015, 2
        %v3695 = vsel %vm3678, %v3692, %v3694
        %v3696 = vrot.slane %v3016, 2
        %v3697 = vsel %vm3678, %v3694, %v3696
        %v3698 = vrot.slane %v3017, 2
        %v3699 = vsel %vm3678, %v3696, %v3698
        %v3700 = vrot.slane %v3018, 2
        %v3701 = vsel %vm3678, %v3698, %v3700
        %v3702 = vrot.slane %v3019, 2
        %v3703 = vsel %vm3678, %v3700, %v3702
        %v3704 = vrot.slane %v3020, 2
        %v3705 = vsel %vm3678, %v3702, %v3704
        %v3706 = vrot.slane %v3021, 2
        %v3707 = vsel %vm3678, %v3704, %v3706
        %v3708 = vrot.slane %v3022, 2
        %v3709 = vsel %vm3678, %v3706, %v3708
        %v3710 = vrot.slane %v3023, 2
        %v3711 = vsel %vm3678, %v3708, %v3710
        %v3712 = vrot.slane %v3024, 2
        %v3713 = vsel %vm3678, %v3710, %v3712
        %v3714 = vrot.slane %v3284, 2
        %v3715 = vsel %vm3678, %v3712, %v3714
        %v3750 = vunpack.c.l.b16 %v3659
        %v3751 = vunpack.c.l.b16 %v3660
        %v3752 = vunpack.c.l.b16 %v3661
        %v3753 = vunpack.c.l.b16 %v3662
        %v3754 = vunpack.c.l.b16 %v3663
        %v3755 = vunpack.c.l.b16 %v3664
        %v3756 = vunpack.c.l.b16 %v3665
        %v3757 = vunpack.c.l.b16 %v3666
        %v3758 = vunpack.c.l.b16 %v3667
        %v3759 = vunpack.c.l.b16 %v3668
        %v3760 = vunpack.c.l.b16 %v3669
        %v3761 = vunpack.c.l.b16 %v3670
        %v3762 = vunpack.c.l.b16 %v3671
        %v3763 = vunpack.c.l.b16 %v3672
        %v3764 = vunpack.c.l.b16 %v3673
        %v3765 = vunpack.c.l.b16 %v3674
        %v3766 = vpack.c.b16 %v3751, %v3750
        %v3767 = vpack.c.b16 %v3753, %v3752
        %v3768 = vpack.c.b16 %v3755, %v3754
        %v3769 = vpack.c.b16 %v3757, %v3756
        %v3770 = vpack.c.b16 %v3759, %v3758
        %v3771 = vpack.c.b16 %v3761, %v3760
        %v3772 = vpack.c.b16 %v3763, %v3762
        %v3773 = vpack.c.b16 %v3765, %v3764
        %3782 = vmatpush.bf16.msra.mxu0 %v3773
        %3783 = vmatpush.bf16.msra.mxu0 %v3772
        %3784 = vmatpush.bf16.msra.mxu0 %v3771
        %3785 = vmatpush.bf16.msra.mxu0 %v3770
        %3786 = vmatpush.bf16.msra.mxu0 %v3769
        %3787 = vmatpush.bf16.msra.mxu0 %v3768
        %3788 = vmatpush.bf16.msra.mxu0 %v3767
        %3789 = vmatpush.bf16.msra.mxu0 %v3766
        %3790 = vmatmul.bf16.gmra.mxu0 %v3681
        %v3791 = vpop.f32.mrf.mxu0
        %v3792 = vadd.f32 0.0, %v3791
        %v3793 = vpop.f32.mrf.mxu0
        %v3794 = vadd.f32 0.0, %v3793
        %3795 = vmatmul.bf16.gmra.mxu0 %v3683
        %v3796 = vpop.f32.mrf.mxu0
        %v3797 = vadd.f32 0.0, %v3796
        %v3798 = vpop.f32.mrf.mxu0
        %v3799 = vadd.f32 0.0, %v3798
        %3800 = vmatmul.bf16.gmra.mxu0 %v3685
        %v3801 = vpop.f32.mrf.mxu0
        %v3802 = vadd.f32 0.0, %v3801
        %v3803 = vpop.f32.mrf.mxu0
        %v3804 = vadd.f32 0.0, %v3803
        %3805 = vmatmul.bf16.gmra.mxu0 %v3687
        %v3806 = vpop.f32.mrf.mxu0
        %v3807 = vadd.f32 0.0, %v3806
        %v3808 = vpop.f32.mrf.mxu0
        %v3809 = vadd.f32 0.0, %v3808
        %3810 = vmatmul.bf16.gmra.mxu0 %v3689
        %v3811 = vpop.f32.mrf.mxu0
        %v3812 = vadd.f32 0.0, %v3811
        %v3813 = vpop.f32.mrf.mxu0
        %v3814 = vadd.f32 0.0, %v3813
        %3815 = vmatmul.bf16.gmra.mxu0 %v3691
        %v3816 = vpop.f32.mrf.mxu0
        %v3817 = vadd.f32 0.0, %v3816
        %v3818 = vpop.f32.mrf.mxu0
        %v3819 = vadd.f32 0.0, %v3818
        %3820 = vmatmul.bf16.gmra.mxu0 %v3693
        %v3821 = vpop.f32.mrf.mxu0
        %v3822 = vadd.f32 0.0, %v3821
        %v3823 = vpop.f32.mrf.mxu0
        %v3824 = vadd.f32 0.0, %v3823
        %3825 = vmatmul.bf16.gmra.mxu0 %v3695
        %v3826 = vpop.f32.mrf.mxu0
        %v3827 = vadd.f32 0.0, %v3826
        %v3828 = vpop.f32.mrf.mxu0
        %v3829 = vadd.f32 0.0, %v3828
        %3830 = vmatmul.bf16.gmra.mxu0 %v3697
        %v3831 = vpop.f32.mrf.mxu0
        %v3832 = vadd.f32 0.0, %v3831
        %v3833 = vpop.f32.mrf.mxu0
        %v3834 = vadd.f32 0.0, %v3833
        %3835 = vmatmul.bf16.gmra.mxu0 %v3699
        %v3836 = vpop.f32.mrf.mxu0
        %v3837 = vadd.f32 0.0, %v3836
        %v3838 = vpop.f32.mrf.mxu0
        %v3839 = vadd.f32 0.0, %v3838
        %3840 = vmatmul.bf16.gmra.mxu0 %v3701
        %v3841 = vpop.f32.mrf.mxu0
        %v3842 = vadd.f32 0.0, %v3841
        %v3843 = vpop.f32.mrf.mxu0
        %v3844 = vadd.f32 0.0, %v3843
        %3845 = vmatmul.bf16.gmra.mxu0 %v3703
        %v3846 = vpop.f32.mrf.mxu0
        %v3847 = vadd.f32 0.0, %v3846
        %v3848 = vpop.f32.mrf.mxu0
        %v3849 = vadd.f32 0.0, %v3848
        %3850 = vmatmul.bf16.gmra.mxu0 %v3705
        %v3851 = vpop.f32.mrf.mxu0
        %v3852 = vadd.f32 0.0, %v3851
        %v3853 = vpop.f32.mrf.mxu0
        %v3854 = vadd.f32 0.0, %v3853
        %3855 = vmatmul.bf16.gmra.mxu0 %v3707
        %v3856 = vpop.f32.mrf.mxu0
        %v3857 = vadd.f32 0.0, %v3856
        %v3858 = vpop.f32.mrf.mxu0
        %v3859 = vadd.f32 0.0, %v3858
        %3860 = vmatmul.bf16.gmra.mxu0 %v3709
        %v3861 = vpop.f32.mrf.mxu0
        %v3862 = vadd.f32 0.0, %v3861
        %v3863 = vpop.f32.mrf.mxu0
        %v3864 = vadd.f32 0.0, %v3863
        %3865 = vmatmul.bf16.gmra.mxu0 %v3711
        %v3866 = vpop.f32.mrf.mxu0
        %v3867 = vadd.f32 0.0, %v3866
        %v3868 = vpop.f32.mrf.mxu0
        %v3869 = vadd.f32 0.0, %v3868
        %3870 = vmatmul.bf16.gmra.mxu0 %v3713
        %v3871 = vpop.f32.mrf.mxu0
        %v3872 = vadd.f32 0.0, %v3871
        %v3873 = vpop.f32.mrf.mxu0
        %v3874 = vadd.f32 0.0, %v3873
        %3875 = vmatmul.bf16.gmra.mxu0 %v3715
        %v3876 = vpop.f32.mrf.mxu0
        %v3877 = vadd.f32 0.0, %v3876
        %v3878 = vpop.f32.mrf.mxu0
        %v3879 = vadd.f32 0.0, %v3878
        %3880 = vdwg.mxu0
        %v3881 = vadd.f32 %v3621, %v3792
        %v3882 = vadd.f32 %v3622, %v3794
        %v3883 = vadd.f32 %v3623, %v3797
        %v3884 = vadd.f32 %v3624, %v3799
        %v3885 = vadd.f32 %v3625, %v3802
        %v3886 = vadd.f32 %v3626, %v3804
        %v3887 = vadd.f32 %v3627, %v3807
        %v3888 = vadd.f32 %v3628, %v3809
        %v3889 = vadd.f32 %v3629, %v3812
        %v3890 = vadd.f32 %v3630, %v3814
        %v3891 = vadd.f32 %v3631, %v3817
        %v3892 = vadd.f32 %v3632, %v3819
        %v3893 = vadd.f32 %v3633, %v3822
        %v3894 = vadd.f32 %v3634, %v3824
        %v3895 = vadd.f32 %v3635, %v3827
        %v3896 = vadd.f32 %v3636, %v3829
        %v3897 = vadd.f32 %v3637, %v3832
        %v3898 = vadd.f32 %v3638, %v3834
        %v3899 = vadd.f32 %v3639, %v3837
        %v3900 = vadd.f32 %v3640, %v3839
        %v3901 = vadd.f32 %v3641, %v3842
        %v3902 = vadd.f32 %v3642, %v3844
        %v3903 = vadd.f32 %v3643, %v3847
        %v3904 = vadd.f32 %v3644, %v3849
        %v3905 = vadd.f32 %v3645, %v3852
        %v3906 = vadd.f32 %v3646, %v3854
        %v3907 = vadd.f32 %v3647, %v3857
        %v3908 = vadd.f32 %v3648, %v3859
        %v3909 = vadd.f32 %v3649, %v3862
        %v3910 = vadd.f32 %v3650, %v3864
        %v3911 = vadd.f32 %v3651, %v3867
        %v3912 = vadd.f32 %v3652, %v3869
        %v3913 = vadd.f32 %v3653, %v3872
        %v3914 = vadd.f32 %v3654, %v3874
        %v3915 = vadd.f32 %v3655, %v3877
        %v3916 = vadd.f32 %v3656, %v3879
        %v3917 = vld [vmem:[#allocation2 + $0x10] sm:$0xc]
        %v3918 = vld [vmem:[#allocation2 + $0x14] sm:$0xf]
        %v3919 = vld [vmem:[#allocation2 + $0x18] sm:$0xf]
        %v3920 = vld [vmem:[#allocation2 + $0x1c] sm:$0xf]
        %v3921 = vld [vmem:[#allocation2 + $0x20] sm:$0xf]
        %v3922 = vld [vmem:[#allocation2 + $0x24] sm:$0xf]
        %v3923 = vld [vmem:[#allocation2 + $0x28] sm:$0xf]
        %v3924 = vld [vmem:[#allocation2 + $0x2c] sm:$0xf]
        %v3925 = vld [vmem:[#allocation2 + $0x30] sm:$0xf]
        %v3926 = vld [vmem:[#allocation2 + $0x34] sm:$0xf]
        %v3927 = vld [vmem:[#allocation2 + $0x38] sm:$0xf]
        %v3928 = vld [vmem:[#allocation2 + $0x3c] sm:$0xf]
        %v3929 = vld [vmem:[#allocation2 + $0x40] sm:$0xf]
        %v3930 = vld [vmem:[#allocation2 + $0x44] sm:$0xf]
        %v3931 = vld [vmem:[#allocation2 + $0x48] sm:$0xf]
        %v3932 = vld [vmem:[#allocation2 + $0x4c] sm:$0xf]
        %v3933 = vld [vmem:[#allocation2 + $0x50] sm:$0xf]
        %v3934 = vld [vmem:[#allocation2 + $0x54] sm:$0xf]
        %v3935 = vld [vmem:[#allocation2 + $0x58] sm:$0xf]
        %v3936 = vld [vmem:[#allocation2 + $0x5c] sm:$0xf]
        %v3937 = vld [vmem:[#allocation2 + $0x60] sm:$0xf]
        %v3938 = vld [vmem:[#allocation2 + $0x64] sm:$0xf]
        %v3939 = vld [vmem:[#allocation2 + $0x68] sm:$0xf]
        %v3940 = vld [vmem:[#allocation2 + $0x6c] sm:$0xf]
        %v3941 = vld [vmem:[#allocation2 + $0x70] sm:$0xf]
        %v3942 = vld [vmem:[#allocation2 + $0x74] sm:$0xf]
        %v3943 = vld [vmem:[#allocation2 + $0x78] sm:$0xf]
        %v3944 = vld [vmem:[#allocation2 + $0x7c] sm:$0xf]
        %v3945 = vld [vmem:[#allocation2 + $0x80] sm:$0xf]
        %v3946 = vld [vmem:[#allocation2 + $0x84] sm:$0xf]
        %v3947 = vld [vmem:[#allocation2 + $0x88] sm:$0xf]
        %v3948 = vld [vmem:[#allocation2 + $0x8c] sm:$0xf]
        %v3949 = vld [vmem:[#allocation2 + $0x90] sm:$0xf]
        %v3950 = vld [vmem:[#allocation2 + $0x94] sm:$0xf]
        %v3951 = vld [vmem:[#allocation2 + $0x98] sm:$0xf]
        %v3952 = vld [vmem:[#allocation2 + $0x9c] sm:$0xf]
        %v3953 = vld [vmem:[#allocation2 + $0xa0] sm:$0x3]
        %s3954 = scalar_lea.vmem [#allocation9], 384
        %v3955 = vld [vmem:[%s3954] sm:$0xf]
        %v3956 = vld [vmem:[%s3954 + $0x4] sm:$0xf]
        %v3957 = vld [vmem:[%s3954 + $0x8] sm:$0xf]
        %v3958 = vld [vmem:[%s3954 + $0xc] sm:$0xf]
        %v3959 = vld [vmem:[%s3954 + $0x10] sm:$0xf]
        %v3960 = vld [vmem:[%s3954 + $0x14] sm:$0xf]
        %v3961 = vld [vmem:[%s3954 + $0x18] sm:$0xf]
        %v3962 = vld [vmem:[%s3954 + $0x1c] sm:$0xf]
        %v3963 = vld [vmem:[%s3954 + $0x20] sm:$0xf]
        %v3964 = vld [vmem:[%s3954 + $0x24] sm:$0xf]
        %v3965 = vld [vmem:[%s3954 + $0x28] sm:$0xf]
        %v3966 = vld [vmem:[%s3954 + $0x2c] sm:$0xf]
        %v3967 = vld [vmem:[%s3954 + $0x30] sm:$0xf]
        %v3968 = vld [vmem:[%s3954 + $0x34] sm:$0xf]
        %v3969 = vld [vmem:[%s3954 + $0x38] sm:$0xf]
        %v3970 = vld [vmem:[%s3954 + $0x3c] sm:$0xf]
        %v4008 = vunpack.c.l.b16 %v3917
        %v4009 = vunpack.c.l.b16 %v3918
        %v4010 = vunpack.c.l.b16 %v3919
        %v4011 = vunpack.c.l.b16 %v3920
        %v4012 = vunpack.c.l.b16 %v3921
        %v4013 = vunpack.c.l.b16 %v3922
        %v4014 = vunpack.c.l.b16 %v3923
        %v4015 = vunpack.c.l.b16 %v3924
        %v4016 = vunpack.c.l.b16 %v3925
        %v4017 = vunpack.c.l.b16 %v3926
        %v4018 = vunpack.c.l.b16 %v3927
        %v4019 = vunpack.c.l.b16 %v3928
        %v4020 = vunpack.c.l.b16 %v3929
        %v4021 = vunpack.c.l.b16 %v3930
        %v4022 = vunpack.c.l.b16 %v3931
        %v4023 = vunpack.c.l.b16 %v3932
        %v4024 = vunpack.c.l.b16 %v3933
        %v4025 = vunpack.c.l.b16 %v3934
        %v4026 = vunpack.c.l.b16 %v3935
        %v4027 = vunpack.c.l.b16 %v3936
        %v4028 = vunpack.c.l.b16 %v3937
        %v4029 = vunpack.c.l.b16 %v3938
        %v4030 = vunpack.c.l.b16 %v3939
        %v4031 = vunpack.c.l.b16 %v3940
        %v4032 = vunpack.c.l.b16 %v3941
        %v4033 = vunpack.c.l.b16 %v3942
        %v4034 = vunpack.c.l.b16 %v3943
        %v4035 = vunpack.c.l.b16 %v3944
        %v4036 = vunpack.c.l.b16 %v3945
        %v4037 = vunpack.c.l.b16 %v3946
        %v4038 = vunpack.c.l.b16 %v3947
        %v4039 = vunpack.c.l.b16 %v3948
        %v4040 = vunpack.c.l.b16 %v3949
        %v4041 = vunpack.c.l.b16 %v3950
        %v4042 = vunpack.c.l.b16 %v3951
        %v4043 = vunpack.c.l.b16 %v3952
        %v4044 = vunpack.c.l.b16 %v3953
        %v4045 = vpack.c.b16 %v4009, %v4008
        %v4046 = vpack.c.b16 %v4011, %v4010
        %v4047 = vpack.c.b16 %v4013, %v4012
        %v4048 = vpack.c.b16 %v4015, %v4014
        %v4049 = vpack.c.b16 %v4017, %v4016
        %v4050 = vpack.c.b16 %v4019, %v4018
        %v4051 = vpack.c.b16 %v4021, %v4020
        %v4052 = vpack.c.b16 %v4023, %v4022
        %v4053 = vpack.c.b16 %v4025, %v4024
        %v4054 = vpack.c.b16 %v4027, %v4026
        %v4055 = vpack.c.b16 %v4029, %v4028
        %v4056 = vpack.c.b16 %v4031, %v4030
        %v4057 = vpack.c.b16 %v4033, %v4032
        %v4058 = vpack.c.b16 %v4035, %v4034
        %v4059 = vpack.c.b16 %v4037, %v4036
        %v4060 = vpack.c.b16 %v4039, %v4038
        %v4061 = vpack.c.b16 %v4041, %v4040
        %v4062 = vpack.c.b16 %v4043, %v4042
        %v4063 = vpack.c.b16 %v4044, %v4044
        %v4064 = vrot.slane %v4045, 2
        %v4065 = vrot.slane %v4046, 2
        %v4066 = vsel %vm3678, %v4064, %v4065
        %v4067 = vrot.slane %v4047, 2
        %v4068 = vsel %vm3678, %v4065, %v4067
        %v4069 = vrot.slane %v4048, 2
        %v4070 = vsel %vm3678, %v4067, %v4069
        %v4071 = vrot.slane %v4049, 2
        %v4072 = vsel %vm3678, %v4069, %v4071
        %v4073 = vrot.slane %v4050, 2
        %v4074 = vsel %vm3678, %v4071, %v4073
        %v4075 = vrot.slane %v4051, 2
        %v4076 = vsel %vm3678, %v4073, %v4075
        %v4077 = vrot.slane %v4052, 2
        %v4078 = vsel %vm3678, %v4075, %v4077
        %v4079 = vrot.slane %v4053, 2
        %v4080 = vsel %vm3678, %v4077, %v4079
        %v4081 = vrot.slane %v4054, 2
        %v4082 = vsel %vm3678, %v4079, %v4081
        %v4083 = vrot.slane %v4055, 2
        %v4084 = vsel %vm3678, %v4081, %v4083
        %v4085 = vrot.slane %v4056, 2
        %v4086 = vsel %vm3678, %v4083, %v4085
        %v4087 = vrot.slane %v4057, 2
        %v4088 = vsel %vm3678, %v4085, %v4087
        %v4089 = vrot.slane %v4058, 2
        %v4090 = vsel %vm3678, %v4087, %v4089
        %v4091 = vrot.slane %v4059, 2
        %v4092 = vsel %vm3678, %v4089, %v4091
        %v4093 = vrot.slane %v4060, 2
        %v4094 = vsel %vm3678, %v4091, %v4093
        %v4095 = vrot.slane %v4061, 2
        %v4096 = vsel %vm3678, %v4093, %v4095
        %v4097 = vrot.slane %v4062, 2
        %v4098 = vsel %vm3678, %v4095, %v4097
        %v4099 = vrot.slane %v4063, 2
        %v4100 = vsel %vm3678, %v4097, %v4099
        %v4135 = vunpack.c.l.b16 %v3955
        %v4136 = vunpack.c.l.b16 %v3956
        %v4137 = vunpack.c.l.b16 %v3957
        %v4138 = vunpack.c.l.b16 %v3958
        %v4139 = vunpack.c.l.b16 %v3959
        %v4140 = vunpack.c.l.b16 %v3960
        %v4141 = vunpack.c.l.b16 %v3961
        %v4142 = vunpack.c.l.b16 %v3962
        %v4143 = vunpack.c.l.b16 %v3963
        %v4144 = vunpack.c.l.b16 %v3964
        %v4145 = vunpack.c.l.b16 %v3965
        %v4146 = vunpack.c.l.b16 %v3966
        %v4147 = vunpack.c.l.b16 %v3967
        %v4148 = vunpack.c.l.b16 %v3968
        %v4149 = vunpack.c.l.b16 %v3969
        %v4150 = vunpack.c.l.b16 %v3970
        %v4151 = vpack.c.b16 %v4136, %v4135
        %v4152 = vpack.c.b16 %v4138, %v4137
        %v4153 = vpack.c.b16 %v4140, %v4139
        %v4154 = vpack.c.b16 %v4142, %v4141
        %v4155 = vpack.c.b16 %v4144, %v4143
        %v4156 = vpack.c.b16 %v4146, %v4145
        %v4157 = vpack.c.b16 %v4148, %v4147
        %v4158 = vpack.c.b16 %v4150, %v4149
        %4167 = vmatpush.bf16.msra.mxu0 %v4158
        %4168 = vmatpush.bf16.msra.mxu0 %v4157
        %4169 = vmatpush.bf16.msra.mxu0 %v4156
        %4170 = vmatpush.bf16.msra.mxu0 %v4155
        %4171 = vmatpush.bf16.msra.mxu0 %v4154
        %4172 = vmatpush.bf16.msra.mxu0 %v4153
        %4173 = vmatpush.bf16.msra.mxu0 %v4152
        %4174 = vmatpush.bf16.msra.mxu0 %v4151
        %4175 = vmatmul.bf16.gmra.mxu0 %v4066
        %v4176 = vpop.f32.mrf.mxu0
        %v4177 = vadd.f32 0.0, %v4176
        %v4178 = vpop.f32.mrf.mxu0
        %v4179 = vadd.f32 0.0, %v4178
        %4180 = vmatmul.bf16.gmra.mxu0 %v4068
        %v4181 = vpop.f32.mrf.mxu0
        %v4182 = vadd.f32 0.0, %v4181
        %v4183 = vpop.f32.mrf.mxu0
        %v4184 = vadd.f32 0.0, %v4183
        %4185 = vmatmul.bf16.gmra.mxu0 %v4070
        %v4186 = vpop.f32.mrf.mxu0
        %v4187 = vadd.f32 0.0, %v4186
        %v4188 = vpop.f32.mrf.mxu0
        %v4189 = vadd.f32 0.0, %v4188
        %4190 = vmatmul.bf16.gmra.mxu0 %v4072
        %v4191 = vpop.f32.mrf.mxu0
        %v4192 = vadd.f32 0.0, %v4191
        %v4193 = vpop.f32.mrf.mxu0
        %v4194 = vadd.f32 0.0, %v4193
        %4195 = vmatmul.bf16.gmra.mxu0 %v4074
        %v4196 = vpop.f32.mrf.mxu0
        %v4197 = vadd.f32 0.0, %v4196
        %v4198 = vpop.f32.mrf.mxu0
        %v4199 = vadd.f32 0.0, %v4198
        %4200 = vmatmul.bf16.gmra.mxu0 %v4076
        %v4201 = vpop.f32.mrf.mxu0
        %v4202 = vadd.f32 0.0, %v4201
        %v4203 = vpop.f32.mrf.mxu0
        %v4204 = vadd.f32 0.0, %v4203
        %4205 = vmatmul.bf16.gmra.mxu0 %v4078
        %v4206 = vpop.f32.mrf.mxu0
        %v4207 = vadd.f32 0.0, %v4206
        %v4208 = vpop.f32.mrf.mxu0
        %v4209 = vadd.f32 0.0, %v4208
        %4210 = vmatmul.bf16.gmra.mxu0 %v4080
        %v4211 = vpop.f32.mrf.mxu0
        %v4212 = vadd.f32 0.0, %v4211
        %v4213 = vpop.f32.mrf.mxu0
        %v4214 = vadd.f32 0.0, %v4213
        %4215 = vmatmul.bf16.gmra.mxu0 %v4082
        %v4216 = vpop.f32.mrf.mxu0
        %v4217 = vadd.f32 0.0, %v4216
        %v4218 = vpop.f32.mrf.mxu0
        %v4219 = vadd.f32 0.0, %v4218
        %4220 = vmatmul.bf16.gmra.mxu0 %v4084
        %v4221 = vpop.f32.mrf.mxu0
        %v4222 = vadd.f32 0.0, %v4221
        %v4223 = vpop.f32.mrf.mxu0
        %v4224 = vadd.f32 0.0, %v4223
        %4225 = vmatmul.bf16.gmra.mxu0 %v4086
        %v4226 = vpop.f32.mrf.mxu0
        %v4227 = vadd.f32 0.0, %v4226
        %v4228 = vpop.f32.mrf.mxu0
        %v4229 = vadd.f32 0.0, %v4228
        %4230 = vmatmul.bf16.gmra.mxu0 %v4088
        %v4231 = vpop.f32.mrf.mxu0
        %v4232 = vadd.f32 0.0, %v4231
        %v4233 = vpop.f32.mrf.mxu0
        %v4234 = vadd.f32 0.0, %v4233
        %4235 = vmatmul.bf16.gmra.mxu0 %v4090
        %v4236 = vpop.f32.mrf.mxu0
        %v4237 = vadd.f32 0.0, %v4236
        %v4238 = vpop.f32.mrf.mxu0
        %v4239 = vadd.f32 0.0, %v4238
        %4240 = vmatmul.bf16.gmra.mxu0 %v4092
        %v4241 = vpop.f32.mrf.mxu0
        %v4242 = vadd.f32 0.0, %v4241
        %v4243 = vpop.f32.mrf.mxu0
        %v4244 = vadd.f32 0.0, %v4243
        %4245 = vmatmul.bf16.gmra.mxu0 %v4094
        %v4246 = vpop.f32.mrf.mxu0
        %v4247 = vadd.f32 0.0, %v4246
        %v4248 = vpop.f32.mrf.mxu0
        %v4249 = vadd.f32 0.0, %v4248
        %4250 = vmatmul.bf16.gmra.mxu0 %v4096
        %v4251 = vpop.f32.mrf.mxu0
        %v4252 = vadd.f32 0.0, %v4251
        %v4253 = vpop.f32.mrf.mxu0
        %v4254 = vadd.f32 0.0, %v4253
        %4255 = vmatmul.bf16.gmra.mxu0 %v4098
        %v4256 = vpop.f32.mrf.mxu0
        %v4257 = vadd.f32 0.0, %v4256
        %v4258 = vpop.f32.mrf.mxu0
        %v4259 = vadd.f32 0.0, %v4258
        %4260 = vmatmul.bf16.gmra.mxu0 %v4100
        %v4261 = vpop.f32.mrf.mxu0
        %v4262 = vadd.f32 0.0, %v4261
        %v4263 = vpop.f32.mrf.mxu0
        %v4264 = vadd.f32 0.0, %v4263
        %4265 = vdwg.mxu0
        %v4266 = vadd.f32 %v3881, %v4177
        %v4267 = vadd.f32 %v3882, %v4179
        %v4268 = vadd.f32 %v3883, %v4182
        %v4269 = vadd.f32 %v3884, %v4184
        %v4270 = vadd.f32 %v3885, %v4187
        %v4271 = vadd.f32 %v3886, %v4189
        %v4272 = vadd.f32 %v3887, %v4192
        %v4273 = vadd.f32 %v3888, %v4194
        %v4274 = vadd.f32 %v3889, %v4197
        %v4275 = vadd.f32 %v3890, %v4199
        %v4276 = vadd.f32 %v3891, %v4202
        %v4277 = vadd.f32 %v3892, %v4204
        %v4278 = vadd.f32 %v3893, %v4207
        %v4279 = vadd.f32 %v3894, %v4209
        %v4280 = vadd.f32 %v3895, %v4212
        %v4281 = vadd.f32 %v3896, %v4214
        %v4282 = vadd.f32 %v3897, %v4217
        %v4283 = vadd.f32 %v3898, %v4219
        %v4284 = vadd.f32 %v3899, %v4222
        %v4285 = vadd.f32 %v3900, %v4224
        %v4286 = vadd.f32 %v3901, %v4227
        %v4287 = vadd.f32 %v3902, %v4229
        %v4288 = vadd.f32 %v3903, %v4232
        %v4289 = vadd.f32 %v3904, %v4234
        %v4290 = vadd.f32 %v3905, %v4237
        %v4291 = vadd.f32 %v3906, %v4239
        %v4292 = vadd.f32 %v3907, %v4242
        %v4293 = vadd.f32 %v3908, %v4244
        %v4294 = vadd.f32 %v3909, %v4247
        %v4295 = vadd.f32 %v3910, %v4249
        %v4296 = vadd.f32 %v3911, %v4252
        %v4297 = vadd.f32 %v3912, %v4254
        %v4298 = vadd.f32 %v3913, %v4257
        %v4299 = vadd.f32 %v3914, %v4259
        %v4300 = vadd.f32 %v3915, %v4262
        %v4301 = vadd.f32 %v3916, %v4264
        %v4302 = vld [vmem:[#allocation2 + $0xa0] sm:$0x7]
        %s4303 = scalar_lea.vmem [#allocation9], 448
        %v4304 = vld [vmem:[%s4303] sm:$0xf]
        %v4305 = vld [vmem:[%s4303 + $0x4] sm:$0xf]
        %v4306 = vld [vmem:[%s4303 + $0x8] sm:$0xf]
        %v4307 = vld [vmem:[%s4303 + $0xc] sm:$0xf]
        %v4308 = vld [vmem:[%s4303 + $0x10] sm:$0xf]
        %v4309 = vld [vmem:[%s4303 + $0x14] sm:$0xf]
        %v4310 = vld [vmem:[%s4303 + $0x18] sm:$0xf]
        %v4311 = vld [vmem:[%s4303 + $0x1c] sm:$0xf]
        %v4312 = vld [vmem:[%s4303 + $0x20] sm:$0xf]
        %v4313 = vld [vmem:[%s4303 + $0x24] sm:$0xf]
        %v4314 = vld [vmem:[%s4303 + $0x28] sm:$0xf]
        %v4315 = vld [vmem:[%s4303 + $0x2c] sm:$0xf]
        %v4316 = vld [vmem:[%s4303 + $0x30] sm:$0xf]
        %v4317 = vld [vmem:[%s4303 + $0x34] sm:$0xf]
        %v4318 = vld [vmem:[%s4303 + $0x38] sm:$0xf]
        %v4319 = vld [vmem:[%s4303 + $0x3c] sm:$0xf]
        %v4321 = vunpack.c.l.b16 %v4302
        %v4322 = vpack.c.b16 %v4321, %v4321
        %vm4323 = vsmask.f32 5376
        %v4325 = vshrl.u32 %v4045, 16
        %v4327 = vrot.slane %v4325, 2
        %v4328 = vshll.u32 %v4045, 16
        %v4330 = vrot.slane %v4328, 3
        %v4331 = vor.u32 %v4327, %v4330
        %v4333 = vshrl.u32 %v4046, 16
        %v4335 = vrot.slane %v4333, 2
        %v4336 = vshll.u32 %v4046, 16
        %v4338 = vrot.slane %v4336, 3
        %v4339 = vor.u32 %v4335, %v4338
        %v4340 = vsel %vm4323, %v4331, %v4339
        %v4342 = vshrl.u32 %v4047, 16
        %v4344 = vrot.slane %v4342, 2
        %v4345 = vshll.u32 %v4047, 16
        %v4347 = vrot.slane %v4345, 3
        %v4348 = vor.u32 %v4344, %v4347
        %v4349 = vsel %vm4323, %v4339, %v4348
        %v4351 = vshrl.u32 %v4048, 16
        %v4353 = vrot.slane %v4351, 2
        %v4354 = vshll.u32 %v4048, 16
        %v4356 = vrot.slane %v4354, 3
        %v4357 = vor.u32 %v4353, %v4356
        %v4358 = vsel %vm4323, %v4348, %v4357
        %v4360 = vshrl.u32 %v4049, 16
        %v4362 = vrot.slane %v4360, 2
        %v4363 = vshll.u32 %v4049, 16
        %v4365 = vrot.slane %v4363, 3
        %v4366 = vor.u32 %v4362, %v4365
        %v4367 = vsel %vm4323, %v4357, %v4366
        %v4369 = vshrl.u32 %v4050, 16
        %v4371 = vrot.slane %v4369, 2
        %v4372 = vshll.u32 %v4050, 16
        %v4374 = vrot.slane %v4372, 3
        %v4375 = vor.u32 %v4371, %v4374
        %v4376 = vsel %vm4323, %v4366, %v4375
        %v4378 = vshrl.u32 %v4051, 16
        %v4380 = vrot.slane %v4378, 2
        %v4381 = vshll.u32 %v4051, 16
        %v4383 = vrot.slane %v4381, 3
        %v4384 = vor.u32 %v4380, %v4383
        %v4385 = vsel %vm4323, %v4375, %v4384
        %v4387 = vshrl.u32 %v4052, 16
        %v4389 = vrot.slane %v4387, 2
        %v4390 = vshll.u32 %v4052, 16
        %v4392 = vrot.slane %v4390, 3
        %v4393 = vor.u32 %v4389, %v4392
        %v4394 = vsel %vm4323, %v4384, %v4393
        %v4396 = vshrl.u32 %v4053, 16
        %v4398 = vrot.slane %v4396, 2
        %v4399 = vshll.u32 %v4053, 16
        %v4401 = vrot.slane %v4399, 3
        %v4402 = vor.u32 %v4398, %v4401
        %v4403 = vsel %vm4323, %v4393, %v4402
        %v4405 = vshrl.u32 %v4054, 16
        %v4407 = vrot.slane %v4405, 2
        %v4408 = vshll.u32 %v4054, 16
        %v4410 = vrot.slane %v4408, 3
        %v4411 = vor.u32 %v4407, %v4410
        %v4412 = vsel %vm4323, %v4402, %v4411
        %v4414 = vshrl.u32 %v4055, 16
        %v4416 = vrot.slane %v4414, 2
        %v4417 = vshll.u32 %v4055, 16
        %v4419 = vrot.slane %v4417, 3
        %v4420 = vor.u32 %v4416, %v4419
        %v4421 = vsel %vm4323, %v4411, %v4420
        %v4423 = vshrl.u32 %v4056, 16
        %v4425 = vrot.slane %v4423, 2
        %v4426 = vshll.u32 %v4056, 16
        %v4428 = vrot.slane %v4426, 3
        %v4429 = vor.u32 %v4425, %v4428
        %v4430 = vsel %vm4323, %v4420, %v4429
        %v4432 = vshrl.u32 %v4057, 16
        %v4434 = vrot.slane %v4432, 2
        %v4435 = vshll.u32 %v4057, 16
        %v4437 = vrot.slane %v4435, 3
        %v4438 = vor.u32 %v4434, %v4437
        %v4439 = vsel %vm4323, %v4429, %v4438
        %v4441 = vshrl.u32 %v4058, 16
        %v4443 = vrot.slane %v4441, 2
        %v4444 = vshll.u32 %v4058, 16
        %v4446 = vrot.slane %v4444, 3
        %v4447 = vor.u32 %v4443, %v4446
        %v4448 = vsel %vm4323, %v4438, %v4447
        %v4450 = vshrl.u32 %v4059, 16
        %v4452 = vrot.slane %v4450, 2
        %v4453 = vshll.u32 %v4059, 16
        %v4455 = vrot.slane %v4453, 3
        %v4456 = vor.u32 %v4452, %v4455
        %v4457 = vsel %vm4323, %v4447, %v4456
        %v4459 = vshrl.u32 %v4060, 16
        %v4461 = vrot.slane %v4459, 2
        %v4462 = vshll.u32 %v4060, 16
        %v4464 = vrot.slane %v4462, 3
        %v4465 = vor.u32 %v4461, %v4464
        %v4466 = vsel %vm4323, %v4456, %v4465
        %v4468 = vshrl.u32 %v4061, 16
        %v4470 = vrot.slane %v4468, 2
        %v4471 = vshll.u32 %v4061, 16
        %v4473 = vrot.slane %v4471, 3
        %v4474 = vor.u32 %v4470, %v4473
        %v4475 = vsel %vm4323, %v4465, %v4474
        %v4477 = vshrl.u32 %v4062, 16
        %v4479 = vrot.slane %v4477, 2
        %v4480 = vshll.u32 %v4062, 16
        %v4482 = vrot.slane %v4480, 3
        %v4483 = vor.u32 %v4479, %v4482
        %v4484 = vsel %vm4323, %v4474, %v4483
        %v4486 = vshrl.u32 %v4322, 16
        %v4488 = vrot.slane %v4486, 2
        %v4489 = vshll.u32 %v4322, 16
        %v4491 = vrot.slane %v4489, 3
        %v4492 = vor.u32 %v4488, %v4491
        %v4493 = vsel %vm4323, %v4483, %v4492
        %v4528 = vunpack.c.l.b16 %v4304
        %v4529 = vunpack.c.l.b16 %v4305
        %v4530 = vunpack.c.l.b16 %v4306
        %v4531 = vunpack.c.l.b16 %v4307
        %v4532 = vunpack.c.l.b16 %v4308
        %v4533 = vunpack.c.l.b16 %v4309
        %v4534 = vunpack.c.l.b16 %v4310
        %v4535 = vunpack.c.l.b16 %v4311
        %v4536 = vunpack.c.l.b16 %v4312
        %v4537 = vunpack.c.l.b16 %v4313
        %v4538 = vunpack.c.l.b16 %v4314
        %v4539 = vunpack.c.l.b16 %v4315
        %v4540 = vunpack.c.l.b16 %v4316
        %v4541 = vunpack.c.l.b16 %v4317
        %v4542 = vunpack.c.l.b16 %v4318
        %v4543 = vunpack.c.l.b16 %v4319
        %v4544 = vpack.c.b16 %v4529, %v4528
        %v4545 = vpack.c.b16 %v4531, %v4530
        %v4546 = vpack.c.b16 %v4533, %v4532
        %v4547 = vpack.c.b16 %v4535, %v4534
        %v4548 = vpack.c.b16 %v4537, %v4536
        %v4549 = vpack.c.b16 %v4539, %v4538
        %v4550 = vpack.c.b16 %v4541, %v4540
        %v4551 = vpack.c.b16 %v4543, %v4542
        %4560 = vmatpush.bf16.msra.mxu0 %v4551
        %4561 = vmatpush.bf16.msra.mxu0 %v4550
        %4562 = vmatpush.bf16.msra.mxu0 %v4549
        %4563 = vmatpush.bf16.msra.mxu0 %v4548
        %4564 = vmatpush.bf16.msra.mxu0 %v4547
        %4565 = vmatpush.bf16.msra.mxu0 %v4546
        %4566 = vmatpush.bf16.msra.mxu0 %v4545
        %4567 = vmatpush.bf16.msra.mxu0 %v4544
        %4568 = vmatmul.bf16.gmra.mxu0 %v4340
        %v4569 = vpop.f32.mrf.mxu0
        %v4570 = vadd.f32 0.0, %v4569
        %v4571 = vpop.f32.mrf.mxu0
        %v4572 = vadd.f32 0.0, %v4571
        %4573 = vmatmul.bf16.gmra.mxu0 %v4349
        %v4574 = vpop.f32.mrf.mxu0
        %v4575 = vadd.f32 0.0, %v4574
        %v4576 = vpop.f32.mrf.mxu0
        %v4577 = vadd.f32 0.0, %v4576
        %4578 = vmatmul.bf16.gmra.mxu0 %v4358
        %v4579 = vpop.f32.mrf.mxu0
        %v4580 = vadd.f32 0.0, %v4579
        %v4581 = vpop.f32.mrf.mxu0
        %v4582 = vadd.f32 0.0, %v4581
        %4583 = vmatmul.bf16.gmra.mxu0 %v4367
        %v4584 = vpop.f32.mrf.mxu0
        %v4585 = vadd.f32 0.0, %v4584
        %v4586 = vpop.f32.mrf.mxu0
        %v4587 = vadd.f32 0.0, %v4586
        %4588 = vmatmul.bf16.gmra.mxu0 %v4376
        %v4589 = vpop.f32.mrf.mxu0
        %v4590 = vadd.f32 0.0, %v4589
        %v4591 = vpop.f32.mrf.mxu0
        %v4592 = vadd.f32 0.0, %v4591
        %4593 = vmatmul.bf16.gmra.mxu0 %v4385
        %v4594 = vpop.f32.mrf.mxu0
        %v4595 = vadd.f32 0.0, %v4594
        %v4596 = vpop.f32.mrf.mxu0
        %v4597 = vadd.f32 0.0, %v4596
        %4598 = vmatmul.bf16.gmra.mxu0 %v4394
        %v4599 = vpop.f32.mrf.mxu0
        %v4600 = vadd.f32 0.0, %v4599
        %v4601 = vpop.f32.mrf.mxu0
        %v4602 = vadd.f32 0.0, %v4601
        %4603 = vmatmul.bf16.gmra.mxu0 %v4403
        %v4604 = vpop.f32.mrf.mxu0
        %v4605 = vadd.f32 0.0, %v4604
        %v4606 = vpop.f32.mrf.mxu0
        %v4607 = vadd.f32 0.0, %v4606
        %4608 = vmatmul.bf16.gmra.mxu0 %v4412
        %v4609 = vpop.f32.mrf.mxu0
        %v4610 = vadd.f32 0.0, %v4609
        %v4611 = vpop.f32.mrf.mxu0
        %v4612 = vadd.f32 0.0, %v4611
        %4613 = vmatmul.bf16.gmra.mxu0 %v4421
        %v4614 = vpop.f32.mrf.mxu0
        %v4615 = vadd.f32 0.0, %v4614
        %v4616 = vpop.f32.mrf.mxu0
        %v4617 = vadd.f32 0.0, %v4616
        %4618 = vmatmul.bf16.gmra.mxu0 %v4430
        %v4619 = vpop.f32.mrf.mxu0
        %v4620 = vadd.f32 0.0, %v4619
        %v4621 = vpop.f32.mrf.mxu0
        %v4622 = vadd.f32 0.0, %v4621
        %4623 = vmatmul.bf16.gmra.mxu0 %v4439
        %v4624 = vpop.f32.mrf.mxu0
        %v4625 = vadd.f32 0.0, %v4624
        %v4626 = vpop.f32.mrf.mxu0
        %v4627 = vadd.f32 0.0, %v4626
        %4628 = vmatmul.bf16.gmra.mxu0 %v4448
        %v4629 = vpop.f32.mrf.mxu0
        %v4630 = vadd.f32 0.0, %v4629
        %v4631 = vpop.f32.mrf.mxu0
        %v4632 = vadd.f32 0.0, %v4631
        %4633 = vmatmul.bf16.gmra.mxu0 %v4457
        %v4634 = vpop.f32.mrf.mxu0
        %v4635 = vadd.f32 0.0, %v4634
        %v4636 = vpop.f32.mrf.mxu0
        %v4637 = vadd.f32 0.0, %v4636
        %4638 = vmatmul.bf16.gmra.mxu0 %v4466
        %v4639 = vpop.f32.mrf.mxu0
        %v4640 = vadd.f32 0.0, %v4639
        %v4641 = vpop.f32.mrf.mxu0
        %v4642 = vadd.f32 0.0, %v4641
        %4643 = vmatmul.bf16.gmra.mxu0 %v4475
        %v4644 = vpop.f32.mrf.mxu0
        %v4645 = vadd.f32 0.0, %v4644
        %v4646 = vpop.f32.mrf.mxu0
        %v4647 = vadd.f32 0.0, %v4646
        %4648 = vmatmul.bf16.gmra.mxu0 %v4484
        %v4649 = vpop.f32.mrf.mxu0
        %v4650 = vadd.f32 0.0, %v4649
        %v4651 = vpop.f32.mrf.mxu0
        %v4652 = vadd.f32 0.0, %v4651
        %4653 = vmatmul.bf16.gmra.mxu0 %v4493
        %v4654 = vpop.f32.mrf.mxu0
        %v4655 = vadd.f32 0.0, %v4654
        %v4656 = vpop.f32.mrf.mxu0
        %v4657 = vadd.f32 0.0, %v4656
        %4658 = vdwg.mxu0
        %v4659 = vadd.f32 %v4266, %v4570
        %v4660 = vadd.f32 %v4267, %v4572
        %v4661 = vadd.f32 %v4268, %v4575
        %v4662 = vadd.f32 %v4269, %v4577
        %v4663 = vadd.f32 %v4270, %v4580
        %v4664 = vadd.f32 %v4271, %v4582
        %v4665 = vadd.f32 %v4272, %v4585
        %v4666 = vadd.f32 %v4273, %v4587
        %v4667 = vadd.f32 %v4274, %v4590
        %v4668 = vadd.f32 %v4275, %v4592
        %v4669 = vadd.f32 %v4276, %v4595
        %v4670 = vadd.f32 %v4277, %v4597
        %v4671 = vadd.f32 %v4278, %v4600
        %v4672 = vadd.f32 %v4279, %v4602
        %v4673 = vadd.f32 %v4280, %v4605
        %v4674 = vadd.f32 %v4281, %v4607
        %v4675 = vadd.f32 %v4282, %v4610
        %v4676 = vadd.f32 %v4283, %v4612
        %v4677 = vadd.f32 %v4284, %v4615
        %v4678 = vadd.f32 %v4285, %v4617
        %v4679 = vadd.f32 %v4286, %v4620
        %v4680 = vadd.f32 %v4287, %v4622
        %v4681 = vadd.f32 %v4288, %v4625
        %v4682 = vadd.f32 %v4289, %v4627
        %v4683 = vadd.f32 %v4290, %v4630
        %v4684 = vadd.f32 %v4291, %v4632
        %v4685 = vadd.f32 %v4292, %v4635
        %v4686 = vadd.f32 %v4293, %v4637
        %v4687 = vadd.f32 %v4294, %v4640
        %v4688 = vadd.f32 %v4295, %v4642
        %v4689 = vadd.f32 %v4296, %v4645
        %v4690 = vadd.f32 %v4297, %v4647
        %v4691 = vadd.f32 %v4298, %v4650
        %v4692 = vadd.f32 %v4299, %v4652
        %v4693 = vadd.f32 %v4300, %v4655
        %v4694 = vadd.f32 %v4301, %v4657
        %v4695 = vld [vmem:[#allocation2 + $0x10] sm:$0x8]
        %s4696 = scalar_lea.vmem [#allocation9], 512
        %v4697 = vld [vmem:[%s4696] sm:$0xf]
        %v4698 = vld [vmem:[%s4696 + $0x4] sm:$0xf]
        %v4699 = vld [vmem:[%s4696 + $0x8] sm:$0xf]
        %v4700 = vld [vmem:[%s4696 + $0xc] sm:$0xf]
        %v4701 = vld [vmem:[%s4696 + $0x10] sm:$0xf]
        %v4702 = vld [vmem:[%s4696 + $0x14] sm:$0xf]
        %v4703 = vld [vmem:[%s4696 + $0x18] sm:$0xf]
        %v4704 = vld [vmem:[%s4696 + $0x1c] sm:$0xf]
        %v4705 = vld [vmem:[%s4696 + $0x20] sm:$0xf]
        %v4706 = vld [vmem:[%s4696 + $0x24] sm:$0xf]
        %v4707 = vld [vmem:[%s4696 + $0x28] sm:$0xf]
        %v4708 = vld [vmem:[%s4696 + $0x2c] sm:$0xf]
        %v4709 = vld [vmem:[%s4696 + $0x30] sm:$0xf]
        %v4710 = vld [vmem:[%s4696 + $0x34] sm:$0xf]
        %v4711 = vld [vmem:[%s4696 + $0x38] sm:$0xf]
        %v4712 = vld [vmem:[%s4696 + $0x3c] sm:$0xf]
        %v4714 = vunpack.c.l.b16 %v4695
        %v4715 = vpack.c.b16 %v4009, %v4714
        %vm4716 = vcmask 1044480
        %v4717 = vrot.slane %v4715, 3
        %v4718 = vrot.slane %v4046, 3
        %v4719 = vsel %vm4716, %v4717, %v4718
        %v4720 = vrot.slane %v4047, 3
        %v4721 = vsel %vm4716, %v4718, %v4720
        %v4722 = vrot.slane %v4048, 3
        %v4723 = vsel %vm4716, %v4720, %v4722
        %v4724 = vrot.slane %v4049, 3
        %v4725 = vsel %vm4716, %v4722, %v4724
        %v4726 = vrot.slane %v4050, 3
        %v4727 = vsel %vm4716, %v4724, %v4726
        %v4728 = vrot.slane %v4051, 3
        %v4729 = vsel %vm4716, %v4726, %v4728
        %v4730 = vrot.slane %v4052, 3
        %v4731 = vsel %vm4716, %v4728, %v4730
        %v4732 = vrot.slane %v4053, 3
        %v4733 = vsel %vm4716, %v4730, %v4732
        %v4734 = vrot.slane %v4054, 3
        %v4735 = vsel %vm4716, %v4732, %v4734
        %v4736 = vrot.slane %v4055, 3
        %v4737 = vsel %vm4716, %v4734, %v4736
        %v4738 = vrot.slane %v4056, 3
        %v4739 = vsel %vm4716, %v4736, %v4738
        %v4740 = vrot.slane %v4057, 3
        %v4741 = vsel %vm4716, %v4738, %v4740
        %v4742 = vrot.slane %v4058, 3
        %v4743 = vsel %vm4716, %v4740, %v4742
        %v4744 = vrot.slane %v4059, 3
        %v4745 = vsel %vm4716, %v4742, %v4744
        %v4746 = vrot.slane %v4060, 3
        %v4747 = vsel %vm4716, %v4744, %v4746
        %v4748 = vrot.slane %v4061, 3
        %v4749 = vsel %vm4716, %v4746, %v4748
        %v4750 = vrot.slane %v4062, 3
        %v4751 = vsel %vm4716, %v4748, %v4750
        %v4752 = vrot.slane %v4322, 3
        %v4753 = vsel %vm4716, %v4750, %v4752
        %v4788 = vunpack.c.l.b16 %v4697
        %v4789 = vunpack.c.l.b16 %v4698
        %v4790 = vunpack.c.l.b16 %v4699
        %v4791 = vunpack.c.l.b16 %v4700
        %v4792 = vunpack.c.l.b16 %v4701
        %v4793 = vunpack.c.l.b16 %v4702
        %v4794 = vunpack.c.l.b16 %v4703
        %v4795 = vunpack.c.l.b16 %v4704
        %v4796 = vunpack.c.l.b16 %v4705
        %v4797 = vunpack.c.l.b16 %v4706
        %v4798 = vunpack.c.l.b16 %v4707
        %v4799 = vunpack.c.l.b16 %v4708
        %v4800 = vunpack.c.l.b16 %v4709
        %v4801 = vunpack.c.l.b16 %v4710
        %v4802 = vunpack.c.l.b16 %v4711
        %v4803 = vunpack.c.l.b16 %v4712
        %v4804 = vpack.c.b16 %v4789, %v4788
        %v4805 = vpack.c.b16 %v4791, %v4790
        %v4806 = vpack.c.b16 %v4793, %v4792
        %v4807 = vpack.c.b16 %v4795, %v4794
        %v4808 = vpack.c.b16 %v4797, %v4796
        %v4809 = vpack.c.b16 %v4799, %v4798
        %v4810 = vpack.c.b16 %v4801, %v4800
        %v4811 = vpack.c.b16 %v4803, %v4802
        %4820 = vmatpush.bf16.msra.mxu0 %v4811
        %4821 = vmatpush.bf16.msra.mxu0 %v4810
        %4822 = vmatpush.bf16.msra.mxu0 %v4809
        %4823 = vmatpush.bf16.msra.mxu0 %v4808
        %4824 = vmatpush.bf16.msra.mxu0 %v4807
        %4825 = vmatpush.bf16.msra.mxu0 %v4806
        %4826 = vmatpush.bf16.msra.mxu0 %v4805
        %4827 = vmatpush.bf16.msra.mxu0 %v4804
        %4828 = vmatmul.bf16.gmra.mxu0 %v4719
        %v4829 = vpop.f32.mrf.mxu0
        %v4830 = vadd.f32 0.0, %v4829
        %v4831 = vpop.f32.mrf.mxu0
        %v4832 = vadd.f32 0.0, %v4831
        %4833 = vmatmul.bf16.gmra.mxu0 %v4721
        %v4834 = vpop.f32.mrf.mxu0
        %v4835 = vadd.f32 0.0, %v4834
        %v4836 = vpop.f32.mrf.mxu0
        %v4837 = vadd.f32 0.0, %v4836
        %4838 = vmatmul.bf16.gmra.mxu0 %v4723
        %v4839 = vpop.f32.mrf.mxu0
        %v4840 = vadd.f32 0.0, %v4839
        %v4841 = vpop.f32.mrf.mxu0
        %v4842 = vadd.f32 0.0, %v4841
        %4843 = vmatmul.bf16.gmra.mxu0 %v4725
        %v4844 = vpop.f32.mrf.mxu0
        %v4845 = vadd.f32 0.0, %v4844
        %v4846 = vpop.f32.mrf.mxu0
        %v4847 = vadd.f32 0.0, %v4846
        %4848 = vmatmul.bf16.gmra.mxu0 %v4727
        %v4849 = vpop.f32.mrf.mxu0
        %v4850 = vadd.f32 0.0, %v4849
        %v4851 = vpop.f32.mrf.mxu0
        %v4852 = vadd.f32 0.0, %v4851
        %4853 = vmatmul.bf16.gmra.mxu0 %v4729
        %v4854 = vpop.f32.mrf.mxu0
        %v4855 = vadd.f32 0.0, %v4854
        %v4856 = vpop.f32.mrf.mxu0
        %v4857 = vadd.f32 0.0, %v4856
        %4858 = vmatmul.bf16.gmra.mxu0 %v4731
        %v4859 = vpop.f32.mrf.mxu0
        %v4860 = vadd.f32 0.0, %v4859
        %v4861 = vpop.f32.mrf.mxu0
        %v4862 = vadd.f32 0.0, %v4861
        %4863 = vmatmul.bf16.gmra.mxu0 %v4733
        %v4864 = vpop.f32.mrf.mxu0
        %v4865 = vadd.f32 0.0, %v4864
        %v4866 = vpop.f32.mrf.mxu0
        %v4867 = vadd.f32 0.0, %v4866
        %4868 = vmatmul.bf16.gmra.mxu0 %v4735
        %v4869 = vpop.f32.mrf.mxu0
        %v4870 = vadd.f32 0.0, %v4869
        %v4871 = vpop.f32.mrf.mxu0
        %v4872 = vadd.f32 0.0, %v4871
        %4873 = vmatmul.bf16.gmra.mxu0 %v4737
        %v4874 = vpop.f32.mrf.mxu0
        %v4875 = vadd.f32 0.0, %v4874
        %v4876 = vpop.f32.mrf.mxu0
        %v4877 = vadd.f32 0.0, %v4876
        %4878 = vmatmul.bf16.gmra.mxu0 %v4739
        %v4879 = vpop.f32.mrf.mxu0
        %v4880 = vadd.f32 0.0, %v4879
        %v4881 = vpop.f32.mrf.mxu0
        %v4882 = vadd.f32 0.0, %v4881
        %4883 = vmatmul.bf16.gmra.mxu0 %v4741
        %v4884 = vpop.f32.mrf.mxu0
        %v4885 = vadd.f32 0.0, %v4884
        %v4886 = vpop.f32.mrf.mxu0
        %v4887 = vadd.f32 0.0, %v4886
        %4888 = vmatmul.bf16.gmra.mxu0 %v4743
        %v4889 = vpop.f32.mrf.mxu0
        %v4890 = vadd.f32 0.0, %v4889
        %v4891 = vpop.f32.mrf.mxu0
        %v4892 = vadd.f32 0.0, %v4891
        %4893 = vmatmul.bf16.gmra.mxu0 %v4745
        %v4894 = vpop.f32.mrf.mxu0
        %v4895 = vadd.f32 0.0, %v4894
        %v4896 = vpop.f32.mrf.mxu0
        %v4897 = vadd.f32 0.0, %v4896
        %4898 = vmatmul.bf16.gmra.mxu0 %v4747
        %v4899 = vpop.f32.mrf.mxu0
        %v4900 = vadd.f32 0.0, %v4899
        %v4901 = vpop.f32.mrf.mxu0
        %v4902 = vadd.f32 0.0, %v4901
        %4903 = vmatmul.bf16.gmra.mxu0 %v4749
        %v4904 = vpop.f32.mrf.mxu0
        %v4905 = vadd.f32 0.0, %v4904
        %v4906 = vpop.f32.mrf.mxu0
        %v4907 = vadd.f32 0.0, %v4906
        %4908 = vmatmul.bf16.gmra.mxu0 %v4751
        %v4909 = vpop.f32.mrf.mxu0
        %v4910 = vadd.f32 0.0, %v4909
        %v4911 = vpop.f32.mrf.mxu0
        %v4912 = vadd.f32 0.0, %v4911
        %4913 = vmatmul.bf16.gmra.mxu0 %v4753
        %v4914 = vpop.f32.mrf.mxu0
        %v4915 = vadd.f32 0.0, %v4914
        %v4916 = vpop.f32.mrf.mxu0
        %v4917 = vadd.f32 0.0, %v4916
        %4918 = vdwg.mxu0
        %v4919 = vadd.f32 %v4659, %v4830
        %v4920 = vadd.f32 %v4660, %v4832
        %v4921 = vadd.f32 %v4661, %v4835
        %v4922 = vadd.f32 %v4662, %v4837
        %v4923 = vadd.f32 %v4663, %v4840
        %v4924 = vadd.f32 %v4664, %v4842
        %v4925 = vadd.f32 %v4665, %v4845
        %v4926 = vadd.f32 %v4666, %v4847
        %v4927 = vadd.f32 %v4667, %v4850
        %v4928 = vadd.f32 %v4668, %v4852
        %v4929 = vadd.f32 %v4669, %v4855
        %v4930 = vadd.f32 %v4670, %v4857
        %v4931 = vadd.f32 %v4671, %v4860
        %v4932 = vadd.f32 %v4672, %v4862
        %v4933 = vadd.f32 %v4673, %v4865
        %v4934 = vadd.f32 %v4674, %v4867
        %v4935 = vadd.f32 %v4675, %v4870
        %v4936 = vadd.f32 %v4676, %v4872
        %v4937 = vadd.f32 %v4677, %v4875
        %v4938 = vadd.f32 %v4678, %v4877
        %v4939 = vadd.f32 %v4679, %v4880
        %v4940 = vadd.f32 %v4680, %v4882
        %v4941 = vadd.f32 %v4681, %v4885
        %v4942 = vadd.f32 %v4682, %v4887
        %v4943 = vadd.f32 %v4683, %v4890
        %v4944 = vadd.f32 %v4684, %v4892
        %v4945 = vadd.f32 %v4685, %v4895
        %v4946 = vadd.f32 %v4686, %v4897
        %v4947 = vadd.f32 %v4687, %v4900
        %v4948 = vadd.f32 %v4688, %v4902
        %v4949 = vadd.f32 %v4689, %v4905
        %v4950 = vadd.f32 %v4690, %v4907
        %v4951 = vadd.f32 %v4691, %v4910
        %v4952 = vadd.f32 %v4692, %v4912
        %v4953 = vadd.f32 %v4693, %v4915
        %v4954 = vadd.f32 %v4694, %v4917
        %v4955 = vld [vmem:[%s5] sm:$0x1]
        %v4957 = vperm.slane %v4955, 0
        %v4959 = vadd.f32 %v4919, %v4957
        %v4960 = vadd.f32 %v4920, %v4957
        %v4961 = vadd.f32 %v4921, %v4957
        %v4962 = vadd.f32 %v4922, %v4957
        %v4963 = vadd.f32 %v4923, %v4957
        %v4964 = vadd.f32 %v4924, %v4957
        %v4965 = vadd.f32 %v4925, %v4957
        %v4966 = vadd.f32 %v4926, %v4957
        %v4967 = vadd.f32 %v4927, %v4957
        %v4968 = vadd.f32 %v4928, %v4957
        %v4969 = vadd.f32 %v4929, %v4957
        %v4970 = vadd.f32 %v4930, %v4957
        %v4971 = vadd.f32 %v4931, %v4957
        %v4972 = vadd.f32 %v4932, %v4957
        %v4973 = vadd.f32 %v4933, %v4957
        %v4974 = vadd.f32 %v4934, %v4957
        %v4975 = vadd.f32 %v4935, %v4957
        %v4976 = vadd.f32 %v4936, %v4957
        %v4977 = vadd.f32 %v4937, %v4957
        %v4978 = vadd.f32 %v4938, %v4957
        %v4979 = vadd.f32 %v4939, %v4957
        %v4980 = vadd.f32 %v4940, %v4957
        %v4981 = vadd.f32 %v4941, %v4957
        %v4982 = vadd.f32 %v4942, %v4957
        %v4983 = vadd.f32 %v4943, %v4957
        %v4984 = vadd.f32 %v4944, %v4957
        %v4985 = vadd.f32 %v4945, %v4957
        %v4986 = vadd.f32 %v4946, %v4957
        %v4987 = vadd.f32 %v4947, %v4957
        %v4988 = vadd.f32 %v4948, %v4957
        %v4989 = vadd.f32 %v4949, %v4957
        %v4990 = vadd.f32 %v4950, %v4957
        %v4991 = vadd.f32 %v4951, %v4957
        %v4992 = vadd.f32 %v4952, %v4957
        %v4993 = vadd.f32 %v4953, %v4957
        %v4994 = vadd.f32 %v4954, %v4957
        %v5031 = vrot.slane %v4959, 2
        %v5032 = vrot.slane %v4959, 4
        %v5033 = vrot.slane %v4959, 6
        %v5034 = vrot.slane %v4960, 2
        %v5035 = vrot.slane %v4960, 4
        %v5036 = vrot.slane %v4960, 6
        %v5037 = vrot.slane %v4961, 2
        %v5038 = vrot.slane %v4961, 4
        %v5039 = vrot.slane %v4961, 6
        %v5040 = vrot.slane %v4962, 2
        %v5041 = vrot.slane %v4962, 4
        %v5042 = vrot.slane %v4962, 6
        %v5043 = vrot.slane %v4963, 4
        %v5044 = vrot.slane %v4963, 6
        %v5045 = vrot.slane %v4964, 2
        %v5046 = vrot.slane %v4964, 4
        %v5047 = vrot.slane %v4964, 6
        %v5048 = vrot.slane %v4965, 2
        %v5049 = vrot.slane %v4965, 6
        %v5050 = vrot.slane %v4966, 2
        %v5051 = vrot.slane %v4966, 4
        %v5052 = vrot.slane %v4966, 6
        %v5053 = vrot.slane %v4967, 2
        %v5054 = vrot.slane %v4967, 4
        %v5055 = vrot.slane %v4968, 2
        %v5056 = vrot.slane %v4968, 4
        %v5057 = vrot.slane %v4968, 6
        %v5058 = vrot.slane %v4969, 2
        %v5059 = vrot.slane %v4969, 4
        %v5060 = vrot.slane %v4969, 6
        %v5061 = vrot.slane %v4970, 2
        %v5062 = vrot.slane %v4970, 4
        %v5063 = vrot.slane %v4970, 6
        %v5064 = vrot.slane %v4971, 2
        %v5065 = vrot.slane %v4971, 4
        %v5066 = vrot.slane %v4971, 6
        %v5067 = vrot.slane %v4972, 4
        %v5068 = vrot.slane %v4972, 6
        %v5069 = vrot.slane %v4973, 2
        %v5070 = vrot.slane %v4973, 4
        %v5071 = vrot.slane %v4973, 6
        %v5072 = vrot.slane %v4974, 2
        %v5073 = vrot.slane %v4974, 6
        %v5074 = vrot.slane %v4975, 2
        %v5075 = vrot.slane %v4975, 4
        %v5076 = vrot.slane %v4975, 6
        %v5077 = vrot.slane %v4976, 2
        %v5078 = vrot.slane %v4976, 4
        %v5079 = vrot.slane %v4977, 2
        %v5080 = vrot.slane %v4977, 4
        %v5081 = vrot.slane %v4977, 6
        %v5082 = vrot.slane %v4978, 2
        %v5083 = vrot.slane %v4978, 4
        %v5084 = vrot.slane %v4978, 6
        %v5085 = vrot.slane %v4979, 2
        %v5086 = vrot.slane %v4979, 4
        %v5087 = vrot.slane %v4979, 6
        %v5088 = vrot.slane %v4980, 2
        %v5089 = vrot.slane %v4980, 4
        %v5090 = vrot.slane %v4980, 6
        %v5091 = vrot.slane %v4981, 4
        %v5092 = vrot.slane %v4981, 6
        %v5093 = vrot.slane %v4982, 2
        %v5094 = vrot.slane %v4982, 4
        %v5095 = vrot.slane %v4982, 6
        %v5096 = vrot.slane %v4983, 2
        %v5097 = vrot.slane %v4983, 6
        %v5098 = vrot.slane %v4984, 2
        %v5099 = vrot.slane %v4984, 4
        %v5100 = vrot.slane %v4984, 6
        %v5101 = vrot.slane %v4985, 2
        %v5102 = vrot.slane %v4985, 4
        %v5103 = vrot.slane %v4986, 2
        %v5104 = vrot.slane %v4986, 4
        %v5105 = vrot.slane %v4986, 6
        %v5106 = vrot.slane %v4987, 2
        %v5107 = vrot.slane %v4987, 4
        %v5108 = vrot.slane %v4987, 6
        %v5109 = vrot.slane %v4988, 2
        %v5110 = vrot.slane %v4988, 4
        %v5111 = vrot.slane %v4988, 6
        %v5112 = vrot.slane %v4989, 2
        %v5113 = vrot.slane %v4989, 4
        %v5114 = vrot.slane %v4989, 6
        %v5115 = vrot.slane %v4990, 4
        %v5116 = vrot.slane %v4990, 6
        %v5117 = vrot.slane %v4991, 2
        %v5118 = vrot.slane %v4991, 4
        %v5119 = vrot.slane %v4991, 6
        %v5120 = vrot.slane %v4992, 2
        %v5121 = vrot.slane %v4992, 6
        %v5122 = vrot.slane %v4993, 2
        %v5123 = vrot.slane %v4993, 4
        %v5124 = vrot.slane %v4993, 6
        %v5125 = vrot.slane %v4994, 2
        %v5126 = vrot.slane %v4994, 4
        %5127 = vst [vmem:[#allocation1] ss:$4 sm:$0xff] %v4959
        %s5128 = scalar_lea.vmem [#allocation1], 1
        %5129 = vst [vmem:[%s5128] ss:$4 sm:$0xff] %v5031
        %s5130 = scalar_lea.vmem [#allocation1], 2
        %5131 = vst [vmem:[%s5130] ss:$4 sm:$0xff] %v5032
        %s5132 = scalar_lea.vmem [#allocation1], 3
        %5133 = vst [vmem:[%s5132] ss:$4 sm:$0xff] %v5033
        %s5134 = scalar_lea.vmem [#allocation1], 32
        %5135 = vst [vmem:[%s5134] ss:$4 sm:$0xff] %v4960
        %s5136 = scalar_lea.vmem [#allocation1], 33
        %5137 = vst [vmem:[%s5136] ss:$4 sm:$0xff] %v5034
        %s5138 = scalar_lea.vmem [#allocation1], 34
        %5139 = vst [vmem:[%s5138] ss:$4 sm:$0xff] %v5035
        %s5140 = scalar_lea.vmem [#allocation1], 35
        %5141 = vst [vmem:[%s5140] ss:$4 sm:$0xff] %v5036
        %v5142 = vld.sshfl [vmem:[#allocation1] sm:$0xff pattern:$0x73625140]
        %v5143 = vld.sshfl [vmem:[#allocation1 + $0x20] sm:$0xff pattern:$0x73625140]
        %5144 = vst [vmem:[#allocation1] ss:$4 sm:$0xff] %v5037
        %5145 = vst [vmem:[%s5128] ss:$4 sm:$0xff] %v5038
        %5146 = vst [vmem:[%s5130] ss:$4 sm:$0xff] %v5039
        %5147 = vst [vmem:[%s5132] ss:$4 sm:$0xff] %v4962
        %5148 = vst [vmem:[%s5134] ss:$4 sm:$0xff] %v5040
        %5149 = vst [vmem:[%s5136] ss:$4 sm:$0xff] %v5041
        %5150 = vst [vmem:[%s5138] ss:$4 sm:$0xff] %v5042
        %5151 = vst [vmem:[%s5140] ss:$4 sm:$0xff] %v4963
        %v5152 = vld.sshfl [vmem:[#allocation1] sm:$0xff pattern:$0x73625140]
        %v5153 = vld.sshfl [vmem:[#allocation1 + $0x20] sm:$0xff pattern:$0x73625140]
        %5154 = vst [vmem:[#allocation1] ss:$4 sm:$0xff] %v5043
        %5155 = vst [vmem:[%s5128] ss:$4 sm:$0xff] %v5044
        %5156 = vst [vmem:[%s5130] ss:$4 sm:$0xff] %v4964
        %5157 = vst [vmem:[%s5132] ss:$4 sm:$0xff] %v5045
        %5158 = vst [vmem:[%s5134] ss:$4 sm:$0xff] %v5046
        %5159 = vst [vmem:[%s5136] ss:$4 sm:$0xff] %v5047
        %5160 = vst [vmem:[%s5138] ss:$4 sm:$0xff] %v4965
        %5161 = vst [vmem:[%s5140] ss:$4 sm:$0xff] %v5048
        %v5162 = vld.sshfl [vmem:[#allocation1] sm:$0xff pattern:$0x73625140]
        %v5163 = vld.sshfl [vmem:[#allocation1 + $0x20] sm:$0xff pattern:$0x73625140]
        %5164 = vst [vmem:[#allocation1] ss:$4 sm:$0xff] %v5049
        %5165 = vst [vmem:[%s5128] ss:$4 sm:$0xff] %v4966
        %5166 = vst [vmem:[%s5130] ss:$4 sm:$0xff] %v5050
        %5167 = vst [vmem:[%s5132] ss:$4 sm:$0xff] %v5051
        %5168 = vst [vmem:[%s5134] ss:$4 sm:$0xff] %v5052
        %5169 = vst [vmem:[%s5136] ss:$4 sm:$0xff] %v4967
        %5170 = vst [vmem:[%s5138] ss:$4 sm:$0xff] %v5053
        %5171 = vst [vmem:[%s5140] ss:$4 sm:$0xff] %v5054
        %v5172 = vld.sshfl [vmem:[#allocation1] sm:$0xff pattern:$0x73625140]
        %v5173 = vld.sshfl [vmem:[#allocation1 + $0x20] sm:$0xff pattern:$0x73625140]
        %5174 = vst [vmem:[#allocation1] ss:$4 sm:$0xff] %v4968
        %5175 = vst [vmem:[%s5128] ss:$4 sm:$0xff] %v5055
        %5176 = vst [vmem:[%s5130] ss:$4 sm:$0xff] %v5056
        %5177 = vst [vmem:[%s5132] ss:$4 sm:$0xff] %v5057
        %5178 = vst [vmem:[%s5134] ss:$4 sm:$0xff] %v4969
        %5179 = vst [vmem:[%s5136] ss:$4 sm:$0xff] %v5058
        %5180 = vst [vmem:[%s5138] ss:$4 sm:$0xff] %v5059
        %5181 = vst [vmem:[%s5140] ss:$4 sm:$0xff] %v5060
        %v5182 = vld.sshfl [vmem:[#allocation1] sm:$0xff pattern:$0x73625140]
        %v5183 = vld.sshfl [vmem:[#allocation1 + $0x20] sm:$0xff pattern:$0x73625140]
        %5184 = vst [vmem:[#allocation1] ss:$4 sm:$0xff] %v5061
        %5185 = vst [vmem:[%s5128] ss:$4 sm:$0xff] %v5062
        %5186 = vst [vmem:[%s5130] ss:$4 sm:$0xff] %v5063
        %5187 = vst [vmem:[%s5132] ss:$4 sm:$0xff] %v4971
        %5188 = vst [vmem:[%s5134] ss:$4 sm:$0xff] %v5064
        %5189 = vst [vmem:[%s5136] ss:$4 sm:$0xff] %v5065
        %5190 = vst [vmem:[%s5138] ss:$4 sm:$0xff] %v5066
        %5191 = vst [vmem:[%s5140] ss:$4 sm:$0xff] %v4972
        %v5192 = vld.sshfl [vmem:[#allocation1] sm:$0xff pattern:$0x73625140]
        %v5193 = vld.sshfl [vmem:[#allocation1 + $0x20] sm:$0xff pattern:$0x73625140]
        %5194 = vst [vmem:[#allocation1] ss:$4 sm:$0xff] %v5067
        %5195 = vst [vmem:[%s5128] ss:$4 sm:$0xff] %v5068
        %5196 = vst [vmem:[%s5130] ss:$4 sm:$0xff] %v4973
        %5197 = vst [vmem:[%s5132] ss:$4 sm:$0xff] %v5069
        %5198 = vst [vmem:[%s5134] ss:$4 sm:$0xff] %v5070
        %5199 = vst [vmem:[%s5136] ss:$4 sm:$0xff] %v5071
        %5200 = vst [vmem:[%s5138] ss:$4 sm:$0xff] %v4974
        %5201 = vst [vmem:[%s5140] ss:$4 sm:$0xff] %v5072
        %v5202 = vld.sshfl [vmem:[#allocation1] sm:$0xff pattern:$0x73625140]
        %v5203 = vld.sshfl [vmem:[#allocation1 + $0x20] sm:$0xff pattern:$0x73625140]
        %5204 = vst [vmem:[#allocation1] ss:$4 sm:$0xff] %v5073
        %5205 = vst [vmem:[%s5128] ss:$4 sm:$0xff] %v4975
        %5206 = vst [vmem:[%s5130] ss:$4 sm:$0xff] %v5074
        %5207 = vst [vmem:[%s5132] ss:$4 sm:$0xff] %v5075
        %5208 = vst [vmem:[%s5134] ss:$4 sm:$0xff] %v5076
        %5209 = vst [vmem:[%s5136] ss:$4 sm:$0xff] %v4976
        %5210 = vst [vmem:[%s5138] ss:$4 sm:$0xff] %v5077
        %5211 = vst [vmem:[%s5140] ss:$4 sm:$0xff] %v5078
        %v5212 = vld.sshfl [vmem:[#allocation1] sm:$0xff pattern:$0x73625140]
        %v5213 = vld.sshfl [vmem:[#allocation1 + $0x20] sm:$0xff pattern:$0x73625140]
        %5214 = vst [vmem:[#allocation1] ss:$4 sm:$0xff] %v4977
        %5215 = vst [vmem:[%s5128] ss:$4 sm:$0xff] %v5079
        %5216 = vst [vmem:[%s5130] ss:$4 sm:$0xff] %v5080
        %5217 = vst [vmem:[%s5132] ss:$4 sm:$0xff] %v5081
        %5218 = vst [vmem:[%s5134] ss:$4 sm:$0xff] %v4978
        %5219 = vst [vmem:[%s5136] ss:$4 sm:$0xff] %v5082
        %5220 = vst [vmem:[%s5138] ss:$4 sm:$0xff] %v5083
        %5221 = vst [vmem:[%s5140] ss:$4 sm:$0xff] %v5084
        %v5222 = vld.sshfl [vmem:[#allocation1] sm:$0xff pattern:$0x73625140]
        %v5223 = vld.sshfl [vmem:[#allocation1 + $0x20] sm:$0xff pattern:$0x73625140]
        %5224 = vst [vmem:[#allocation1] ss:$4 sm:$0xff] %v5085
        %5225 = vst [vmem:[%s5128] ss:$4 sm:$0xff] %v5086
        %5226 = vst [vmem:[%s5130] ss:$4 sm:$0xff] %v5087
        %5227 = vst [vmem:[%s5132] ss:$4 sm:$0xff] %v4980
        %5228 = vst [vmem:[%s5134] ss:$4 sm:$0xff] %v5088
        %5229 = vst [vmem:[%s5136] ss:$4 sm:$0xff] %v5089
        %5230 = vst [vmem:[%s5138] ss:$4 sm:$0xff] %v5090
        %5231 = vst [vmem:[%s5140] ss:$4 sm:$0xff] %v4981
        %v5232 = vld.sshfl [vmem:[#allocation1] sm:$0xff pattern:$0x73625140]
        %v5233 = vld.sshfl [vmem:[#allocation1 + $0x20] sm:$0xff pattern:$0x73625140]
        %5234 = vst [vmem:[#allocation1] ss:$4 sm:$0xff] %v5091
        %5235 = vst [vmem:[%s5128] ss:$4 sm:$0xff] %v5092
        %5236 = vst [vmem:[%s5130] ss:$4 sm:$0xff] %v4982
        %5237 = vst [vmem:[%s5132] ss:$4 sm:$0xff] %v5093
        %5238 = vst [vmem:[%s5134] ss:$4 sm:$0xff] %v5094
        %5239 = vst [vmem:[%s5136] ss:$4 sm:$0xff] %v5095
        %5240 = vst [vmem:[%s5138] ss:$4 sm:$0xff] %v4983
        %5241 = vst [vmem:[%s5140] ss:$4 sm:$0xff] %v5096
        %v5242 = vld.sshfl [vmem:[#allocation1] sm:$0xff pattern:$0x73625140]
        %v5243 = vld.sshfl [vmem:[#allocation1 + $0x20] sm:$0xff pattern:$0x73625140]
        %5244 = vst [vmem:[#allocation1] ss:$4 sm:$0xff] %v5097
        %5245 = vst [vmem:[%s5128] ss:$4 sm:$0xff] %v4984
        %5246 = vst [vmem:[%s5130] ss:$4 sm:$0xff] %v5098
        %5247 = vst [vmem:[%s5132] ss:$4 sm:$0xff] %v5099
        %5248 = vst [vmem:[%s5134] ss:$4 sm:$0xff] %v5100
        %5249 = vst [vmem:[%s5136] ss:$4 sm:$0xff] %v4985
        %5250 = vst [vmem:[%s5138] ss:$4 sm:$0xff] %v5101
        %5251 = vst [vmem:[%s5140] ss:$4 sm:$0xff] %v5102
        %v5252 = vld.sshfl [vmem:[#allocation1] sm:$0xff pattern:$0x73625140]
        %v5253 = vld.sshfl [vmem:[#allocation1 + $0x20] sm:$0xff pattern:$0x73625140]
        %5254 = vst [vmem:[#allocation1] ss:$4 sm:$0xff] %v4986
        %5255 = vst [vmem:[%s5128] ss:$4 sm:$0xff] %v5103
        %5256 = vst [vmem:[%s5130] ss:$4 sm:$0xff] %v5104
        %5257 = vst [vmem:[%s5132] ss:$4 sm:$0xff] %v5105
        %5258 = vst [vmem:[%s5134] ss:$4 sm:$0xff] %v4987
        %5259 = vst [vmem:[%s5136] ss:$4 sm:$0xff] %v5106
        %5260 = vst [vmem:[%s5138] ss:$4 sm:$0xff] %v5107
        %5261 = vst [vmem:[%s5140] ss:$4 sm:$0xff] %v5108
        %v5262 = vld.sshfl [vmem:[#allocation1] sm:$0xff pattern:$0x73625140]
        %v5263 = vld.sshfl [vmem:[#allocation1 + $0x20] sm:$0xff pattern:$0x73625140]
        %5264 = vst [vmem:[#allocation1] ss:$4 sm:$0xff] %v5109
        %5265 = vst [vmem:[%s5128] ss:$4 sm:$0xff] %v5110
        %5266 = vst [vmem:[%s5130] ss:$4 sm:$0xff] %v5111
        %5267 = vst [vmem:[%s5132] ss:$4 sm:$0xff] %v4989
        %5268 = vst [vmem:[%s5134] ss:$4 sm:$0xff] %v5112
        %5269 = vst [vmem:[%s5136] ss:$4 sm:$0xff] %v5113
        %5270 = vst [vmem:[%s5138] ss:$4 sm:$0xff] %v5114
        %5271 = vst [vmem:[%s5140] ss:$4 sm:$0xff] %v4990
        %v5272 = vld.sshfl [vmem:[#allocation1] sm:$0xff pattern:$0x73625140]
        %v5273 = vld.sshfl [vmem:[#allocation1 + $0x20] sm:$0xff pattern:$0x73625140]
        %5274 = vst [vmem:[#allocation1] ss:$4 sm:$0xff] %v5115
        %5275 = vst [vmem:[%s5128] ss:$4 sm:$0xff] %v5116
        %5276 = vst [vmem:[%s5130] ss:$4 sm:$0xff] %v4991
        %5277 = vst [vmem:[%s5132] ss:$4 sm:$0xff] %v5117
        %5278 = vst [vmem:[%s5134] ss:$4 sm:$0xff] %v5118
        %5279 = vst [vmem:[%s5136] ss:$4 sm:$0xff] %v5119
        %5280 = vst [vmem:[%s5138] ss:$4 sm:$0xff] %v4992
        %5281 = vst [vmem:[%s5140] ss:$4 sm:$0xff] %v5120
        %v5282 = vld.sshfl [vmem:[#allocation1] sm:$0xff pattern:$0x73625140]
        %v5283 = vld.sshfl [vmem:[#allocation1 + $0x20] sm:$0xff pattern:$0x73625140]
        %5284 = vst [vmem:[#allocation1] ss:$4 sm:$0xff] %v5121
        %5285 = vst [vmem:[%s5128] ss:$4 sm:$0xff] %v4993
        %5286 = vst [vmem:[%s5130] ss:$4 sm:$0xff] %v5122
        %5287 = vst [vmem:[%s5132] ss:$4 sm:$0xff] %v5123
        %5288 = vst [vmem:[%s5134] ss:$4 sm:$0xff] %v5124
        %5289 = vst [vmem:[%s5136] ss:$4 sm:$0xff] %v4994
        %5290 = vst [vmem:[%s5138] ss:$4 sm:$0xff] %v5125
        %5291 = vst [vmem:[%s5140] ss:$4 sm:$0xff] %v5126
        %v5292 = vld.sshfl [vmem:[#allocation1] sm:$0xff pattern:$0x73625140]
        %v5293 = vld.sshfl [vmem:[#allocation1 + $0x20] sm:$0xff pattern:$0x73625140]
        %v5326 = vpack.c.bf16 %v5143, %v5142
        %v5327 = vpack.c.bf16 %v5153, %v5152
        %v5328 = vpack.c.bf16 %v5163, %v5162
        %v5329 = vpack.c.bf16 %v5173, %v5172
        %v5330 = vpack.c.bf16 %v5183, %v5182
        %v5331 = vpack.c.bf16 %v5193, %v5192
        %v5332 = vpack.c.bf16 %v5203, %v5202
        %v5333 = vpack.c.bf16 %v5213, %v5212
        %v5334 = vpack.c.bf16 %v5223, %v5222
        %v5335 = vpack.c.bf16 %v5233, %v5232
        %v5336 = vpack.c.bf16 %v5243, %v5242
        %v5337 = vpack.c.bf16 %v5253, %v5252
        %v5338 = vpack.c.bf16 %v5263, %v5262
        %v5339 = vpack.c.bf16 %v5273, %v5272
        %v5340 = vpack.c.bf16 %v5283, %v5282
        %v5341 = vpack.c.bf16 %v5293, %v5292
        %v5342 = vld [vmem:[#allocation11] sm:$0xff]
        %v5343 = vld [vmem:[#allocation11 + $0x8] sm:$0xff]
        %v5344 = vld [vmem:[#allocation11 + $0x10] sm:$0xff]
        %v5345 = vld [vmem:[#allocation11 + $0x18] sm:$0xff]
        %v5346 = vld [vmem:[#allocation11 + $0x20] sm:$0xff]
        %v5347 = vld [vmem:[#allocation11 + $0x28] sm:$0xff]
        %v5348 = vld [vmem:[#allocation11 + $0x30] sm:$0xff]
        %v5349 = vld [vmem:[#allocation11 + $0x38] sm:$0xff]
        %v5350 = vld [vmem:[#allocation11 + $0x40] sm:$0xff]
        %v5351 = vld [vmem:[#allocation11 + $0x48] sm:$0xff]
        %v5352 = vld [vmem:[#allocation11 + $0x50] sm:$0xff]
        %v5353 = vld [vmem:[#allocation11 + $0x58] sm:$0xff]
        %v5354 = vld [vmem:[#allocation11 + $0x60] sm:$0xff]
        %v5355 = vld [vmem:[#allocation11 + $0x68] sm:$0xff]
        %v5356 = vld [vmem:[#allocation11 + $0x70] sm:$0xff]
        %v5357 = vld [vmem:[#allocation11 + $0x78] sm:$0xff]
        %v5358 = vld [vmem:[%s7] sm:$0x3]
        %v5360 = vperm.slane %v5358, 0
        %v5361 = vperm.slane %v5358, 1
        %v5380 = vunpack.c.l.b16 %v5342
        %v5381 = vunpack.c.h.b16 %v5342
        %v5382 = vunpack.c.l.b16 %v5343
        %v5383 = vunpack.c.h.b16 %v5343
        %v5384 = vunpack.c.l.b16 %v5344
        %v5385 = vunpack.c.h.b16 %v5344
        %v5386 = vunpack.c.l.b16 %v5345
        %v5387 = vunpack.c.h.b16 %v5345
        %v5388 = vunpack.c.l.b16 %v5346
        %v5389 = vunpack.c.h.b16 %v5346
        %v5390 = vunpack.c.l.b16 %v5347
        %v5391 = vunpack.c.h.b16 %v5347
        %v5392 = vunpack.c.l.b16 %v5348
        %v5393 = vunpack.c.h.b16 %v5348
        %v5394 = vunpack.c.l.b16 %v5349
        %v5395 = vunpack.c.h.b16 %v5349
        %v5396 = vunpack.c.l.b16 %v5350
        %v5397 = vunpack.c.h.b16 %v5350
        %v5398 = vunpack.c.l.b16 %v5351
        %v5399 = vunpack.c.h.b16 %v5351
        %v5400 = vunpack.c.l.b16 %v5352
        %v5401 = vunpack.c.h.b16 %v5352
        %v5402 = vunpack.c.l.b16 %v5353
        %v5403 = vunpack.c.h.b16 %v5353
        %v5404 = vunpack.c.l.b16 %v5354
        %v5405 = vunpack.c.h.b16 %v5354
        %v5406 = vunpack.c.l.b16 %v5355
        %v5407 = vunpack.c.h.b16 %v5355
        %v5408 = vunpack.c.l.b16 %v5356
        %v5409 = vunpack.c.h.b16 %v5356
        %v5410 = vunpack.c.l.b16 %v5357
        %v5411 = vunpack.c.h.b16 %v5357
        %v5412 = vpack.c.b16 %v5382, %v5380
        %v5413 = vpack.c.b16 %v5383, %v5381
        %v5414 = vpack.c.b16 %v5386, %v5384
        %v5415 = vpack.c.b16 %v5387, %v5385
        %v5416 = vpack.c.b16 %v5390, %v5388
        %v5417 = vpack.c.b16 %v5391, %v5389
        %v5418 = vpack.c.b16 %v5394, %v5392
        %v5419 = vpack.c.b16 %v5395, %v5393
        %v5420 = vpack.c.b16 %v5398, %v5396
        %v5421 = vpack.c.b16 %v5399, %v5397
        %v5422 = vpack.c.b16 %v5402, %v5400
        %v5423 = vpack.c.b16 %v5403, %v5401
        %v5424 = vpack.c.b16 %v5406, %v5404
        %v5425 = vpack.c.b16 %v5407, %v5405
        %v5426 = vpack.c.b16 %v5410, %v5408
        %v5427 = vpack.c.b16 %v5411, %v5409
        %5444 = vmatpush.bf16.msra.mxu0 %v5426
        %5445 = vmatpush.bf16.msra.mxu0 %v5424
        %5446 = vmatpush.bf16.msra.mxu0 %v5422
        %5447 = vmatpush.bf16.msra.mxu0 %v5420
        %5448 = vmatpush.bf16.msra.mxu0 %v5418
        %5449 = vmatpush.bf16.msra.mxu0 %v5416
        %5450 = vmatpush.bf16.msra.mxu0 %v5414
        %5451 = vmatpush.bf16.msra.mxu0 %v5412
        %5452 = vmatmul.bf16.gmra.mxu0 %v5326
        %v5453 = vpop.f32.mrf.mxu0
        %v5454 = vadd.f32 %v5360, %v5453
        %v5455 = vpop.f32.mrf.mxu0
        %v5456 = vadd.f32 %v5360, %v5455
        %5457 = vmatmul.bf16.gmra.mxu0 %v5327
        %v5458 = vpop.f32.mrf.mxu0
        %v5459 = vadd.f32 %v5360, %v5458
        %v5460 = vpop.f32.mrf.mxu0
        %v5461 = vadd.f32 %v5360, %v5460
        %5462 = vmatmul.bf16.gmra.mxu0 %v5328
        %v5463 = vpop.f32.mrf.mxu0
        %v5464 = vadd.f32 %v5360, %v5463
        %v5465 = vpop.f32.mrf.mxu0
        %v5466 = vadd.f32 %v5360, %v5465
        %5467 = vmatmul.bf16.gmra.mxu0 %v5329
        %v5468 = vpop.f32.mrf.mxu0
        %v5469 = vadd.f32 %v5360, %v5468
        %v5470 = vpop.f32.mrf.mxu0
        %v5471 = vadd.f32 %v5360, %v5470
        %5472 = vmatmul.bf16.gmra.mxu0 %v5330
        %v5473 = vpop.f32.mrf.mxu0
        %v5474 = vadd.f32 %v5360, %v5473
        %v5475 = vpop.f32.mrf.mxu0
        %v5476 = vadd.f32 %v5360, %v5475
        %5477 = vmatmul.bf16.gmra.mxu0 %v5331
        %v5478 = vpop.f32.mrf.mxu0
        %v5479 = vadd.f32 %v5360, %v5478
        %v5480 = vpop.f32.mrf.mxu0
        %v5481 = vadd.f32 %v5360, %v5480
        %5482 = vmatmul.bf16.gmra.mxu0 %v5332
        %v5483 = vpop.f32.mrf.mxu0
        %v5484 = vadd.f32 %v5360, %v5483
        %v5485 = vpop.f32.mrf.mxu0
        %v5486 = vadd.f32 %v5360, %v5485
        %5487 = vmatmul.bf16.gmra.mxu0 %v5333
        %v5488 = vpop.f32.mrf.mxu0
        %v5489 = vadd.f32 %v5360, %v5488
        %v5490 = vpop.f32.mrf.mxu0
        %v5491 = vadd.f32 %v5360, %v5490
        %5492 = vmatmul.bf16.gmra.mxu0 %v5334
        %v5493 = vpop.f32.mrf.mxu0
        %v5494 = vadd.f32 %v5360, %v5493
        %v5495 = vpop.f32.mrf.mxu0
        %v5496 = vadd.f32 %v5360, %v5495
        %5497 = vmatmul.bf16.gmra.mxu0 %v5335
        %v5498 = vpop.f32.mrf.mxu0
        %v5499 = vadd.f32 %v5360, %v5498
        %v5500 = vpop.f32.mrf.mxu0
        %v5501 = vadd.f32 %v5360, %v5500
        %5502 = vmatmul.bf16.gmra.mxu0 %v5336
        %v5503 = vpop.f32.mrf.mxu0
        %v5504 = vadd.f32 %v5360, %v5503
        %v5505 = vpop.f32.mrf.mxu0
        %v5506 = vadd.f32 %v5360, %v5505
        %5507 = vmatmul.bf16.gmra.mxu0 %v5337
        %v5508 = vpop.f32.mrf.mxu0
        %v5509 = vadd.f32 %v5360, %v5508
        %v5510 = vpop.f32.mrf.mxu0
        %v5511 = vadd.f32 %v5360, %v5510
        %5512 = vmatmul.bf16.gmra.mxu0 %v5338
        %v5513 = vpop.f32.mrf.mxu0
        %v5514 = vadd.f32 %v5360, %v5513
        %v5515 = vpop.f32.mrf.mxu0
        %v5516 = vadd.f32 %v5360, %v5515
        %5517 = vmatmul.bf16.gmra.mxu0 %v5339
        %v5518 = vpop.f32.mrf.mxu0
        %v5519 = vadd.f32 %v5360, %v5518
        %v5520 = vpop.f32.mrf.mxu0
        %v5521 = vadd.f32 %v5360, %v5520
        %5522 = vmatmul.bf16.gmra.mxu0 %v5340
        %v5523 = vpop.f32.mrf.mxu0
        %v5524 = vadd.f32 %v5360, %v5523
        %v5525 = vpop.f32.mrf.mxu0
        %v5526 = vadd.f32 %v5360, %v5525
        %5527 = vmatmul.bf16.gmra.mxu0 %v5341
        %v5528 = vpop.f32.mrf.mxu0
        %v5529 = vadd.f32 %v5360, %v5528
        %v5530 = vpop.f32.mrf.mxu0
        %v5531 = vadd.f32 %v5360, %v5530
        %5532 = vdwg.mxu0
        %5533 = vmatpush.bf16.msra.mxu0 %v5427
        %5534 = vmatpush.bf16.msra.mxu0 %v5425
        %5535 = vmatpush.bf16.msra.mxu0 %v5423
        %5536 = vmatpush.bf16.msra.mxu0 %v5421
        %5537 = vmatpush.bf16.msra.mxu0 %v5419
        %5538 = vmatpush.bf16.msra.mxu0 %v5417
        %5539 = vmatpush.bf16.msra.mxu0 %v5415
        %5540 = vmatpush.bf16.msra.mxu0 %v5413
        %5541 = vmatmul.bf16.gmra.mxu0 %v5326
        %v5542 = vpop.f32.mrf.mxu0
        %v5543 = vadd.f32 %v5361, %v5542
        %v5544 = vpop.f32.mrf.mxu0
        %v5545 = vadd.f32 %v5361, %v5544
        %5546 = vmatmul.bf16.gmra.mxu0 %v5327
        %v5547 = vpop.f32.mrf.mxu0
        %v5548 = vadd.f32 %v5361, %v5547
        %v5549 = vpop.f32.mrf.mxu0
        %v5550 = vadd.f32 %v5361, %v5549
        %5551 = vmatmul.bf16.gmra.mxu0 %v5328
        %v5552 = vpop.f32.mrf.mxu0
        %v5553 = vadd.f32 %v5361, %v5552
        %v5554 = vpop.f32.mrf.mxu0
        %v5555 = vadd.f32 %v5361, %v5554
        %5556 = vmatmul.bf16.gmra.mxu0 %v5329
        %v5557 = vpop.f32.mrf.mxu0
        %v5558 = vadd.f32 %v5361, %v5557
        %v5559 = vpop.f32.mrf.mxu0
        %v5560 = vadd.f32 %v5361, %v5559
        %5561 = vmatmul.bf16.gmra.mxu0 %v5330
        %v5562 = vpop.f32.mrf.mxu0
        %v5563 = vadd.f32 %v5361, %v5562
        %v5564 = vpop.f32.mrf.mxu0
        %v5565 = vadd.f32 %v5361, %v5564
        %5566 = vmatmul.bf16.gmra.mxu0 %v5331
        %v5567 = vpop.f32.mrf.mxu0
        %v5568 = vadd.f32 %v5361, %v5567
        %v5569 = vpop.f32.mrf.mxu0
        %v5570 = vadd.f32 %v5361, %v5569
        %5571 = vmatmul.bf16.gmra.mxu0 %v5332
        %v5572 = vpop.f32.mrf.mxu0
        %v5573 = vadd.f32 %v5361, %v5572
        %v5574 = vpop.f32.mrf.mxu0
        %v5575 = vadd.f32 %v5361, %v5574
        %5576 = vmatmul.bf16.gmra.mxu0 %v5333
        %v5577 = vpop.f32.mrf.mxu0
        %v5578 = vadd.f32 %v5361, %v5577
        %v5579 = vpop.f32.mrf.mxu0
        %v5580 = vadd.f32 %v5361, %v5579
        %5581 = vmatmul.bf16.gmra.mxu0 %v5334
        %v5582 = vpop.f32.mrf.mxu0
        %v5583 = vadd.f32 %v5361, %v5582
        %v5584 = vpop.f32.mrf.mxu0
        %v5585 = vadd.f32 %v5361, %v5584
        %5586 = vmatmul.bf16.gmra.mxu0 %v5335
        %v5587 = vpop.f32.mrf.mxu0
        %v5588 = vadd.f32 %v5361, %v5587
        %v5589 = vpop.f32.mrf.mxu0
        %v5590 = vadd.f32 %v5361, %v5589
        %5591 = vmatmul.bf16.gmra.mxu0 %v5336
        %v5592 = vpop.f32.mrf.mxu0
        %v5593 = vadd.f32 %v5361, %v5592
        %v5594 = vpop.f32.mrf.mxu0
        %v5595 = vadd.f32 %v5361, %v5594
        %5596 = vmatmul.bf16.gmra.mxu0 %v5337
        %v5597 = vpop.f32.mrf.mxu0
        %v5598 = vadd.f32 %v5361, %v5597
        %v5599 = vpop.f32.mrf.mxu0
        %v5600 = vadd.f32 %v5361, %v5599
        %5601 = vmatmul.bf16.gmra.mxu0 %v5338
        %v5602 = vpop.f32.mrf.mxu0
        %v5603 = vadd.f32 %v5361, %v5602
        %v5604 = vpop.f32.mrf.mxu0
        %v5605 = vadd.f32 %v5361, %v5604
        %5606 = vmatmul.bf16.gmra.mxu0 %v5339
        %v5607 = vpop.f32.mrf.mxu0
        %v5608 = vadd.f32 %v5361, %v5607
        %v5609 = vpop.f32.mrf.mxu0
        %v5610 = vadd.f32 %v5361, %v5609
        %5611 = vmatmul.bf16.gmra.mxu0 %v5340
        %v5612 = vpop.f32.mrf.mxu0
        %v5613 = vadd.f32 %v5361, %v5612
        %v5614 = vpop.f32.mrf.mxu0
        %v5615 = vadd.f32 %v5361, %v5614
        %5616 = vmatmul.bf16.gmra.mxu0 %v5341
        %v5617 = vpop.f32.mrf.mxu0
        %v5618 = vadd.f32 %v5361, %v5617
        %v5619 = vpop.f32.mrf.mxu0
        %v5620 = vadd.f32 %v5361, %v5619
        %5621 = vdwg.mxu0
        %v5622 = vld [vmem:[%s376] sm:$0xff]
        %v5623 = vld [vmem:[%s376 + $0x8] sm:$0xff]
        %v5624 = vld [vmem:[%s376 + $0x10] sm:$0xff]
        %v5625 = vld [vmem:[%s376 + $0x18] sm:$0xff]
        %v5626 = vld [vmem:[%s376 + $0x20] sm:$0xff]
        %v5627 = vld [vmem:[%s376 + $0x28] sm:$0xff]
        %v5628 = vld [vmem:[%s376 + $0x30] sm:$0xff]
        %v5629 = vld [vmem:[%s376 + $0x38] sm:$0xff]
        %v5630 = vld [vmem:[%s376 + $0x40] sm:$0xff]
        %v5631 = vld [vmem:[%s376 + $0x48] sm:$0xff]
        %v5632 = vld [vmem:[%s376 + $0x50] sm:$0xff]
        %v5633 = vld [vmem:[%s376 + $0x58] sm:$0xff]
        %v5634 = vld [vmem:[%s376 + $0x60] sm:$0xff]
        %v5635 = vld [vmem:[%s376 + $0x68] sm:$0xff]
        %v5636 = vld [vmem:[%s376 + $0x70] sm:$0xff]
        %v5637 = vld [vmem:[%s376 + $0x78] sm:$0xff]
        %v5638 = vld [vmem:[%s376 + $0x80] sm:$0xff]
        %v5639 = vld [vmem:[%s376 + $0x88] sm:$0xff]
        %v5640 = vld [vmem:[%s376 + $0x90] sm:$0xff]
        %v5641 = vld [vmem:[%s376 + $0x98] sm:$0xff]
        %v5642 = vld [vmem:[%s376 + $0xa0] sm:$0xff]
        %v5643 = vld [vmem:[%s376 + $0xa8] sm:$0xff]
        %v5644 = vld [vmem:[%s376 + $0xb0] sm:$0xff]
        %v5645 = vld [vmem:[%s376 + $0xb8] sm:$0xff]
        %v5646 = vld [vmem:[%s376 + $0xc0] sm:$0xff]
        %v5647 = vld [vmem:[%s376 + $0xc8] sm:$0xff]
        %v5648 = vld [vmem:[%s376 + $0xd0] sm:$0xff]
        %v5649 = vld [vmem:[%s376 + $0xd8] sm:$0xff]
        %v5650 = vld [vmem:[%s376 + $0xe0] sm:$0xff]
        %v5651 = vld [vmem:[%s376 + $0xe8] sm:$0xff]
        %v5652 = vld [vmem:[%s376 + $0xf0] sm:$0xff]
        %v5653 = vld [vmem:[%s376 + $0xf8] sm:$0xff]
        %v5654 = vunpack.c.l.bf16 %v5622
        %v5655 = vunpack.c.h.bf16 %v5622
        %v5656 = vunpack.c.l.bf16 %v5623
        %v5657 = vunpack.c.h.bf16 %v5623
        %v5658 = vunpack.c.l.bf16 %v5624
        %v5659 = vunpack.c.h.bf16 %v5624
        %v5660 = vunpack.c.l.bf16 %v5625
        %v5661 = vunpack.c.h.bf16 %v5625
        %v5662 = vunpack.c.l.bf16 %v5626
        %v5663 = vunpack.c.h.bf16 %v5626
        %v5664 = vunpack.c.l.bf16 %v5627
        %v5665 = vunpack.c.h.bf16 %v5627
        %v5666 = vunpack.c.l.bf16 %v5628
        %v5667 = vunpack.c.h.bf16 %v5628
        %v5668 = vunpack.c.l.bf16 %v5629
        %v5669 = vunpack.c.h.bf16 %v5629
        %v5670 = vunpack.c.l.bf16 %v5630
        %v5671 = vunpack.c.h.bf16 %v5630
        %v5672 = vunpack.c.l.bf16 %v5631
        %v5673 = vunpack.c.h.bf16 %v5631
        %v5674 = vunpack.c.l.bf16 %v5632
        %v5675 = vunpack.c.h.bf16 %v5632
        %v5676 = vunpack.c.l.bf16 %v5633
        %v5677 = vunpack.c.h.bf16 %v5633
        %v5678 = vunpack.c.l.bf16 %v5634
        %v5679 = vunpack.c.h.bf16 %v5634
        %v5680 = vunpack.c.l.bf16 %v5635
        %v5681 = vunpack.c.h.bf16 %v5635
        %v5682 = vunpack.c.l.bf16 %v5636
        %v5683 = vunpack.c.h.bf16 %v5636
        %v5684 = vunpack.c.l.bf16 %v5637
        %v5685 = vunpack.c.h.bf16 %v5637
        %v5686 = vunpack.c.l.bf16 %v5638
        %v5687 = vunpack.c.h.bf16 %v5638
        %v5688 = vunpack.c.l.bf16 %v5639
        %v5689 = vunpack.c.h.bf16 %v5639
        %v5690 = vunpack.c.l.bf16 %v5640
        %v5691 = vunpack.c.h.bf16 %v5640
        %v5692 = vunpack.c.l.bf16 %v5641
        %v5693 = vunpack.c.h.bf16 %v5641
        %v5694 = vunpack.c.l.bf16 %v5642
        %v5695 = vunpack.c.h.bf16 %v5642
        %v5696 = vunpack.c.l.bf16 %v5643
        %v5697 = vunpack.c.h.bf16 %v5643
        %v5698 = vunpack.c.l.bf16 %v5644
        %v5699 = vunpack.c.h.bf16 %v5644
        %v5700 = vunpack.c.l.bf16 %v5645
        %v5701 = vunpack.c.h.bf16 %v5645
        %v5702 = vunpack.c.l.bf16 %v5646
        %v5703 = vunpack.c.h.bf16 %v5646
        %v5704 = vunpack.c.l.bf16 %v5647
        %v5705 = vunpack.c.h.bf16 %v5647
        %v5706 = vunpack.c.l.bf16 %v5648
        %v5707 = vunpack.c.h.bf16 %v5648
        %v5708 = vunpack.c.l.bf16 %v5649
        %v5709 = vunpack.c.h.bf16 %v5649
        %v5710 = vunpack.c.l.bf16 %v5650
        %v5711 = vunpack.c.h.bf16 %v5650
        %v5712 = vunpack.c.l.bf16 %v5651
        %v5713 = vunpack.c.h.bf16 %v5651
        %v5714 = vunpack.c.l.bf16 %v5652
        %v5715 = vunpack.c.h.bf16 %v5652
        %v5716 = vunpack.c.l.bf16 %v5653
        %v5717 = vunpack.c.h.bf16 %v5653
        %v5718 = vadd.f32 %v5454, %v5654
        %v5719 = vadd.f32 %v5543, %v5655
        %v5720 = vadd.f32 %v5456, %v5656
        %v5721 = vadd.f32 %v5545, %v5657
        %v5722 = vadd.f32 %v5459, %v5658
        %v5723 = vadd.f32 %v5548, %v5659
        %v5724 = vadd.f32 %v5461, %v5660
        %v5725 = vadd.f32 %v5550, %v5661
        %v5726 = vadd.f32 %v5464, %v5662
        %v5727 = vadd.f32 %v5553, %v5663
        %v5728 = vadd.f32 %v5466, %v5664
        %v5729 = vadd.f32 %v5555, %v5665
        %v5730 = vadd.f32 %v5469, %v5666
        %v5731 = vadd.f32 %v5558, %v5667
        %v5732 = vadd.f32 %v5471, %v5668
        %v5733 = vadd.f32 %v5560, %v5669
        %v5734 = vadd.f32 %v5474, %v5670
        %v5735 = vadd.f32 %v5563, %v5671
        %v5736 = vadd.f32 %v5476, %v5672
        %v5737 = vadd.f32 %v5565, %v5673
        %v5738 = vadd.f32 %v5479, %v5674
        %v5739 = vadd.f32 %v5568, %v5675
        %v5740 = vadd.f32 %v5481, %v5676
        %v5741 = vadd.f32 %v5570, %v5677
        %v5742 = vadd.f32 %v5484, %v5678
        %v5743 = vadd.f32 %v5573, %v5679
        %v5744 = vadd.f32 %v5486, %v5680
        %v5745 = vadd.f32 %v5575, %v5681
        %v5746 = vadd.f32 %v5489, %v5682
        %v5747 = vadd.f32 %v5578, %v5683
        %v5748 = vadd.f32 %v5491, %v5684
        %v5749 = vadd.f32 %v5580, %v5685
        %v5750 = vadd.f32 %v5494, %v5686
        %v5751 = vadd.f32 %v5583, %v5687
        %v5752 = vadd.f32 %v5496, %v5688
        %v5753 = vadd.f32 %v5585, %v5689
        %v5754 = vadd.f32 %v5499, %v5690
        %v5755 = vadd.f32 %v5588, %v5691
        %v5756 = vadd.f32 %v5501, %v5692
        %v5757 = vadd.f32 %v5590, %v5693
        %v5758 = vadd.f32 %v5504, %v5694
        %v5759 = vadd.f32 %v5593, %v5695
        %v5760 = vadd.f32 %v5506, %v5696
        %v5761 = vadd.f32 %v5595, %v5697
        %v5762 = vadd.f32 %v5509, %v5698
        %v5763 = vadd.f32 %v5598, %v5699
        %v5764 = vadd.f32 %v5511, %v5700
        %v5765 = vadd.f32 %v5600, %v5701
        %v5766 = vadd.f32 %v5514, %v5702
        %v5767 = vadd.f32 %v5603, %v5703
        %v5768 = vadd.f32 %v5516, %v5704
        %v5769 = vadd.f32 %v5605, %v5705
        %v5770 = vadd.f32 %v5519, %v5706
        %v5771 = vadd.f32 %v5608, %v5707
        %v5772 = vadd.f32 %v5521, %v5708
        %v5773 = vadd.f32 %v5610, %v5709
        %v5774 = vadd.f32 %v5524, %v5710
        %v5775 = vadd.f32 %v5613, %v5711
        %v5776 = vadd.f32 %v5526, %v5712
        %v5777 = vadd.f32 %v5615, %v5713
        %v5778 = vadd.f32 %v5529, %v5714
        %v5779 = vadd.f32 %v5618, %v5715
        %v5780 = vadd.f32 %v5531, %v5716
        %v5781 = vadd.f32 %v5620, %v5717
        %v5782 = vmax.f32 %v5718, 0.0
        %v5783 = vmax.f32 %v5719, 0.0
        %v5784 = vmax.f32 %v5720, 0.0
        %v5785 = vmax.f32 %v5721, 0.0
        %v5786 = vmax.f32 %v5722, 0.0
        %v5787 = vmax.f32 %v5723, 0.0
        %v5788 = vmax.f32 %v5724, 0.0
        %v5789 = vmax.f32 %v5725, 0.0
        %v5790 = vmax.f32 %v5726, 0.0
        %v5791 = vmax.f32 %v5727, 0.0
        %v5792 = vmax.f32 %v5728, 0.0
        %v5793 = vmax.f32 %v5729, 0.0
        %v5794 = vmax.f32 %v5730, 0.0
        %v5795 = vmax.f32 %v5731, 0.0
        %v5796 = vmax.f32 %v5732, 0.0
        %v5797 = vmax.f32 %v5733, 0.0
        %v5798 = vmax.f32 %v5734, 0.0
        %v5799 = vmax.f32 %v5735, 0.0
        %v5800 = vmax.f32 %v5736, 0.0
        %v5801 = vmax.f32 %v5737, 0.0
        %v5802 = vmax.f32 %v5738, 0.0
        %v5803 = vmax.f32 %v5739, 0.0
        %v5804 = vmax.f32 %v5740, 0.0
        %v5805 = vmax.f32 %v5741, 0.0
        %v5806 = vmax.f32 %v5742, 0.0
        %v5807 = vmax.f32 %v5743, 0.0
        %v5808 = vmax.f32 %v5744, 0.0
        %v5809 = vmax.f32 %v5745, 0.0
        %v5810 = vmax.f32 %v5746, 0.0
        %v5811 = vmax.f32 %v5747, 0.0
        %v5812 = vmax.f32 %v5748, 0.0
        %v5813 = vmax.f32 %v5749, 0.0
        %v5814 = vmax.f32 %v5750, 0.0
        %v5815 = vmax.f32 %v5751, 0.0
        %v5816 = vmax.f32 %v5752, 0.0
        %v5817 = vmax.f32 %v5753, 0.0
        %v5818 = vmax.f32 %v5754, 0.0
        %v5819 = vmax.f32 %v5755, 0.0
        %v5820 = vmax.f32 %v5756, 0.0
        %v5821 = vmax.f32 %v5757, 0.0
        %v5822 = vmax.f32 %v5758, 0.0
        %v5823 = vmax.f32 %v5759, 0.0
        %v5824 = vmax.f32 %v5760, 0.0
        %v5825 = vmax.f32 %v5761, 0.0
        %v5826 = vmax.f32 %v5762, 0.0
        %v5827 = vmax.f32 %v5763, 0.0
        %v5828 = vmax.f32 %v5764, 0.0
        %v5829 = vmax.f32 %v5765, 0.0
        %v5830 = vmax.f32 %v5766, 0.0
        %v5831 = vmax.f32 %v5767, 0.0
        %v5832 = vmax.f32 %v5768, 0.0
        %v5833 = vmax.f32 %v5769, 0.0
        %v5834 = vmax.f32 %v5770, 0.0
        %v5835 = vmax.f32 %v5771, 0.0
        %v5836 = vmax.f32 %v5772, 0.0
        %v5837 = vmax.f32 %v5773, 0.0
        %v5838 = vmax.f32 %v5774, 0.0
        %v5839 = vmax.f32 %v5775, 0.0
        %v5840 = vmax.f32 %v5776, 0.0
        %v5841 = vmax.f32 %v5777, 0.0
        %v5842 = vmax.f32 %v5778, 0.0
        %v5843 = vmax.f32 %v5779, 0.0
        %v5844 = vmax.f32 %v5780, 0.0
        %v5845 = vmax.f32 %v5781, 0.0
        %v5846 = vpack.c.bf16 %v5783, %v5782
        %v5847 = vpack.c.bf16 %v5785, %v5784
        %v5848 = vpack.c.bf16 %v5787, %v5786
        %v5849 = vpack.c.bf16 %v5789, %v5788
        %v5850 = vpack.c.bf16 %v5791, %v5790
        %v5851 = vpack.c.bf16 %v5793, %v5792
        %v5852 = vpack.c.bf16 %v5795, %v5794
        %v5853 = vpack.c.bf16 %v5797, %v5796
        %v5854 = vpack.c.bf16 %v5799, %v5798
        %v5855 = vpack.c.bf16 %v5801, %v5800
        %v5856 = vpack.c.bf16 %v5803, %v5802
        %v5857 = vpack.c.bf16 %v5805, %v5804
        %v5858 = vpack.c.bf16 %v5807, %v5806
        %v5859 = vpack.c.bf16 %v5809, %v5808
        %v5860 = vpack.c.bf16 %v5811, %v5810
        %v5861 = vpack.c.bf16 %v5813, %v5812
        %v5862 = vpack.c.bf16 %v5815, %v5814
        %v5863 = vpack.c.bf16 %v5817, %v5816
        %v5864 = vpack.c.bf16 %v5819, %v5818
        %v5865 = vpack.c.bf16 %v5821, %v5820
        %v5866 = vpack.c.bf16 %v5823, %v5822
        %v5867 = vpack.c.bf16 %v5825, %v5824
        %v5868 = vpack.c.bf16 %v5827, %v5826
        %v5869 = vpack.c.bf16 %v5829, %v5828
        %v5870 = vpack.c.bf16 %v5831, %v5830
        %v5871 = vpack.c.bf16 %v5833, %v5832
        %v5872 = vpack.c.bf16 %v5835, %v5834
        %v5873 = vpack.c.bf16 %v5837, %v5836
        %v5874 = vpack.c.bf16 %v5839, %v5838
        %v5875 = vpack.c.bf16 %v5841, %v5840
        %v5876 = vpack.c.bf16 %v5843, %v5842
        %v5877 = vpack.c.bf16 %v5845, %v5844
        %5878 = vst [vmem:[%s439] sm:$0xff] %v5846
        %5879 = vst [vmem:[%s439 + $0x8] sm:$0xff] %v5847
        %5880 = vst [vmem:[%s439 + $0x10] sm:$0xff] %v5848
        %5881 = vst [vmem:[%s439 + $0x18] sm:$0xff] %v5849
        %5882 = vst [vmem:[%s439 + $0x20] sm:$0xff] %v5850
        %5883 = vst [vmem:[%s439 + $0x28] sm:$0xff] %v5851
        %5884 = vst [vmem:[%s439 + $0x30] sm:$0xff] %v5852
        %5885 = vst [vmem:[%s439 + $0x38] sm:$0xff] %v5853
        %5886 = vst [vmem:[%s439 + $0x40] sm:$0xff] %v5854
        %5887 = vst [vmem:[%s439 + $0x48] sm:$0xff] %v5855
        %5888 = vst [vmem:[%s439 + $0x50] sm:$0xff] %v5856
        %5889 = vst [vmem:[%s439 + $0x58] sm:$0xff] %v5857
        %5890 = vst [vmem:[%s439 + $0x60] sm:$0xff] %v5858
        %5891 = vst [vmem:[%s439 + $0x68] sm:$0xff] %v5859
        %5892 = vst [vmem:[%s439 + $0x70] sm:$0xff] %v5860
        %5893 = vst [vmem:[%s439 + $0x78] sm:$0xff] %v5861
        %5894 = vst [vmem:[%s439 + $0x80] sm:$0xff] %v5862
        %5895 = vst [vmem:[%s439 + $0x88] sm:$0xff] %v5863
        %5896 = vst [vmem:[%s439 + $0x90] sm:$0xff] %v5864
        %5897 = vst [vmem:[%s439 + $0x98] sm:$0xff] %v5865
        %5898 = vst [vmem:[%s439 + $0xa0] sm:$0xff] %v5866
        %5899 = vst [vmem:[%s439 + $0xa8] sm:$0xff] %v5867
        %5900 = vst [vmem:[%s439 + $0xb0] sm:$0xff] %v5868
        %5901 = vst [vmem:[%s439 + $0xb8] sm:$0xff] %v5869
        %5902 = vst [vmem:[%s439 + $0xc0] sm:$0xff] %v5870
        %5903 = vst [vmem:[%s439 + $0xc8] sm:$0xff] %v5871
        %5904 = vst [vmem:[%s439 + $0xd0] sm:$0xff] %v5872
        %5905 = vst [vmem:[%s439 + $0xd8] sm:$0xff] %v5873
        %5906 = vst [vmem:[%s439 + $0xe0] sm:$0xff] %v5874
        %5907 = vst [vmem:[%s439 + $0xe8] sm:$0xff] %v5875
        %5908 = vst [vmem:[%s439 + $0xf0] sm:$0xff] %v5876
        %5909 = vst [vmem:[%s439 + $0xf8] sm:$0xff] %v5877
        %s5910 = sand.u32 %s233, 1
        %s5911 = scalar_lea.sflag [#allocation5], %s5910
        %s5912 = sand.u32 %s233, 1
        %s5913 = smul.addr %s5912, 256
        %s5914 = scalar_lea.vmem [#allocation12], %s5913
        // Predicated region
        $region73: #{tpu_custom_call.1} parent=51 // pred_check
          %p5915 = pneg %p243
        $region74: #{tpu_custom_call.1} parent=51 // pred_check_branch
          %5917 = sbr.rel (%p5915) target = $region76
        $region75: #{tpu_custom_call.1} parent=51 // pred_region
          %s5918 = smul.u32 16, %s34
          %5920 = vsyncadd %s5911, 0
          %s5921 = smul.addr %s5918, 4
          %s5922 = smul.addr %s33, 64
          %s5923 = sadd.s32 %s5921, %s5922
          %s5924 = smul.addr %s5923, 4
          %s5925 = scalar_lea.hbm %s8, %s5924
          %s5926 = sshll.u32 %s5914, 4
          %s5927 = int_to_ptr.vmem [resolvable:$true] %s5926
          %s5928 = sshll.u32 %s5925, 4
          %s5929 = int_to_ptr.hbm [resolvable:$true] %s5928
          %5934 = dma.vmem_to_hbm [thread:$0]  %s5927, 4096, %s5929, %s5911, 128, 128, 8
        $region76: #{tpu_custom_call.1} parent=51 // pred_fallthru
          _
      $region52: #{tpu_custom_call.1} parent=5 // pred_fallthru
        _
      %p5935 = scmp.le.s32.totalorder 2, %s24
      // Predicated region
      $region77: #{tpu_custom_call.1} parent=5 // pred_check
        %p5936 = pneg %p5935
      $region78: #{tpu_custom_call.1} parent=5 // pred_check_branch
        %5938 = sbr.rel (%p5936) target = $region80
      $region79: #{tpu_custom_call.1} parent=5 // pred_region
        %s5939 = ssub.s32 %s24, 2
        // Predicated region
        $region81: #{tpu_custom_call.1} parent=79 // pred_check
          %p5940 = pneg %p249
        $region82: #{tpu_custom_call.1} parent=79 // pred_check_branch
          %5942 = sbr.rel (%p5940) target = $region84
        $region83: #{tpu_custom_call.1} parent=79 // pred_region
          %s5943 = sand.u32 %s234, 1
          %s5944 = scalar_lea.sflag [#allocation5], %s5943
          %s5945 = sand.u32 %s234, 1
          %s5946 = smul.addr %s5945, 256
          %s5947 = scalar_lea.vmem [#allocation12], %s5946
          %5949 = dma.done %s5944, 4096
        $region84: #{tpu_custom_call.1} parent=79 // pred_fallthru
          _
      $region80: #{tpu_custom_call.1} parent=5 // pred_fallthru
        _
    $region6: #{tpu_custom_call.1} parent=1 // loop_footer
      %s28 = sadd.s32 1, %s24
    $region7: #{tpu_custom_call.1} parent=1 // loop_footer_branch
      %23 = sbr.rel target = $region3
    $region8: #{tpu_custom_call.1} parent=1 // loop_exit
      _
    %5950 = vsyncpa [#allocation4], 1
    %s5951 = scalar_lea.sflag [#allocation4], 1
    %5952 = vsyncpa %s5951, 1
    %5953 = vsyncpa [#allocation7], 1
    %s5954 = scalar_lea.sflag [#allocation7], 1
    %5955 = vsyncpa %s5954, 1
    %5956 = vsyncpa [#allocation10], 1
    %5957 = vsyncpa [#allocation5], 1
    %s5958 = scalar_lea.sflag [#allocation5], 1
    %5959 = vsyncpa %s5958, 1

</llo_original>
